<compile_context>
chip_gen: v7x
topology: tpu7x:2x2x1
jax: 0.10.0
libtpu: 0.0.40
codegen_flags: <defaults>
</compile_context>

<pallas_src>
import jax
import jax.numpy as jnp
from jax.experimental import pallas as pl
from jax.experimental.pallas import tpu as pltpu

# Fixed geometric kernels (used only by the pure-JAX reference; the Pallas conv
# kernel hard-codes the same taps).
K_H  = ((-1., -2., -1.), (0., 0., 0.), (1., 2., 1.))
K_V  = ((-1., 0., 1.), (-2., 0., 2.), (-1., 0., 1.))
K_D1 = ((-1., -1., 0.), (-1., 0., 1.), (0., 1., 1.))
K_D2 = ((0., 1., 1.), (-1., 0., 1.), (-1., -1., 0.))

FEATURE_DIM = 64


# ---------------------------------------------------------------------------
# Kernel 1: fixed 3x3 convolutions (grad_h, grad_v, diag1, diag2) + edge magnitude
# ---------------------------------------------------------------------------
def _geo_conv_kernel(xpad_ref, out_ref):
    # xpad_ref: (Bt, H+2, W+2) zero-padded planes;  out_ref: (Bt, 5, H, W)
    H, W = out_ref.shape[2], out_ref.shape[3]
    x = xpad_ref[...]
    # Hoist the 9 distinct shifted planes once; reuse across all 4 filters.
    s = [[x[:, ky:ky + H, kx:kx + W] for kx in range(3)] for ky in range(3)]
    gh = (s[2][0] + 2. * s[2][1] + s[2][2]) - (s[0][0] + 2. * s[0][1] + s[0][2])
    gv = (s[0][2] + 2. * s[1][2] + s[2][2]) - (s[0][0] + 2. * s[1][0] + s[2][0])
    d1 = (s[1][2] + s[2][1] + s[2][2]) - (s[0][0] + s[0][1] + s[1][0])
    d2 = (s[0][1] + s[0][2] + s[1][2]) - (s[1][0] + s[2][0] + s[2][1])
    out_ref[:, 0, :, :] = jnp.sqrt(gh * gh + gv * gv)   # edge magnitude
    out_ref[:, 1, :, :] = gh
    out_ref[:, 2, :, :] = gv
    out_ref[:, 3, :, :] = d1
    out_ref[:, 4, :, :] = d2


# ---------------------------------------------------------------------------
# Kernel 2: all 1x1-conv stacks (skip processors, fusion, feedback projectors)
# Channel-major: every matmul is  W[c_out, c_in] @ x[c_in, pixel_tile].
# ---------------------------------------------------------------------------
def _pointwise_kernel(base_ref, s0_ref, s1_ref, s2_ref,
                      W1_ref, b1_ref, W2_ref, b2_ref, s3_ref, t3_ref,
                      Wf1b_ref, Wf1s_ref, bf1_ref, Wf2_ref, bf2_ref, Wf3_ref, bf3_ref,
                      Wp_ref, bp_ref,
                      geo_ref, fb0_ref, fb1_ref, fb2_ref, xs_ref):
    f32 = jnp.float32
    # Gather the three 32-channel skips into one [96, Np] VMEM slab (aligned,
    # sublane offsets 0/32/64) so the block-diagonal matmuls see one operand.
    xs_ref[0:32, :] = s0_ref[0]
    xs_ref[32:64, :] = s1_ref[0]
    xs_ref[64:96, :] = s2_ref[0]
    xs = xs_ref[...]

    # Feedback projectors: block-diagonal [192, 96] @ [96, Np] -> one MXU push
    # for all 3 branches; each branch streams straight to its own output ref
    # (no stacked intermediate in HBM, no post-call slice copies).
    fb = jnp.maximum(jnp.dot(Wp_ref[...], xs, preferred_element_type=f32) + bp_ref[...], 0.0)
    fb0_ref[0] = fb[0:64, :]
    fb1_ref[0] = fb[64:128, :]
    fb2_ref[0] = fb[128:192, :]

    # Skip processors (block-diagonal 1x1 convs with folded BN) + trailing BN + ReLU.
    h1 = jnp.maximum(jnp.dot(W1_ref[...], xs, preferred_element_type=f32) + b1_ref[...], 0.0)
    h2 = jnp.maximum(jnp.dot(W2_ref[...], h1, preferred_element_type=f32) + b2_ref[...], 0.0)
    h3 = jnp.maximum(h2 * s3_ref[...] + t3_ref[...], 0.0)

    # Fusion stack: layer-1 split into (geometric 5ch) + (processed-skip 48ch) parts.
    base = base_ref[0]                                                    # [5, Np]
    g1 = jnp.maximum(jnp.dot(Wf1b_ref[...], base, preferred_element_type=f32)
                     + jnp.dot(Wf1s_ref[...], h3, preferred_element_type=f32)
                     + bf1_ref[...], 0.0)
    g2 = jnp.maximum(jnp.dot(Wf2_ref[...], g1, preferred_element_type=f32) + bf2_ref[...], 0.0)
    g3 = jnp.dot(Wf3_ref[...], g2, preferred_element_type=f32) + bf3_ref[...]
    geo_ref[0] = jax.nn.sigmoid(g3)


def _pick_pixel_tile(n, cap=1024):
    # Largest lane-dense tile (multiple of 128) that divides n, capped so the
    # double-buffered working set stays well inside every generation's scoped
    # VMEM default (v5e 16 MiB / v6e 32 MiB / v7x 32 MiB of 64 MiB physical).
    t = (min(cap, n) // 128) * 128
    while t >= 128:
        if n % t == 0:
            return t
        t -= 128
    return n   # fall back to the full plane (block == full dim is always legal)


def _pick_batch_tile(b, hw):
    # Size the conv-kernel batch tile by plane area: pad-in + 5 planes out,
    # double-buffered, plus shifted-plane temporaries — keep it a few MiB.
    cap = max(1, min(8, (2 << 20) // max(1, 6 * hw * 4)))
    for t in (8, 4, 2, 1):
        if t <= cap and t <= b and b % t == 0:
            return t
    return 1 if b % 1 == 0 else b


def _pointwise_stack(base, skips3, prm, tn):
    # base: [B, 5, HW]; skips3: 3 x [B, 32, HW]
    B, _, HW = base.shape
    grid = (B, HW // tn)

    bd = jax.scipy.linalg.block_diag
    W1bd = bd(prm['W1'][0], prm['W1'][1], prm['W1'][2])        # [72, 96]
    b1a = prm['b1'].reshape(-1, 1)                             # [72, 1]
    W2bd = bd(prm['W2'][0], prm['W2'][1], prm['W2'][2])        # [48, 72]
    b2a = prm['b2'].reshape(-1, 1)                             # [48, 1]
    s3a = prm['s3'].reshape(-1, 1)                             # [48, 1]
    t3a = prm['t3'].reshape(-1, 1)                             # [48, 1]
    Wf1b = prm['Wf1'][:, :5]                                   # [32, 5]
    Wf1s = prm['Wf1'][:, 5:]                                   # [32, 48]
    bf1 = prm['bf1'].reshape(-1, 1)                            # [32, 1]
    Wf2 = prm['Wf2']                                           # [16, 32]
    bf2 = prm['bf2'].reshape(-1, 1)                            # [16, 1]
    Wf3 = prm['Wf3']                                           # [1, 16]
    bf3 = prm['bf3'].reshape(-1, 1)                            # [1, 1]
    Wpbd = bd(prm['Wp'][0], prm['Wp'][1], prm['Wp'][2])        # [192, 96]
    bpa = prm['bp'].reshape(-1, 1)                             # [192, 1]

    weights = [W1bd, b1a, W2bd, b2a, s3a, t3a, Wf1b, Wf1s, bf1, Wf2, bf2, Wf3, bf3, Wpbd, bpa]

    def wspec(a):
        n = a.ndim
        return pl.BlockSpec(a.shape, lambda b_, j_, _n=n: (0,) * _n)

    fb_shape = jax.ShapeDtypeStruct((B, FEATURE_DIM, HW), jnp.float32)
    fb_spec = pl.BlockSpec((1, FEATURE_DIM, tn), lambda b_, j_: (b_, 0, j_))

    geo, fb0, fb1, fb2 = pl.pallas_call(
        _pointwise_kernel,
        out_shape=(jax.ShapeDtypeStruct((B, 1, HW), jnp.float32),
                   fb_shape, fb_shape, fb_shape),
        grid=grid,
        in_specs=[pl.BlockSpec((1, 5, tn), lambda b_, j_: (b_, 0, j_))]
                 + [pl.BlockSpec((1, 32, tn), lambda b_, j_: (b_, 0, j_))] * 3
                 + [wspec(w) for w in weights],
        out_specs=(pl.BlockSpec((1, 1, tn), lambda b_, j_: (b_, 0, j_)),
                   fb_spec, fb_spec, fb_spec),
        scratch_shapes=[pltpu.VMEM((96, tn), jnp.float32)],
        compiler_params=pltpu.CompilerParams(
            dimension_semantics=("parallel", "parallel")),
    )(base, *skips3, *weights)
    return geo, (fb0, fb1, fb2)


# ---------------------------------------------------------------------------
# Forward wrapper (no transposes anywhere: only free reshape views of NCHW buffers)
# ---------------------------------------------------------------------------
def geometric_feature_extractor(features, skip_features, prm):
    input_dim = features.ndim
    if input_dim == 3:
        features = features[None]
    B, C, H, W = features.shape
    HW = H * W
    fm = jnp.mean(features, axis=1) if C > 1 else features[:, 0]            # [B, H, W]
    xpad = jnp.pad(fm.astype(jnp.float32), ((0, 0), (1, 1), (1, 1)))

    Bt = _pick_batch_tile(B, HW)
    base5 = pl.pallas_call(
        _geo_conv_kernel,
        out_shape=jax.ShapeDtypeStruct((B, 5, H, W), jnp.float32),
        grid=(B // Bt,),
        in_specs=[pl.BlockSpec((Bt, H + 2, W + 2), lambda i: (i, 0, 0))],
        out_specs=pl.BlockSpec((Bt, 5, H, W), lambda i: (i, 0, 0, 0)),
        compiler_params=pltpu.CompilerParams(dimension_semantics=("parallel",)),
    )(xpad)

    # Free view reshapes of contiguous NCHW buffers (no HBM transpose traffic).
    base = base5.reshape(B, 5, HW)
    # TODO(synk): F.interpolate(mode='nearest') resize for mismatched skip resolutions
    # is not implemented; skips are assumed to already match the feature-map size.
    skips3 = [s.astype(jnp.float32).reshape(B, 32, HW) for s in skip_features[:3]]

    tn = _pick_pixel_tile(HW)
    geo_flat, fb_flats = _pointwise_stack(base, skips3, prm, tn)

    geo = geo_flat.reshape(B, 1, H, W)                                       # view reshape
    feedback = [f.reshape(B, FEATURE_DIM, H, W) for f in fb_flats]           # view reshapes
    if input_dim == 3:
        geo = geo[0]
    return geo, feedback


# ---------------------------------------------------------------------------
# Deterministic parameter construction (eval-mode BN folded into 1x1 convs)
# Weights are stored [c_out, c_in] (PyTorch Conv2d orientation, 1x1 squeezed).
# ---------------------------------------------------------------------------
def make_params(key):
    keys = iter(jax.random.split(key, 128))

    def rnd(shape, scale=0.1):
        return scale * jax.random.normal(next(keys), shape, jnp.float32)

    def pw_bn(cin, cout):
        Wm = rnd((cout, cin))                 # 1x1 conv weight [out, in]
        b = rnd((cout,), 0.05)
        gamma = 1.0 + rnd((cout,))
        beta = rnd((cout,), 0.05)
        mean = rnd((cout,), 0.05)
        var = 1.0 + jnp.abs(rnd((cout,)))
        s = gamma * jax.lax.rsqrt(var + 1e-5)
        return Wm * s[:, None], (b - mean) * s + beta

    def bn(c):
        gamma = 1.0 + rnd((c,))
        beta = rnd((c,), 0.05)
        mean = rnd((c,), 0.05)
        var = 1.0 + jnp.abs(rnd((c,)))
        s = gamma * jax.lax.rsqrt(var + 1e-5)
        return s, beta - mean * s

    W1, b1, W2, b2, s3, t3, Wp, bp = [], [], [], [], [], [], [], []
    for _ in range(3):
        w, bb = pw_bn(32, 24); W1.append(w); b1.append(bb)
        w, bb = pw_bn(24, 16); W2.append(w); b2.append(bb)
        s, t = bn(16); s3.append(s); t3.append(t)
    Wf1, bf1 = pw_bn(5 + 16 * 3, 32)
    Wf2, bf2 = pw_bn(32, 16)
    Wf3, bf3 = rnd((1, 16)), rnd((1,), 0.05)   # last fusion conv has no BN (sigmoid follows)
    for _ in range(3):
        w, bb = pw_bn(32, FEATURE_DIM); Wp.append(w); bp.append(bb)

    st = lambda xs: jnp.stack(xs, 0)
    return dict(W1=st(W1), b1=st(b1), W2=st(W2), b2=st(b2), s3=st(s3), t3=st(t3),
                Wf1=Wf1, bf1=bf1, Wf2=Wf2, bf2=bf2, Wf3=Wf3, bf3=bf3,
                Wp=st(Wp), bp=st(bp))


# ---------------------------------------------------------------------------
# Pure-JAX reference (same folded-BN math) for a correctness check
# ---------------------------------------------------------------------------
def reference_forward(features, skip_features, prm):
    if features.ndim == 3:
        features = features[None]
    B, C, H, W = features.shape
    fm = jnp.mean(features, axis=1, keepdims=True) if C > 1 else features

    def conv3(k):
        kern = jnp.array(k, jnp.float32)[None, None]
        return jax.lax.conv_general_dilated(fm, kern, (1, 1), ((1, 1), (1, 1)),
                                            dimension_numbers=('NCHW', 'OIHW', 'NCHW'))

    gh, gv, d1, d2 = conv3(K_H), conv3(K_V), conv3(K_D1), conv3(K_D2)
    mag = jnp.sqrt(gh ** 2 + gv ** 2)
    base = jnp.concatenate([mag, gh, gv, d1, d2], axis=1)

    def pw(x, Wm, b):
        return jnp.einsum('oc,bchw->bohw', Wm, x) + b[None, :, None, None]

    processed, fbs = [], []
    for i in range(3):
        s = skip_features[i]
        h1 = jax.nn.relu(pw(s, prm['W1'][i], prm['b1'][i]))
        h2 = jax.nn.relu(pw(h1, prm['W2'][i], prm['b2'][i]))
        h3 = jax.nn.relu(h2 * prm['s3'][i][None, :, None, None] + prm['t3'][i][None, :, None, None])
        processed.append(h3)
        fbs.append(jax.nn.relu(pw(s, prm['Wp'][i], prm['bp'][i])))
    allf = jnp.concatenate([base] + processed, axis=1)
    g1 = jax.nn.relu(pw(allf, prm['Wf1'], prm['bf1']))
    g2 = jax.nn.relu(pw(g1, prm['Wf2'], prm['bf2']))
    geo = jax.nn.sigmoid(pw(g2, prm['Wf3'], prm['bf3']))
    return geo, fbs


if __name__ == "__main__":
    B, C, H, W = 2, 4, 16, 16
    key = jax.random.PRNGKey(0)
    kf, k0, k1, k2, kp = jax.random.split(key, 5)
    features = jax.random.normal(kf, (B, C, H, W), jnp.float32)
    skip_features = [jax.random.normal(k, (B, 32, H, W), jnp.float32) for k in (k0, k1, k2)]
    prm = make_params(kp)

    fwd = jax.jit(geometric_feature_extractor)
    geo, feedback = fwd(features, skip_features, prm)
    jax.block_until_ready(geo)
    for f in feedback:
        jax.block_until_ready(f)

    geo_ref, fb_ref = reference_forward(features, skip_features, prm)
    assert geo.shape == (B, 1, H, W)
    assert all(f.shape == (B, FEATURE_DIM, H, W) for f in feedback)
    assert jnp.allclose(geo, geo_ref, atol=1e-2, rtol=1e-2)
    for a, b in zip(feedback, fb_ref):
        assert jnp.allclose(a, b, atol=1e-2, rtol=1e-2)

    print("KERNEL_OK")
</pallas_src>

<mosaic_0001>
module attributes {stable_mosaic.version = 11 : i64} {
  func.func @_geo_conv_kernel(%arg0: i32, %arg1: memref<2x18x18xf32, #tpu.memory_space<vmem>>, %arg2: memref<2x5x16x16xf32, #tpu.memory_space<vmem>>) attributes {dimension_semantics = [#tpu.dimension_semantics<parallel>], iteration_bounds = array<i64: 1>, scalar_prefetch = 0 : i64, scratch_operands = 0 : i64, tpu.core_type = #tpu.core_type<tc>, window_params = [{transform_indices = @transform_0, window_bounds = array<i64: 2, 18, 18>}, {transform_indices = @transform_1, window_bounds = array<i64: 2, 5, 16, 16>}]} {
    %c0 = arith.constant 0 : index
    %c0_0 = arith.constant 0 : index
    %c0_1 = arith.constant 0 : index
    %0 = vector.load %arg1[%c0, %c0_0, %c0_1] : memref<2x18x18xf32, #tpu.memory_space<vmem>>, vector<2x18x18xf32>
    %1 = vector.extract_strided_slice %0 {offsets = [0, 0, 0], sizes = [2, 16, 16], strides = [1, 1, 1]} : vector<2x18x18xf32> to vector<2x16x16xf32>
    %2 = vector.extract_strided_slice %0 {offsets = [0, 0, 1], sizes = [2, 16, 16], strides = [1, 1, 1]} : vector<2x18x18xf32> to vector<2x16x16xf32>
    %3 = vector.extract_strided_slice %0 {offsets = [0, 0, 2], sizes = [2, 16, 16], strides = [1, 1, 1]} : vector<2x18x18xf32> to vector<2x16x16xf32>
    %4 = vector.extract_strided_slice %0 {offsets = [0, 1, 0], sizes = [2, 16, 16], strides = [1, 1, 1]} : vector<2x18x18xf32> to vector<2x16x16xf32>
    %5 = vector.extract_strided_slice %0 {offsets = [0, 1, 2], sizes = [2, 16, 16], strides = [1, 1, 1]} : vector<2x18x18xf32> to vector<2x16x16xf32>
    %6 = vector.extract_strided_slice %0 {offsets = [0, 2, 0], sizes = [2, 16, 16], strides = [1, 1, 1]} : vector<2x18x18xf32> to vector<2x16x16xf32>
    %7 = vector.extract_strided_slice %0 {offsets = [0, 2, 1], sizes = [2, 16, 16], strides = [1, 1, 1]} : vector<2x18x18xf32> to vector<2x16x16xf32>
    %8 = vector.extract_strided_slice %0 {offsets = [0, 2, 2], sizes = [2, 16, 16], strides = [1, 1, 1]} : vector<2x18x18xf32> to vector<2x16x16xf32>
    %cst = arith.constant 2.000000e+00 : f32
    %9 = vector.broadcast %cst : f32 to vector<2x16x16xf32>
    %10 = arith.mulf %9, %7 : vector<2x16x16xf32>
    %11 = arith.addf %6, %10 : vector<2x16x16xf32>
    %12 = arith.addf %11, %8 : vector<2x16x16xf32>
    %cst_2 = arith.constant 2.000000e+00 : f32
    %13 = vector.broadcast %cst_2 : f32 to vector<2x16x16xf32>
    %14 = arith.mulf %13, %2 : vector<2x16x16xf32>
    %15 = arith.addf %1, %14 : vector<2x16x16xf32>
    %16 = arith.addf %15, %3 : vector<2x16x16xf32>
    %17 = arith.subf %12, %16 : vector<2x16x16xf32>
    %cst_3 = arith.constant 2.000000e+00 : f32
    %18 = vector.broadcast %cst_3 : f32 to vector<2x16x16xf32>
    %19 = arith.mulf %18, %5 : vector<2x16x16xf32>
    %20 = arith.addf %3, %19 : vector<2x16x16xf32>
    %21 = arith.addf %20, %8 : vector<2x16x16xf32>
    %cst_4 = arith.constant 2.000000e+00 : f32
    %22 = vector.broadcast %cst_4 : f32 to vector<2x16x16xf32>
    %23 = arith.mulf %22, %4 : vector<2x16x16xf32>
    %24 = arith.addf %1, %23 : vector<2x16x16xf32>
    %25 = arith.addf %24, %6 : vector<2x16x16xf32>
    %26 = arith.subf %21, %25 : vector<2x16x16xf32>
    %27 = arith.addf %5, %7 : vector<2x16x16xf32>
    %28 = arith.addf %27, %8 : vector<2x16x16xf32>
    %29 = arith.addf %1, %2 : vector<2x16x16xf32>
    %30 = arith.addf %29, %4 : vector<2x16x16xf32>
    %31 = arith.subf %28, %30 : vector<2x16x16xf32>
    %32 = arith.addf %2, %3 : vector<2x16x16xf32>
    %33 = arith.addf %32, %5 : vector<2x16x16xf32>
    %34 = arith.addf %4, %6 : vector<2x16x16xf32>
    %35 = arith.addf %34, %7 : vector<2x16x16xf32>
    %36 = arith.subf %33, %35 : vector<2x16x16xf32>
    %37 = arith.mulf %17, %17 : vector<2x16x16xf32>
    %38 = arith.mulf %26, %26 : vector<2x16x16xf32>
    %39 = arith.addf %37, %38 : vector<2x16x16xf32>
    %40 = math.sqrt %39 : vector<2x16x16xf32>
    %c0_5 = arith.constant 0 : index
    %c0_6 = arith.constant 0 : index
    %c0_7 = arith.constant 0 : index
    %c0_8 = arith.constant 0 : index
    %41 = vector.load %arg2[%c0_5, %c0_6, %c0_7, %c0_8] : memref<2x5x16x16xf32, #tpu.memory_space<vmem>>, vector<2x1x16x16xf32>
    %42 = vector.shape_cast %41 : vector<2x1x16x16xf32> to vector<2x16x16xf32>
    %43 = vector.shape_cast %40 : vector<2x16x16xf32> to vector<2x1x16x16xf32>
    tpu.vector_store %arg2[%c0_5, %c0_6, %c0_7, %c0_8], %43 {strides = array<i32>} : memref<2x5x16x16xf32, #tpu.memory_space<vmem>>, vector<2x1x16x16xf32>,
    %c0_9 = arith.constant 0 : index
    %c1 = arith.constant 1 : index
    %c0_10 = arith.constant 0 : index
    %c0_11 = arith.constant 0 : index
    %44 = vector.load %arg2[%c0_9, %c1, %c0_10, %c0_11] : memref<2x5x16x16xf32, #tpu.memory_space<vmem>>, vector<2x1x16x16xf32>
    %45 = vector.shape_cast %44 : vector<2x1x16x16xf32> to vector<2x16x16xf32>
    %46 = vector.shape_cast %17 : vector<2x16x16xf32> to vector<2x1x16x16xf32>
    tpu.vector_store %arg2[%c0_9, %c1, %c0_10, %c0_11], %46 {strides = array<i32>} : memref<2x5x16x16xf32, #tpu.memory_space<vmem>>, vector<2x1x16x16xf32>,
    %c0_12 = arith.constant 0 : index
    %c2 = arith.constant 2 : index
    %c0_13 = arith.constant 0 : index
    %c0_14 = arith.constant 0 : index
    %47 = vector.load %arg2[%c0_12, %c2, %c0_13, %c0_14] : memref<2x5x16x16xf32, #tpu.memory_space<vmem>>, vector<2x1x16x16xf32>
    %48 = vector.shape_cast %47 : vector<2x1x16x16xf32> to vector<2x16x16xf32>
    %49 = vector.shape_cast %26 : vector<2x16x16xf32> to vector<2x1x16x16xf32>
    tpu.vector_store %arg2[%c0_12, %c2, %c0_13, %c0_14], %49 {strides = array<i32>} : memref<2x5x16x16xf32, #tpu.memory_space<vmem>>, vector<2x1x16x16xf32>,
    %c0_15 = arith.constant 0 : index
    %c3 = arith.constant 3 : index
    %c0_16 = arith.constant 0 : index
    %c0_17 = arith.constant 0 : index
    %50 = vector.load %arg2[%c0_15, %c3, %c0_16, %c0_17] : memref<2x5x16x16xf32, #tpu.memory_space<vmem>>, vector<2x1x16x16xf32>
    %51 = vector.shape_cast %50 : vector<2x1x16x16xf32> to vector<2x16x16xf32>
    %52 = vector.shape_cast %31 : vector<2x16x16xf32> to vector<2x1x16x16xf32>
    tpu.vector_store %arg2[%c0_15, %c3, %c0_16, %c0_17], %52 {strides = array<i32>} : memref<2x5x16x16xf32, #tpu.memory_space<vmem>>, vector<2x1x16x16xf32>,
    %c0_18 = arith.constant 0 : index
    %c4 = arith.constant 4 : index
    %c0_19 = arith.constant 0 : index
    %c0_20 = arith.constant 0 : index
    %53 = vector.load %arg2[%c0_18, %c4, %c0_19, %c0_20] : memref<2x5x16x16xf32, #tpu.memory_space<vmem>>, vector<2x1x16x16xf32>
    %54 = vector.shape_cast %53 : vector<2x1x16x16xf32> to vector<2x16x16xf32>
    %55 = vector.shape_cast %36 : vector<2x16x16xf32> to vector<2x1x16x16xf32>
    tpu.vector_store %arg2[%c0_18, %c4, %c0_19, %c0_20], %55 {strides = array<i32>} : memref<2x5x16x16xf32, #tpu.memory_space<vmem>>, vector<2x1x16x16xf32>,
    return
  }
  func.func @transform_0(%arg0: i32) -> (i32, i32, i32) {
    %c0_i32 = arith.constant 0 : i32
    %c0_i32_0 = arith.constant 0 : i32
    %c0_i32_1 = arith.constant 0 : i32
    return %arg0, %c0_i32, %c0_i32_0 : i32, i32, i32
  }
  func.func @transform_1(%arg0: i32) -> (i32, i32, i32, i32) {
    %c0_i32 = arith.constant 0 : i32
    %c0_i32_0 = arith.constant 0 : i32
    %c0_i32_1 = arith.constant 0 : i32
    %c0_i32_2 = arith.constant 0 : i32
    return %arg0, %c0_i32, %c0_i32_0, %c0_i32_1 : i32, i32, i32, i32
  }
}

module attributes {stable_mosaic.version = 11 : i64} {
  func.func @_pointwise_kernel(%arg0: i32, %arg1: i32, %arg2: memref<1x5x256xf32, #tpu.memory_space<vmem>>, %arg3: memref<1x32x256xf32, #tpu.memory_space<vmem>>, %arg4: memref<1x32x256xf32, #tpu.memory_space<vmem>>, %arg5: memref<1x32x256xf32, #tpu.memory_space<vmem>>, %arg6: memref<72x96xf32, #tpu.memory_space<vmem>>, %arg7: memref<72x1xf32, #tpu.memory_space<vmem>>, %arg8: memref<48x72xf32, #tpu.memory_space<vmem>>, %arg9: memref<48x1xf32, #tpu.memory_space<vmem>>, %arg10: memref<48x1xf32, #tpu.memory_space<vmem>>, %arg11: memref<48x1xf32, #tpu.memory_space<vmem>>, %arg12: memref<32x5xf32, #tpu.memory_space<vmem>>, %arg13: memref<32x48xf32, #tpu.memory_space<vmem>>, %arg14: memref<32x1xf32, #tpu.memory_space<vmem>>, %arg15: memref<16x32xf32, #tpu.memory_space<vmem>>, %arg16: memref<16x1xf32, #tpu.memory_space<vmem>>, %arg17: memref<1x16xf32, #tpu.memory_space<vmem>>, %arg18: memref<1x1xf32, #tpu.memory_space<vmem>>, %arg19: memref<192x96xf32, #tpu.memory_space<vmem>>, %arg20: memref<192x1xf32, #tpu.memory_space<vmem>>, %arg21: memref<1x1x256xf32, #tpu.memory_space<vmem>>, %arg22: memref<1x64x256xf32, #tpu.memory_space<vmem>>, %arg23: memref<1x64x256xf32, #tpu.memory_space<vmem>>, %arg24: memref<1x64x256xf32, #tpu.memory_space<vmem>>, %arg25: memref<96x256xf32, #tpu.memory_space<vmem>>) attributes {dimension_semantics = [#tpu.dimension_semantics<parallel>, #tpu.dimension_semantics<parallel>], iteration_bounds = array<i64: 2, 1>, scalar_prefetch = 0 : i64, scratch_operands = 1 : i64, tpu.core_type = #tpu.core_type<tc>, window_params = [{transform_indices = @transform_0, window_bounds = array<i64: 1, 5, 256>}, {transform_indices = @transform_1, window_bounds = array<i64: 1, 32, 256>}, {transform_indices = @transform_2, window_bounds = array<i64: 1, 32, 256>}, {transform_indices = @transform_3, window_bounds = array<i64: 1, 32, 256>}, {pipeline_mode = #tpu.pipeline_mode<synchronous>, transform_indices = @transform_4, window_bounds = array<i64: 72, 96>}, {pipeline_mode = #tpu.pipeline_mode<synchronous>, transform_indices = @transform_5, window_bounds = array<i64: 72, 1>}, {pipeline_mode = #tpu.pipeline_mode<synchronous>, transform_indices = @transform_6, window_bounds = array<i64: 48, 72>}, {pipeline_mode = #tpu.pipeline_mode<synchronous>, transform_indices = @transform_7, window_bounds = array<i64: 48, 1>}, {pipeline_mode = #tpu.pipeline_mode<synchronous>, transform_indices = @transform_8, window_bounds = array<i64: 48, 1>}, {pipeline_mode = #tpu.pipeline_mode<synchronous>, transform_indices = @transform_9, window_bounds = array<i64: 48, 1>}, {pipeline_mode = #tpu.pipeline_mode<synchronous>, transform_indices = @transform_10, window_bounds = array<i64: 32, 5>}, {pipeline_mode = #tpu.pipeline_mode<synchronous>, transform_indices = @transform_11, window_bounds = array<i64: 32, 48>}, {pipeline_mode = #tpu.pipeline_mode<synchronous>, transform_indices = @transform_12, window_bounds = array<i64: 32, 1>}, {pipeline_mode = #tpu.pipeline_mode<synchronous>, transform_indices = @transform_13, window_bounds = array<i64: 16, 32>}, {pipeline_mode = #tpu.pipeline_mode<synchronous>, transform_indices = @transform_14, window_bounds = array<i64: 16, 1>}, {pipeline_mode = #tpu.pipeline_mode<synchronous>, transform_indices = @transform_15, window_bounds = array<i64: 1, 16>}, {pipeline_mode = #tpu.pipeline_mode<synchronous>, transform_indices = @transform_16, window_bounds = array<i64: 1, 1>}, {pipeline_mode = #tpu.pipeline_mode<synchronous>, transform_indices = @transform_17, window_bounds = array<i64: 192, 96>}, {pipeline_mode = #tpu.pipeline_mode<synchronous>, transform_indices = @transform_18, window_bounds = array<i64: 192, 1>}, {transform_indices = @transform_19, window_bounds = array<i64: 1, 1, 256>}, {transform_indices = @transform_20, window_bounds = array<i64: 1, 64, 256>}, {transform_indices = @transform_21, window_bounds = array<i64: 1, 64, 256>}, {transform_indices = @transform_22, window_bounds = array<i64: 1, 64, 256>}]} {
    %c0 = arith.constant 0 : index
    %c0_0 = arith.constant 0 : index
    %c0_1 = arith.constant 0 : index
    %0 = vector.load %arg3[%c0, %c0_0, %c0_1] : memref<1x32x256xf32, #tpu.memory_space<vmem>>, vector<1x32x256xf32>
    %1 = vector.shape_cast %0 : vector<1x32x256xf32> to vector<32x256xf32>
    %c0_2 = arith.constant 0 : index
    %c0_3 = arith.constant 0 : index
    %2 = vector.load %arg25[%c0_2, %c0_3] : memref<96x256xf32, #tpu.memory_space<vmem>>, vector<32x256xf32>
    tpu.vector_store %arg25[%c0_2, %c0_3], %1 {strides = array<i32>} : memref<96x256xf32, #tpu.memory_space<vmem>>, vector<32x256xf32>,
    %c0_4 = arith.constant 0 : index
    %c0_5 = arith.constant 0 : index
    %c0_6 = arith.constant 0 : index
    %3 = vector.load %arg4[%c0_4, %c0_5, %c0_6] : memref<1x32x256xf32, #tpu.memory_space<vmem>>, vector<1x32x256xf32>
    %4 = vector.shape_cast %3 : vector<1x32x256xf32> to vector<32x256xf32>
    %c32 = arith.constant 32 : index
    %c0_7 = arith.constant 0 : index
    %5 = vector.load %arg25[%c32, %c0_7] : memref<96x256xf32, #tpu.memory_space<vmem>>, vector<32x256xf32>
    tpu.vector_store %arg25[%c32, %c0_7], %4 {strides = array<i32>} : memref<96x256xf32, #tpu.memory_space<vmem>>, vector<32x256xf32>,
    %c0_8 = arith.constant 0 : index
    %c0_9 = arith.constant 0 : index
    %c0_10 = arith.constant 0 : index
    %6 = vector.load %arg5[%c0_8, %c0_9, %c0_10] : memref<1x32x256xf32, #tpu.memory_space<vmem>>, vector<1x32x256xf32>
    %7 = vector.shape_cast %6 : vector<1x32x256xf32> to vector<32x256xf32>
    %c64 = arith.constant 64 : index
    %c0_11 = arith.constant 0 : index
    %8 = vector.load %arg25[%c64, %c0_11] : memref<96x256xf32, #tpu.memory_space<vmem>>, vector<32x256xf32>
    tpu.vector_store %arg25[%c64, %c0_11], %7 {strides = array<i32>} : memref<96x256xf32, #tpu.memory_space<vmem>>, vector<32x256xf32>,
    %c0_12 = arith.constant 0 : index
    %c0_13 = arith.constant 0 : index
    %9 = vector.load %arg25[%c0_12, %c0_13] : memref<96x256xf32, #tpu.memory_space<vmem>>, vector<96x256xf32>
    %c0_14 = arith.constant 0 : index
    %c0_15 = arith.constant 0 : index
    %10 = vector.load %arg19[%c0_14, %c0_15] : memref<192x96xf32, #tpu.memory_space<vmem>>, vector<192x96xf32>
    %cst = arith.constant dense<0.000000e+00> : vector<192x256xf32>
    %11 = tpu.matmul %10, %9, %cst {dimension_numbers = #tpu.dot_dimension_numbers<[1], [0], [0], [1], [0, 0, 1, 1], [], []>} : vector<192x96xf32>, vector<96x256xf32>, vector<192x256xf32> -> vector<192x256xf32>
    %c0_16 = arith.constant 0 : index
    %c0_17 = arith.constant 0 : index
    %12 = vector.load %arg20[%c0_16, %c0_17] : memref<192x1xf32, #tpu.memory_space<vmem>>, vector<192x1xf32>
    %13 = vector.broadcast %12 : vector<192x1xf32> to vector<192x256xf32>
    %14 = arith.addf %11, %13 : vector<192x256xf32>
    %cst_18 = arith.constant 0.000000e+00 : f32
    %15 = vector.broadcast %cst_18 : f32 to vector<192x256xf32>
    %16 = arith.maximumf %14, %15 : vector<192x256xf32>
    %17 = vector.extract_strided_slice %16 {offsets = [0, 0], sizes = [64, 256], strides = [1, 1]} : vector<192x256xf32> to vector<64x256xf32>
    %c0_19 = arith.constant 0 : index
    %c0_20 = arith.constant 0 : index
    %c0_21 = arith.constant 0 : index
    %18 = vector.load %arg22[%c0_19, %c0_20, %c0_21] : memref<1x64x256xf32, #tpu.memory_space<vmem>>, vector<1x64x256xf32>
    %19 = vector.shape_cast %18 : vector<1x64x256xf32> to vector<64x256xf32>
    %20 = vector.shape_cast %17 : vector<64x256xf32> to vector<1x64x256xf32>
    tpu.vector_store %arg22[%c0_19, %c0_20, %c0_21], %20 {strides = array<i32>} : memref<1x64x256xf32, #tpu.memory_space<vmem>>, vector<1x64x256xf32>,
    %21 = vector.extract_strided_slice %16 {offsets = [64, 0], sizes = [64, 256], strides = [1, 1]} : vector<192x256xf32> to vector<64x256xf32>
    %c0_22 = arith.constant 0 : index
    %c0_23 = arith.constant 0 : index
    %c0_24 = arith.constant 0 : index
    %22 = vector.load %arg23[%c0_22, %c0_23, %c0_24] : memref<1x64x256xf32, #tpu.memory_space<vmem>>, vector<1x64x256xf32>
    %23 = vector.shape_cast %22 : vector<1x64x256xf32> to vector<64x256xf32>
    %24 = vector.shape_cast %21 : vector<64x256xf32> to vector<1x64x256xf32>
    tpu.vector_store %arg23[%c0_22, %c0_23, %c0_24], %24 {strides = array<i32>} : memref<1x64x256xf32, #tpu.memory_space<vmem>>, vector<1x64x256xf32>,
    %25 = vector.extract_strided_slice %16 {offsets = [128, 0], sizes = [64, 256], strides = [1, 1]} : vector<192x256xf32> to vector<64x256xf32>
    %c0_25 = arith.constant 0 : index
    %c0_26 = arith.constant 0 : index
    %c0_27 = arith.constant 0 : index
    %26 = vector.load %arg24[%c0_25, %c0_26, %c0_27] : memref<1x64x256xf32, #tpu.memory_space<vmem>>, vector<1x64x256xf32>
    %27 = vector.shape_cast %26 : vector<1x64x256xf32> to vector<64x256xf32>
    %28 = vector.shape_cast %25 : vector<64x256xf32> to vector<1x64x256xf32>
    tpu.vector_store %arg24[%c0_25, %c0_26, %c0_27], %28 {strides = array<i32>} : memref<1x64x256xf32, #tpu.memory_space<vmem>>, vector<1x64x256xf32>,
    %c0_28 = arith.constant 0 : index
    %c0_29 = arith.constant 0 : index
    %29 = vector.load %arg6[%c0_28, %c0_29] : memref<72x96xf32, #tpu.memory_space<vmem>>, vector<72x96xf32>
    %cst_30 = arith.constant dense<0.000000e+00> : vector<72x256xf32>
    %30 = tpu.matmul %29, %9, %cst_30 {dimension_numbers = #tpu.dot_dimension_numbers<[1], [0], [0], [1], [0, 0, 1, 1], [], []>} : vector<72x96xf32>, vector<96x256xf32>, vector<72x256xf32> -> vector<72x256xf32>
    %c0_31 = arith.constant 0 : index
    %c0_32 = arith.constant 0 : index
    %31 = vector.load %arg7[%c0_31, %c0_32] : memref<72x1xf32, #tpu.memory_space<vmem>>, vector<72x1xf32>
    %32 = vector.broadcast %31 : vector<72x1xf32> to vector<72x256xf32>
    %33 = arith.addf %30, %32 : vector<72x256xf32>
    %cst_33 = arith.constant 0.000000e+00 : f32
    %34 = vector.broadcast %cst_33 : f32 to vector<72x256xf32>
    %35 = arith.maximumf %33, %34 : vector<72x256xf32>
    %c0_34 = arith.constant 0 : index
    %c0_35 = arith.constant 0 : index
    %36 = vector.load %arg8[%c0_34, %c0_35] : memref<48x72xf32, #tpu.memory_space<vmem>>, vector<48x72xf32>
    %cst_36 = arith.constant dense<0.000000e+00> : vector<48x256xf32>
    %37 = tpu.matmul %36, %35, %cst_36 {dimension_numbers = #tpu.dot_dimension_numbers<[1], [0], [0], [1], [0, 0, 1, 1], [], []>} : vector<48x72xf32>, vector<72x256xf32>, vector<48x256xf32> -> vector<48x256xf32>
    %c0_37 = arith.constant 0 : index
    %c0_38 = arith.constant 0 : index
    %38 = vector.load %arg9[%c0_37, %c0_38] : memref<48x1xf32, #tpu.memory_space<vmem>>, vector<48x1xf32>
    %39 = vector.broadcast %38 : vector<48x1xf32> to vector<48x256xf32>
    %40 = arith.addf %37, %39 : vector<48x256xf32>
    %cst_39 = arith.constant 0.000000e+00 : f32
    %41 = vector.broadcast %cst_39 : f32 to vector<48x256xf32>
    %42 = arith.maximumf %40, %41 : vector<48x256xf32>
    %c0_40 = arith.constant 0 : index
    %c0_41 = arith.constant 0 : index
    %43 = vector.load %arg10[%c0_40, %c0_41] : memref<48x1xf32, #tpu.memory_space<vmem>>, vector<48x1xf32>
    %44 = vector.broadcast %43 : vector<48x1xf32> to vector<48x256xf32>
    %45 = arith.mulf %42, %44 : vector<48x256xf32>
    %c0_42 = arith.constant 0 : index
    %c0_43 = arith.constant 0 : index
    %46 = vector.load %arg11[%c0_42, %c0_43] : memref<48x1xf32, #tpu.memory_space<vmem>>, vector<48x1xf32>
    %47 = vector.broadcast %46 : vector<48x1xf32> to vector<48x256xf32>
    %48 = arith.addf %45, %47 : vector<48x256xf32>
    %cst_44 = arith.constant 0.000000e+00 : f32
    %49 = vector.broadcast %cst_44 : f32 to vector<48x256xf32>
    %50 = arith.maximumf %48, %49 : vector<48x256xf32>
    %c0_45 = arith.constant 0 : index
    %c0_46 = arith.constant 0 : index
    %c0_47 = arith.constant 0 : index
    %51 = vector.load %arg2[%c0_45, %c0_46, %c0_47] : memref<1x5x256xf32, #tpu.memory_space<vmem>>, vector<1x5x256xf32>
    %52 = vector.shape_cast %51 : vector<1x5x256xf32> to vector<5x256xf32>
    %c0_48 = arith.constant 0 : index
    %c0_49 = arith.constant 0 : index
    %53 = vector.load %arg12[%c0_48, %c0_49] : memref<32x5xf32, #tpu.memory_space<vmem>>, vector<32x5xf32>
    %cst_50 = arith.constant dense<0.000000e+00> : vector<32x256xf32>
    %54 = tpu.matmul %53, %52, %cst_50 {dimension_numbers = #tpu.dot_dimension_numbers<[1], [0], [0], [1], [0, 0, 1, 1], [], []>} : vector<32x5xf32>, vector<5x256xf32>, vector<32x256xf32> -> vector<32x256xf32>
    %c0_51 = arith.constant 0 : index
    %c0_52 = arith.constant 0 : index
    %55 = vector.load %arg13[%c0_51, %c0_52] : memref<32x48xf32, #tpu.memory_space<vmem>>, vector<32x48xf32>
    %cst_53 = arith.constant dense<0.000000e+00> : vector<32x256xf32>
    %56 = tpu.matmul %55, %50, %cst_53 {dimension_numbers = #tpu.dot_dimension_numbers<[1], [0], [0], [1], [0, 0, 1, 1], [], []>} : vector<32x48xf32>, vector<48x256xf32>, vector<32x256xf32> -> vector<32x256xf32>
    %57 = arith.addf %54, %56 : vector<32x256xf32>
    %c0_54 = arith.constant 0 : index
    %c0_55 = arith.constant 0 : index
    %58 = vector.load %arg14[%c0_54, %c0_55] : memref<32x1xf32, #tpu.memory_space<vmem>>, vector<32x1xf32>
    %59 = vector.broadcast %58 : vector<32x1xf32> to vector<32x256xf32>
    %60 = arith.addf %57, %59 : vector<32x256xf32>
    %cst_56 = arith.constant 0.000000e+00 : f32
    %61 = vector.broadcast %cst_56 : f32 to vector<32x256xf32>
    %62 = arith.maximumf %60, %61 : vector<32x256xf32>
    %c0_57 = arith.constant 0 : index
    %c0_58 = arith.constant 0 : index
    %63 = vector.load %arg15[%c0_57, %c0_58] : memref<16x32xf32, #tpu.memory_space<vmem>>, vector<16x32xf32>
    %cst_59 = arith.constant dense<0.000000e+00> : vector<16x256xf32>
    %64 = tpu.matmul %63, %62, %cst_59 {dimension_numbers = #tpu.dot_dimension_numbers<[1], [0], [0], [1], [0, 0, 1, 1], [], []>} : vector<16x32xf32>, vector<32x256xf32>, vector<16x256xf32> -> vector<16x256xf32>
    %c0_60 = arith.constant 0 : index
    %c0_61 = arith.constant 0 : index
    %65 = vector.load %arg16[%c0_60, %c0_61] : memref<16x1xf32, #tpu.memory_space<vmem>>, vector<16x1xf32>
    %66 = vector.broadcast %65 : vector<16x1xf32> to vector<16x256xf32>
    %67 = arith.addf %64, %66 : vector<16x256xf32>
    %cst_62 = arith.constant 0.000000e+00 : f32
    %68 = vector.broadcast %cst_62 : f32 to vector<16x256xf32>
    %69 = arith.maximumf %67, %68 : vector<16x256xf32>
    %c0_63 = arith.constant 0 : index
    %c0_64 = arith.constant 0 : index
    %70 = vector.load %arg17[%c0_63, %c0_64] : memref<1x16xf32, #tpu.memory_space<vmem>>, vector<1x16xf32>
    %cst_65 = arith.constant dense<0.000000e+00> : vector<1x256xf32>
    %71 = tpu.matmul %70, %69, %cst_65 {dimension_numbers = #tpu.dot_dimension_numbers<[1], [0], [0], [1], [0, 0, 1, 1], [], []>} : vector<1x16xf32>, vector<16x256xf32>, vector<1x256xf32> -> vector<1x256xf32>
    %c0_66 = arith.constant 0 : index
    %c0_67 = arith.constant 0 : index
    %72 = vector.load %arg18[%c0_66, %c0_67] : memref<1x1xf32, #tpu.memory_space<vmem>>, vector<1x1xf32>
    %73 = vector.broadcast %72 : vector<1x1xf32> to vector<1x256xf32>
    %74 = arith.addf %71, %73 : vector<1x256xf32>
    %75 = arith.negf %74 : vector<1x256xf32>
    %76 = math.exp %75 : vector<1x256xf32>
    %cst_68 = arith.constant 1.000000e+00 : f32
    %77 = vector.broadcast %cst_68 : f32 to vector<1x256xf32>
    %78 = arith.addf %77, %76 : vector<1x256xf32>
    %79 = arith.divf %77, %78 : vector<1x256xf32>
    %c0_69 = arith.constant 0 : index
    %c0_70 = arith.constant 0 : index
    %c0_71 = arith.constant 0 : index
    %80 = vector.load %arg21[%c0_69, %c0_70, %c0_71] : memref<1x1x256xf32, #tpu.memory_space<vmem>>, vector<1x1x256xf32>
    %81 = vector.shape_cast %80 : vector<1x1x256xf32> to vector<1x256xf32>
    %82 = vector.shape_cast %79 : vector<1x256xf32> to vector<1x1x256xf32>
    tpu.vector_store %arg21[%c0_69, %c0_70, %c0_71], %82 {strides = array<i32>} : memref<1x1x256xf32, #tpu.memory_space<vmem>>, vector<1x1x256xf32>,
    return
  }
  func.func @transform_0(%arg0: i32, %arg1: i32) -> (i32, i32, i32) {
    %c0_i32 = arith.constant 0 : i32
    %c0_i32_0 = arith.constant 0 : i32
    return %arg0, %c0_i32, %arg1 : i32, i32, i32
  }
  func.func @transform_1(%arg0: i32, %arg1: i32) -> (i32, i32, i32) {
    %c0_i32 = arith.constant 0 : i32
    %c0_i32_0 = arith.constant 0 : i32
    return %arg0, %c0_i32, %arg1 : i32, i32, i32
  }
  func.func @transform_2(%arg0: i32, %arg1: i32) -> (i32, i32, i32) {
    %c0_i32 = arith.constant 0 : i32
    %c0_i32_0 = arith.constant 0 : i32
    return %arg0, %c0_i32, %arg1 : i32, i32, i32
  }
  func.func @transform_3(%arg0: i32, %arg1: i32) -> (i32, i32, i32) {
    %c0_i32 = arith.constant 0 : i32
    %c0_i32_0 = arith.constant 0 : i32
    return %arg0, %c0_i32, %arg1 : i32, i32, i32
  }
  func.func @transform_4(%arg0: i32, %arg1: i32) -> (i32, i32) {
    %c0_i32 = arith.constant 0 : i32
    %c0_i32_0 = arith.constant 0 : i32
    %c0_i32_1 = arith.constant 0 : i32
    return %c0_i32, %c0_i32_0 : i32, i32
  }
  func.func @transform_5(%arg0: i32, %arg1: i32) -> (i32, i32) {
    %c0_i32 = arith.constant 0 : i32
    %c0_i32_0 = arith.constant 0 : i32
    %c0_i32_1 = arith.constant 0 : i32
    return %c0_i32, %c0_i32_0 : i32, i32
  }
  func.func @transform_6(%arg0: i32, %arg1: i32) -> (i32, i32) {
    %c0_i32 = arith.constant 0 : i32
    %c0_i32_0 = arith.constant 0 : i32
    %c0_i32_1 = arith.constant 0 : i32
    return %c0_i32, %c0_i32_0 : i32, i32
  }
  func.func @transform_7(%arg0: i32, %arg1: i32) -> (i32, i32) {
    %c0_i32 = arith.constant 0 : i32
    %c0_i32_0 = arith.constant 0 : i32
    %c0_i32_1 = arith.constant 0 : i32
    return %c0_i32, %c0_i32_0 : i32, i32
  }
  func.func @transform_8(%arg0: i32, %arg1: i32) -> (i32, i32) {
    %c0_i32 = arith.constant 0 : i32
    %c0_i32_0 = arith.constant 0 : i32
    %c0_i32_1 = arith.constant 0 : i32
    return %c0_i32, %c0_i32_0 : i32, i32
  }
  func.func @transform_9(%arg0: i32, %arg1: i32) -> (i32, i32) {
    %c0_i32 = arith.constant 0 : i32
    %c0_i32_0 = arith.constant 0 : i32
    %c0_i32_1 = arith.constant 0 : i32
    return %c0_i32, %c0_i32_0 : i32, i32
  }
  func.func @transform_10(%arg0: i32, %arg1: i32) -> (i32, i32) {
    %c0_i32 = arith.constant 0 : i32
    %c0_i32_0 = arith.constant 0 : i32
    %c0_i32_1 = arith.constant 0 : i32
    return %c0_i32, %c0_i32_0 : i32, i32
  }
  func.func @transform_11(%arg0: i32, %arg1: i32) -> (i32, i32) {
    %c0_i32 = arith.constant 0 : i32
    %c0_i32_0 = arith.constant 0 : i32
    %c0_i32_1 = arith.constant 0 : i32
    return %c0_i32, %c0_i32_0 : i32, i32
  }
  func.func @transform_12(%arg0: i32, %arg1: i32) -> (i32, i32) {
    %c0_i32 = arith.constant 0 : i32
    %c0_i32_0 = arith.constant 0 : i32
    %c0_i32_1 = arith.constant 0 : i32
    return %c0_i32, %c0_i32_0 : i32, i32
  }
  func.func @transform_13(%arg0: i32, %arg1: i32) -> (i32, i32) {
    %c0_i32 = arith.constant 0 : i32
    %c0_i32_0 = arith.constant 0 : i32
    %c0_i32_1 = arith.constant 0 : i32
    return %c0_i32, %c0_i32_0 : i32, i32
  }
  func.func @transform_14(%arg0: i32, %arg1: i32) -> (i32, i32) {
    %c0_i32 = arith.constant 0 : i32
    %c0_i32_0 = arith.constant 0 : i32
    %c0_i32_1 = arith.constant 0 : i32
    return %c0_i32, %c0_i32_0 : i32, i32
  }
  func.func @transform_15(%arg0: i32, %arg1: i32) -> (i32, i32) {
    %c0_i32 = arith.constant 0 : i32
    %c0_i32_0 = arith.constant 0 : i32
    %c0_i32_1 = arith.constant 0 : i32
    return %c0_i32, %c0_i32_0 : i32, i32
  }
  func.func @transform_16(%arg0: i32, %arg1: i32) -> (i32, i32) {
    %c0_i32 = arith.constant 0 : i32
    %c0_i32_0 = arith.constant 0 : i32
    %c0_i32_1 = arith.constant 0 : i32
    return %c0_i32, %c0_i32_0 : i32, i32
  }
  func.func @transform_17(%arg0: i32, %arg1: i32) -> (i32, i32) {
    %c0_i32 = arith.constant 0 : i32
    %c0_i32_0 = arith.constant 0 : i32
    %c0_i32_1 = arith.constant 0 : i32
    return %c0_i32, %c0_i32_0 : i32, i32
  }
  func.func @transform_18(%arg0: i32, %arg1: i32) -> (i32, i32) {
    %c0_i32 = arith.constant 0 : i32
    %c0_i32_0 = arith.constant 0 : i32
    %c0_i32_1 = arith.constant 0 : i32
    return %c0_i32, %c0_i32_0 : i32, i32
  }
  func.func @transform_19(%arg0: i32, %arg1: i32) -> (i32, i32, i32) {
    %c0_i32 = arith.constant 0 : i32
    %c0_i32_0 = arith.constant 0 : i32
    return %arg0, %c0_i32, %arg1 : i32, i32, i32
  }
  func.func @transform_20(%arg0: i32, %arg1: i32) -> (i32, i32, i32) {
    %c0_i32 = arith.constant 0 : i32
    %c0_i32_0 = arith.constant 0 : i32
    return %arg0, %c0_i32, %arg1 : i32, i32, i32
  }
  func.func @transform_21(%arg0: i32, %arg1: i32) -> (i32, i32, i32) {
    %c0_i32 = arith.constant 0 : i32
    %c0_i32_0 = arith.constant 0 : i32
    return %arg0, %c0_i32, %arg1 : i32, i32, i32
  }
  func.func @transform_22(%arg0: i32, %arg1: i32) -> (i32, i32, i32) {
    %c0_i32 = arith.constant 0 : i32
    %c0_i32_0 = arith.constant 0 : i32
    return %arg0, %c0_i32, %arg1 : i32, i32, i32
  }
}

</mosaic_0001>

<llo_original>
// kernel: geometric_feature_extractor.2
$region0: #{geometric_feature_extractor.2}
  #allocation0 [shape = 'u32[]', space=smem, size = 0x4, offset = 0x4, fixed_abs, tag = 'smem constant byte address 0x4 - core index']
  #allocation1 [shape = 'u32[144,128]{1,0:T(1,128)}', space=vmem, size = 0x12000, scoped, tag = 'internal scratch']
  %s0 = inlined_call_operand.vmem [shape: f32[2,18,18], index: 0, kind: input, shape index: {}]
  %s1 = inlined_call_operand.vmem [shape: f32[2,5,16,16], index: 1, kind: output, shape index: {}]
  %s2 = sld [smem:[#allocation0]]
  $region14: #{geometric_feature_extractor.2} parent=0
    _
  %s4 = ssub.s32 1, %s2
  %s5 = scalar_select 0, %s4, %s2
  // Predicated region
  $region2: #{geometric_feature_extractor.2} parent=0 // pred_check
    _
  $region3: #{geometric_feature_extractor.2} parent=0 // pred_check_branch
    %7 = sbr.rel (0) target = $region5
  $region4: #{geometric_feature_extractor.2} parent=0 // pred_region
    _
  $region5: #{geometric_feature_extractor.2} parent=0 // pred_fallthru
    _
  %v8 = vld [vmem:[%s0] sm:$0xff]
  %v9 = vld [vmem:[%s0 + $0x8] sm:$0xff]
  %v10 = vld [vmem:[%s0 + $0x10] sm:$0x3]
  %v11 = vld [vmem:[%s0 + $0x18] sm:$0xff]
  %v12 = vld [vmem:[%s0 + $0x20] sm:$0xff]
  %v13 = vld [vmem:[%s0 + $0x28] sm:$0x3]
  %v14 = vmul.f32 %v8, 2.0
  %v15 = vmul.f32 %v9, 2.0
  %v16 = vmul.f32 %v10, 2.0
  %v17 = vmul.f32 %v11, 2.0
  %v18 = vmul.f32 %v12, 2.0
  %v19 = vmul.f32 %v13, 2.0
  %26 = vrot.lane.b32.xlu0 %v14, 127
  %v27 = vpop.permute.xlu0 %26
  %28 = vrot.lane.b32.xlu0 %v15, 127
  %v29 = vpop.permute.xlu0 %28
  %30 = vrot.lane.b32.xlu0 %v16, 127
  %v31 = vpop.permute.xlu0 %30
  %32 = vrot.lane.b32.xlu0 %v17, 127
  %v33 = vpop.permute.xlu0 %32
  %34 = vrot.lane.b32.xlu0 %v18, 127
  %v35 = vpop.permute.xlu0 %34
  %36 = vrot.lane.b32.xlu0 %v19, 127
  %v37 = vpop.permute.xlu0 %36
  %v44 = vadd.f32 %v8, %v27
  %v45 = vadd.f32 %v9, %v29
  %v46 = vadd.f32 %v10, %v31
  %v47 = vadd.f32 %v11, %v33
  %v48 = vadd.f32 %v12, %v35
  %v49 = vadd.f32 %v13, %v37
  %56 = vrot.lane.b32.xlu0 %v8, 126
  %v57 = vpop.permute.xlu0 %56
  %58 = vrot.lane.b32.xlu0 %v9, 126
  %v59 = vpop.permute.xlu0 %58
  %60 = vrot.lane.b32.xlu0 %v10, 126
  %v61 = vpop.permute.xlu0 %60
  %62 = vrot.lane.b32.xlu0 %v11, 126
  %v63 = vpop.permute.xlu0 %62
  %64 = vrot.lane.b32.xlu0 %v12, 126
  %v65 = vpop.permute.xlu0 %64
  %66 = vrot.lane.b32.xlu0 %v13, 126
  %v67 = vpop.permute.xlu0 %66
  %v74 = vadd.f32 %v44, %v57
  %v75 = vadd.f32 %v45, %v59
  %v76 = vadd.f32 %v46, %v61
  %v77 = vadd.f32 %v47, %v63
  %v78 = vadd.f32 %v48, %v65
  %v79 = vadd.f32 %v49, %v67
  %vm84 = vcmask 1041408
  %v85 = vrot.slane %v74, 6
  %v86 = vrot.slane %v75, 6
  %v87 = vsel %vm84, %v85, %v86
  %v88 = vrot.slane %v77, 6
  %v89 = vrot.slane %v78, 6
  %v90 = vsel %vm84, %v88, %v89
  %v97 = vsub.f32 %v74, %v85
  %v98 = vsub.f32 %v75, %v87
  %v99 = vsub.f32 %v76, %v86
  %v100 = vsub.f32 %v77, %v88
  %v101 = vsub.f32 %v78, %v90
  %v102 = vsub.f32 %v79, %v89
  %vm103 = vcmask 1046528
  %v104 = vrot.slane %v14, 1
  %v105 = vrot.slane %v15, 1
  %v106 = vsel %vm103, %v104, %v105
  %v107 = vrot.slane %v16, 1
  %v108 = vsel %vm103, %v105, %v107
  %v109 = vrot.slane %v17, 1
  %v110 = vrot.slane %v18, 1
  %v111 = vsel %vm103, %v109, %v110
  %v112 = vrot.slane %v19, 1
  %v113 = vsel %vm103, %v110, %v112
  %v118 = vadd.f32 %v8, %v106
  %v119 = vadd.f32 %v9, %v108
  %v120 = vadd.f32 %v11, %v111
  %v121 = vadd.f32 %v12, %v113
  %vm122 = vcmask 1045504
  %v123 = vrot.slane %v8, 2
  %v124 = vrot.slane %v9, 2
  %v125 = vsel %vm122, %v123, %v124
  %v126 = vrot.slane %v10, 2
  %v127 = vsel %vm122, %v124, %v126
  %v128 = vrot.slane %v11, 2
  %v129 = vrot.slane %v12, 2
  %v130 = vsel %vm122, %v128, %v129
  %v131 = vrot.slane %v13, 2
  %v132 = vsel %vm122, %v129, %v131
  %v137 = vadd.f32 %v118, %v125
  %v138 = vadd.f32 %v119, %v127
  %v139 = vadd.f32 %v120, %v130
  %v140 = vadd.f32 %v121, %v132
  %145 = vrot.lane.b32.xlu0 %v137, 2
  %v146 = vpop.permute.xlu0 %145
  %147 = vrot.lane.b32.xlu0 %v138, 2
  %v148 = vpop.permute.xlu0 %147
  %149 = vrot.lane.b32.xlu0 %v139, 2
  %v150 = vpop.permute.xlu0 %149
  %151 = vrot.lane.b32.xlu0 %v140, 2
  %v152 = vpop.permute.xlu0 %151
  %v157 = vsub.f32 %v137, %v146
  %v158 = vsub.f32 %v138, %v148
  %v159 = vsub.f32 %v139, %v150
  %v160 = vsub.f32 %v140, %v152
  %v161 = vrot.slane %v8, 1
  %v162 = vrot.slane %v9, 1
  %v163 = vsel %vm103, %v161, %v162
  %v164 = vrot.slane %v10, 1
  %v165 = vsel %vm103, %v162, %v164
  %v166 = vrot.slane %v11, 1
  %v167 = vrot.slane %v12, 1
  %v168 = vsel %vm103, %v166, %v167
  %v169 = vrot.slane %v13, 1
  %v170 = vsel %vm103, %v167, %v169
  %171 = vrot.lane.b32.xlu0 %v163, 1
  %v172 = vpop.permute.xlu0 %171
  %173 = vrot.lane.b32.xlu0 %v165, 1
  %v174 = vpop.permute.xlu0 %173
  %175 = vrot.lane.b32.xlu0 %v164, 1
  %v176 = vpop.permute.xlu0 %175
  %177 = vrot.lane.b32.xlu0 %v168, 1
  %v178 = vpop.permute.xlu0 %177
  %179 = vrot.lane.b32.xlu0 %v170, 1
  %v180 = vpop.permute.xlu0 %179
  %181 = vrot.lane.b32.xlu0 %v169, 1
  %v182 = vpop.permute.xlu0 %181
  %v189 = vadd.f32 %v8, %v172
  %v190 = vadd.f32 %v9, %v174
  %v191 = vadd.f32 %v10, %v176
  %v192 = vadd.f32 %v11, %v178
  %v193 = vadd.f32 %v12, %v180
  %v194 = vadd.f32 %v13, %v182
  %v201 = vadd.f32 %v189, %v163
  %v202 = vadd.f32 %v190, %v165
  %v203 = vadd.f32 %v191, %v164
  %v204 = vadd.f32 %v192, %v168
  %v205 = vadd.f32 %v193, %v170
  %v206 = vadd.f32 %v194, %v169
  %207 = vrot.lane.b32.xlu0 %v8, 127
  %v208 = vpop.permute.xlu0 %207
  %209 = vrot.lane.b32.xlu0 %v9, 127
  %v210 = vpop.permute.xlu0 %209
  %211 = vrot.lane.b32.xlu0 %v11, 127
  %v212 = vpop.permute.xlu0 %211
  %213 = vrot.lane.b32.xlu0 %v12, 127
  %v214 = vpop.permute.xlu0 %213
  %v219 = vadd.f32 %v8, %v208
  %v220 = vadd.f32 %v9, %v210
  %v221 = vadd.f32 %v11, %v212
  %v222 = vadd.f32 %v12, %v214
  %v223 = vadd.f32 %v219, %v163
  %v224 = vadd.f32 %v220, %v165
  %v225 = vadd.f32 %v221, %v168
  %v226 = vadd.f32 %v222, %v170
  %vm231 = vcmask 1040384
  %v232 = vrot.slane %v223, 7
  %v233 = vrot.slane %v224, 7
  %v234 = vsel %vm231, %v232, %v233
  %v235 = vrot.slane %v225, 7
  %v236 = vrot.slane %v226, 7
  %v237 = vsel %vm231, %v235, %v236
  %238 = vrot.lane.b32.xlu0 %v232, 2
  %v239 = vpop.permute.xlu0 %238
  %240 = vrot.lane.b32.xlu0 %v234, 2
  %v241 = vpop.permute.xlu0 %240
  %242 = vrot.lane.b32.xlu0 %v233, 2
  %v243 = vpop.permute.xlu0 %242
  %244 = vrot.lane.b32.xlu0 %v235, 2
  %v245 = vpop.permute.xlu0 %244
  %246 = vrot.lane.b32.xlu0 %v237, 2
  %v247 = vpop.permute.xlu0 %246
  %248 = vrot.lane.b32.xlu0 %v236, 2
  %v249 = vpop.permute.xlu0 %248
  %v256 = vsub.f32 %v201, %v239
  %v257 = vsub.f32 %v202, %v241
  %v258 = vsub.f32 %v203, %v243
  %v259 = vsub.f32 %v204, %v245
  %v260 = vsub.f32 %v205, %v247
  %v261 = vsub.f32 %v206, %v249
  %262 = vrot.lane.b32.xlu0 %v163, 127
  %v263 = vpop.permute.xlu0 %262
  %264 = vrot.lane.b32.xlu0 %v165, 127
  %v265 = vpop.permute.xlu0 %264
  %266 = vrot.lane.b32.xlu0 %v168, 127
  %v267 = vpop.permute.xlu0 %266
  %268 = vrot.lane.b32.xlu0 %v170, 127
  %v269 = vpop.permute.xlu0 %268
  %v274 = vadd.f32 %v219, %v263
  %v275 = vadd.f32 %v220, %v265
  %v276 = vadd.f32 %v221, %v267
  %v277 = vadd.f32 %v222, %v269
  %v278 = vadd.f32 %v8, %v163
  %v279 = vadd.f32 %v9, %v165
  %v280 = vadd.f32 %v10, %v164
  %v281 = vadd.f32 %v11, %v168
  %v282 = vadd.f32 %v12, %v170
  %v283 = vadd.f32 %v13, %v169
  %284 = vrot.lane.b32.xlu0 %v164, 127
  %v285 = vpop.permute.xlu0 %284
  %286 = vrot.lane.b32.xlu0 %v169, 127
  %v287 = vpop.permute.xlu0 %286
  %v290 = vadd.f32 %v278, %v263
  %v291 = vadd.f32 %v279, %v265
  %v292 = vadd.f32 %v280, %v285
  %v293 = vadd.f32 %v281, %v267
  %v294 = vadd.f32 %v282, %v269
  %v295 = vadd.f32 %v283, %v287
  %v302 = vrot.slane %v290, 1
  %v303 = vrot.slane %v291, 1
  %v304 = vsel %vm103, %v302, %v303
  %v305 = vrot.slane %v292, 1
  %v306 = vsel %vm103, %v303, %v305
  %v307 = vrot.slane %v293, 1
  %v308 = vrot.slane %v294, 1
  %v309 = vsel %vm103, %v307, %v308
  %v310 = vrot.slane %v295, 1
  %v311 = vsel %vm103, %v308, %v310
  %312 = vrot.lane.b32.xlu0 %v304, 1
  %v313 = vpop.permute.xlu0 %312
  %314 = vrot.lane.b32.xlu0 %v306, 1
  %v315 = vpop.permute.xlu0 %314
  %316 = vrot.lane.b32.xlu0 %v309, 1
  %v317 = vpop.permute.xlu0 %316
  %318 = vrot.lane.b32.xlu0 %v311, 1
  %v319 = vpop.permute.xlu0 %318
  %v324 = vsub.f32 %v274, %v313
  %v325 = vsub.f32 %v275, %v315
  %v326 = vsub.f32 %v276, %v317
  %v327 = vsub.f32 %v277, %v319
  %v328 = vmul.f32 %v97, %v97
  %v329 = vmul.f32 %v98, %v98
  %v330 = vmul.f32 %v99, %v99
  %v331 = vmul.f32 %v100, %v100
  %v332 = vmul.f32 %v101, %v101
  %v333 = vmul.f32 %v102, %v102
  %v334 = vmul.f32 %v157, %v157
  %v335 = vmul.f32 %v158, %v158
  %v336 = vmul.f32 %v159, %v159
  %v337 = vmul.f32 %v160, %v160
  %v342 = vrot.slane %v334, 6
  %v343 = vrot.slane %v335, 6
  %v344 = vsel %vm84, %v342, %v343
  %v345 = vrot.slane %v336, 6
  %v346 = vrot.slane %v337, 6
  %v347 = vsel %vm84, %v345, %v346
  %348 = vrot.lane.b32.xlu0 %v342, 126
  %v349 = vpop.permute.xlu0 %348
  %350 = vrot.lane.b32.xlu0 %v344, 126
  %v351 = vpop.permute.xlu0 %350
  %352 = vrot.lane.b32.xlu0 %v343, 126
  %v353 = vpop.permute.xlu0 %352
  %354 = vrot.lane.b32.xlu0 %v345, 126
  %v355 = vpop.permute.xlu0 %354
  %356 = vrot.lane.b32.xlu0 %v347, 126
  %v357 = vpop.permute.xlu0 %356
  %358 = vrot.lane.b32.xlu0 %v346, 126
  %v359 = vpop.permute.xlu0 %358
  %v366 = vadd.f32 %v328, %v349
  %v367 = vadd.f32 %v329, %v351
  %v368 = vadd.f32 %v330, %v353
  %v369 = vadd.f32 %v331, %v355
  %v370 = vadd.f32 %v332, %v357
  %v371 = vadd.f32 %v333, %v359
  %v372 = vrsqrt.pop %v366
  %v373 = vmul.f32 %v366, %v372
  %vm374 = vcmp.eq.f32.partialorder %v366, inf
  %v375 = vsel %vm374, %v366, %v373
  %vm376 = vcmp.eq.f32.partialorder %v366, 0.0
  %v377 = vand.u32 %v366, 2147483648
  %v378 = vsel %vm376, %v377, %v375
  %v379 = vrsqrt.pop %v367
  %v380 = vmul.f32 %v367, %v379
  %vm381 = vcmp.eq.f32.partialorder %v367, inf
  %v382 = vsel %vm381, %v367, %v380
  %vm383 = vcmp.eq.f32.partialorder %v367, 0.0
  %v384 = vand.u32 %v367, 2147483648
  %v385 = vsel %vm383, %v384, %v382
  %v386 = vrsqrt.pop %v368
  %v387 = vmul.f32 %v368, %v386
  %vm388 = vcmp.eq.f32.partialorder %v368, inf
  %v389 = vsel %vm388, %v368, %v387
  %vm390 = vcmp.eq.f32.partialorder %v368, 0.0
  %v391 = vand.u32 %v368, 2147483648
  %v392 = vsel %vm390, %v391, %v389
  %v393 = vrsqrt.pop %v369
  %v394 = vmul.f32 %v369, %v393
  %vm395 = vcmp.eq.f32.partialorder %v369, inf
  %v396 = vsel %vm395, %v369, %v394
  %vm397 = vcmp.eq.f32.partialorder %v369, 0.0
  %v398 = vand.u32 %v369, 2147483648
  %v399 = vsel %vm397, %v398, %v396
  %v400 = vrsqrt.pop %v370
  %v401 = vmul.f32 %v370, %v400
  %vm402 = vcmp.eq.f32.partialorder %v370, inf
  %v403 = vsel %vm402, %v370, %v401
  %vm404 = vcmp.eq.f32.partialorder %v370, 0.0
  %v405 = vand.u32 %v370, 2147483648
  %v406 = vsel %vm404, %v405, %v403
  %v407 = vrsqrt.pop %v371
  %v408 = vmul.f32 %v371, %v407
  %vm409 = vcmp.eq.f32.partialorder %v371, inf
  %v410 = vsel %vm409, %v371, %v408
  %vm411 = vcmp.eq.f32.partialorder %v371, 0.0
  %v412 = vand.u32 %v371, 2147483648
  %v413 = vsel %vm411, %v412, %v410
  %vm414 = vcmask 130050
  %415 = vst.msk [vmem:[%s1 - $0x2] sm:$0xfc] %vm414, %v378
  %vm416 = vcmask 130048
  %417 = vst.msk [vmem:[%s1 + $0x6] sm:$0xff] %vm416, %v385
  %vm418 = vcmask 123904
  %419 = vst.msk [vmem:[%s1 + $0xe] sm:$0x3] %vm418, %v392
  %420 = vst.msk [vmem:[%s1 + $0x4e] sm:$0xfc] %vm414, %v399
  %421 = vst.msk [vmem:[%s1 + $0x56] sm:$0xff] %vm416, %v406
  %422 = vst.msk [vmem:[%s1 + $0x5e] sm:$0x3] %vm418, %v413
  %s423 = scalar_lea.vmem %s1, 16
  %424 = vst.msk [vmem:[%s423 - $0x2] sm:$0xfc] %vm414, %v97
  %425 = vst.msk [vmem:[%s423 + $0x6] sm:$0xff] %vm416, %v98
  %426 = vst.msk [vmem:[%s423 + $0xe] sm:$0x3] %vm418, %v99
  %427 = vst.msk [vmem:[%s423 + $0x4e] sm:$0xfc] %vm414, %v100
  %428 = vst.msk [vmem:[%s423 + $0x56] sm:$0xff] %vm416, %v101
  %429 = vst.msk [vmem:[%s423 + $0x5e] sm:$0x3] %vm418, %v102
  %434 = vrot.lane.b32.xlu0 %v157, 126
  %v435 = vpop.permute.xlu0 %434
  %436 = vrot.lane.b32.xlu0 %v158, 126
  %v437 = vpop.permute.xlu0 %436
  %438 = vrot.lane.b32.xlu0 %v159, 126
  %v439 = vpop.permute.xlu0 %438
  %440 = vrot.lane.b32.xlu0 %v160, 126
  %v441 = vpop.permute.xlu0 %440
  %s446 = scalar_lea.vmem %s1, 32
  %447 = vst.msk [vmem:[%s446] sm:$0xff] %vm416, %v435
  %448 = vst.msk [vmem:[%s446 + $0x8] sm:$0xff] %vm416, %v437
  %449 = vst.msk [vmem:[%s446 + $0x50] sm:$0xff] %vm416, %v439
  %450 = vst.msk [vmem:[%s446 + $0x58] sm:$0xff] %vm416, %v441
  %457 = vrot.lane.b32.xlu0 %v256, 126
  %v458 = vpop.permute.xlu0 %457
  %459 = vrot.lane.b32.xlu0 %v257, 126
  %v460 = vpop.permute.xlu0 %459
  %461 = vrot.lane.b32.xlu0 %v258, 126
  %v462 = vpop.permute.xlu0 %461
  %463 = vrot.lane.b32.xlu0 %v259, 126
  %v464 = vpop.permute.xlu0 %463
  %465 = vrot.lane.b32.xlu0 %v260, 126
  %v466 = vpop.permute.xlu0 %465
  %467 = vrot.lane.b32.xlu0 %v261, 126
  %v468 = vpop.permute.xlu0 %467
  %s475 = scalar_lea.vmem %s1, 48
  %vm476 = vcmask 130049
  %477 = vst.msk [vmem:[%s475 - $0x1] sm:$0xfe] %vm476, %v458
  %478 = vst.msk [vmem:[%s475 + $0x7] sm:$0xff] %vm416, %v460
  %vm479 = vcmask 122880
  %480 = vst.msk [vmem:[%s475 + $0xf] sm:$0x1] %vm479, %v462
  %481 = vst.msk [vmem:[%s475 + $0x4f] sm:$0xfe] %vm476, %v464
  %482 = vst.msk [vmem:[%s475 + $0x57] sm:$0xff] %vm416, %v466
  %483 = vst.msk [vmem:[%s475 + $0x5f] sm:$0x1] %vm479, %v468
  %488 = vrot.lane.b32.xlu0 %v324, 127
  %v489 = vpop.permute.xlu0 %488
  %490 = vrot.lane.b32.xlu0 %v325, 127
  %v491 = vpop.permute.xlu0 %490
  %492 = vrot.lane.b32.xlu0 %v326, 127
  %v493 = vpop.permute.xlu0 %492
  %494 = vrot.lane.b32.xlu0 %v327, 127
  %v495 = vpop.permute.xlu0 %494
  %s500 = scalar_lea.vmem %s1, 64
  %501 = vst.msk [vmem:[%s500] sm:$0xff] %vm416, %v489
  %502 = vst.msk [vmem:[%s500 + $0x8] sm:$0xff] %vm416, %v491
  %503 = vst.msk [vmem:[%s500 + $0x50] sm:$0xff] %vm416, %v493
  %504 = vst.msk [vmem:[%s500 + $0x58] sm:$0xff] %vm416, %v495
  // Predicated region
  $region6: #{geometric_feature_extractor.2} parent=0 // pred_check
    _
  $region7: #{geometric_feature_extractor.2} parent=0 // pred_check_branch
    %506 = sbr.rel (0) target = $region9
  $region8: #{geometric_feature_extractor.2} parent=0 // pred_region
    _
  $region9: #{geometric_feature_extractor.2} parent=0 // pred_fallthru
    _
  // Predicated region
  $region10: #{geometric_feature_extractor.2} parent=0 // pred_check
    _
  $region11: #{geometric_feature_extractor.2} parent=0 // pred_check_branch
    %508 = sbr.rel (0) target = $region13
  $region12: #{geometric_feature_extractor.2} parent=0 // pred_region
    _
  $region13: #{geometric_feature_extractor.2} parent=0 // pred_fallthru
    _

// kernel: geometric_feature_extractor.3
$region0: #{geometric_feature_extractor.3}
  #allocation0 [shape = 'u32[]', space=smem, size = 0x4, offset = 0x4, fixed_abs, tag = 'smem constant byte address 0x4 - core index']
  #allocation1 [shape = 'u32[144,128]{1,0:T(1,128)}', space=vmem, size = 0x12000, scoped, tag = 'internal scratch']
  #allocation2 [shape = 'f32[96,256]{1,0:T(8,128)}', space=vmem, size = 0x18000, scoped, tag = 'scratch operand']
  #allocation3 [shape = 'f32[1,1]{1,0:T(1,128)S(1)}', space=vmem, size = 0x200, scoped, tag = 'scoped memory for geometric_feature_extractor.3']
  %s0 = inlined_call_operand.vmem [shape: f32[2,5,256], index: 0, kind: input, shape index: {}]
  %s1 = inlined_call_operand.vmem [shape: f32[2,32,256], index: 1, kind: input, shape index: {}]
  %s2 = inlined_call_operand.vmem [shape: f32[2,32,256], index: 2, kind: input, shape index: {}]
  %s3 = inlined_call_operand.vmem [shape: f32[2,32,256], index: 3, kind: input, shape index: {}]
  %s4 = inlined_call_operand.vmem [shape: f32[72,96], index: 4, kind: input, shape index: {}]
  %s5 = inlined_call_operand.vmem [shape: f32[72,1], index: 5, kind: input, shape index: {}]
  %s6 = inlined_call_operand.vmem [shape: f32[48,72], index: 6, kind: input, shape index: {}]
  %s7 = inlined_call_operand.vmem [shape: f32[48,1], index: 7, kind: input, shape index: {}]
  %s8 = inlined_call_operand.vmem [shape: f32[48,1], index: 8, kind: input, shape index: {}]
  %s9 = inlined_call_operand.vmem [shape: f32[48,1], index: 9, kind: input, shape index: {}]
  %s10 = inlined_call_operand.vmem [shape: f32[32,5], index: 10, kind: input, shape index: {}]
  %s11 = inlined_call_operand.vmem [shape: f32[32,48], index: 11, kind: input, shape index: {}]
  %s12 = inlined_call_operand.vmem [shape: f32[32,1], index: 12, kind: input, shape index: {}]
  %s13 = inlined_call_operand.vmem [shape: f32[16,32], index: 13, kind: input, shape index: {}]
  %s14 = inlined_call_operand.vmem [shape: f32[16,1], index: 14, kind: input, shape index: {}]
  %s15 = inlined_call_operand.vmem [shape: f32[1,16], index: 15, kind: input, shape index: {}]
  %s16 = inlined_call_operand.<no memory space> [shape: f32[1,1], index: 16, kind: input, shape index: {}]
  %s17 = inlined_call_operand.vmem [shape: f32[192,96], index: 17, kind: input, shape index: {}]
  %s18 = inlined_call_operand.vmem [shape: f32[192,1], index: 18, kind: input, shape index: {}]
  %s19 = inlined_call_operand.vmem [shape: f32[2,1,256], index: 19, kind: output, shape index: {0}]
  %s20 = inlined_call_operand.vmem [shape: f32[2,64,256], index: 20, kind: output, shape index: {1}]
  %s21 = inlined_call_operand.vmem [shape: f32[2,64,256], index: 21, kind: output, shape index: {2}]
  %s22 = inlined_call_operand.vmem [shape: f32[2,64,256], index: 22, kind: output, shape index: {3}]
  %23 = xla_tuple %s19, %s20, %s21, %s22
  %s24 = sld [smem:[#allocation0]]
  $region133: #{geometric_feature_extractor.3} parent=0
    _
  %s26 = ssub.s32 1, %s24
  %s27 = scalar_select 0, %s26, %s24
  %v28 = vstv %s16
  %29 = vst [vmem:[#allocation3] sm:$0x1] %v28
  loop: start=0, step=1, limit=4
  $region2: #{geometric_feature_extractor.3} parent=0 // loop_pre_header
    _
  $region3: #{geometric_feature_extractor.3} parent=0 // loop_header
    %s31 = sphi 0, %s35
    %p32 = scmp.ge.s32.totalorder %s31, 4
    %s38 = sphi 0, %s50
    %s39 = sphi 0, %s46
    %s40 = sphi 0, %s38
    %s41 = sphi 0, %s39
    %s42 = sphi 0, %s40
    %s43 = sphi 0, %s41
    %s55 = sphi 0, %s57
    %s58 = sphi 0, %s55
    %s59 = sphi 0, %s58
    %s75 = sphi 0, %s59
    %s83 = sphi 0, %s85
    %s86 = sphi 0, %s83
    %s87 = sphi 0, %s86
    %s103 = sphi 0, %s87
    %s111 = sphi 0, %s113
    %s114 = sphi 0, %s111
    %s115 = sphi 0, %s114
    %s131 = sphi 0, %s115
    %s139 = sphi 0, %s141
    %s142 = sphi 0, %s139
    %s143 = sphi 0, %s142
    %s159 = sphi 0, %s143
    %s163 = sphi 0, %s163
    %s165 = sphi 0, %s163
    %s166 = sphi 0, %s165
    %s180 = sphi 0, %s166
    %s184 = sphi 0, %s184
    %s186 = sphi 0, %s184
    %s187 = sphi 0, %s186
    %s201 = sphi 0, %s187
    %s205 = sphi 0, %s205
    %s207 = sphi 0, %s205
    %s208 = sphi 0, %s207
    %s222 = sphi 0, %s208
    %s226 = sphi 0, %s226
    %s228 = sphi 0, %s226
    %s229 = sphi 0, %s228
    %s243 = sphi 0, %s229
    %s247 = sphi 0, %s247
    %s249 = sphi 0, %s247
    %s250 = sphi 0, %s249
    %s264 = sphi 0, %s250
    %s268 = sphi 0, %s268
    %s270 = sphi 0, %s268
    %s271 = sphi 0, %s270
    %s285 = sphi 0, %s271
    %s289 = sphi 0, %s289
    %s291 = sphi 0, %s289
    %s292 = sphi 0, %s291
    %s306 = sphi 0, %s292
    %s310 = sphi 0, %s310
    %s312 = sphi 0, %s310
    %s313 = sphi 0, %s312
    %s327 = sphi 0, %s313
    %s331 = sphi 0, %s331
    %s333 = sphi 0, %s331
    %s334 = sphi 0, %s333
    %s348 = sphi 0, %s334
    %s352 = sphi 0, %s352
    %s354 = sphi 0, %s352
    %s355 = sphi 0, %s354
    %s369 = sphi 0, %s355
    %s373 = sphi 0, %s373
    %s375 = sphi 0, %s373
    %s376 = sphi 0, %s375
    %s390 = sphi 0, %s376
    %s394 = sphi 0, %s394
    %s396 = sphi 0, %s394
    %s397 = sphi 0, %s396
    %s411 = sphi 0, %s397
    %s415 = sphi 0, %s415
    %s417 = sphi 0, %s415
    %s418 = sphi 0, %s417
    %s432 = sphi 0, %s418
    %s436 = sphi 0, %s436
    %s438 = sphi 0, %s436
    %s439 = sphi 0, %s438
    %s453 = sphi 0, %s439
    %s457 = sphi 0, %s457
    %s459 = sphi 0, %s457
    %s460 = sphi 0, %s459
    %s474 = sphi 0, %s460
    %s482 = sphi 0, %s484
    %s485 = sphi 0, %s482
    %s486 = sphi 0, %s485
    %s502 = sphi 0, %s486
    %s510 = sphi 0, %s512
    %s513 = sphi 0, %s510
    %s514 = sphi 0, %s513
    %s530 = sphi 0, %s514
    %s538 = sphi 0, %s540
    %s541 = sphi 0, %s538
    %s542 = sphi 0, %s541
    %s558 = sphi 0, %s542
    %s566 = sphi 0, %s568
    %s569 = sphi 0, %s566
    %s570 = sphi 0, %s569
    %s586 = sphi 0, %s570
  $region4: #{geometric_feature_extractor.3} parent=0 // loop_header_branch
    %34 = sbr.rel (%p32) target = $region8
  $region5: #{geometric_feature_extractor.3} parent=0 // loop_body
    %s36 = ssub.s32 %s31, 1
    %s37 = ssub.s32 %s31, 2
    %s44 = sadd.s32 1, %s39
    %p45 = scmp.ge.s32.totalorder %s44, 1
    %s46 = scalar_select %p45, 0, %s44
    %s47 = sadd.s32 1, %s38
    %s48 = scalar_select %p45, %s47, %s38
    %p49 = scmp.ge.s32.totalorder %s48, 2
    %s50 = scalar_select %p49, 0, %s48
    %s51 = ssub.s32 %s38, %s50
    %s52 = ssub.s32 %s39, %s46
    %s53 = sor.u32 %s51, %s52
    %p54 = scmp.eq.s32.totalorder %s53, 0
    %s56 = sadd.s32 %s55, 1
    %s57 = scalar_select %p54, %s55, %s56
    %p60 = pneg %p54
    %p61 = scmp.eq.s32.totalorder %s31, 1
    %p62 = por %p60, %p61
    %p63 = scmp.ne.s32.totalorder %s55, %s58
    %p64 = scmp.eq.s32.totalorder %s31, 0
    %p65 = por %p63, %p64
    %p66 = scmp.ne.s32.totalorder %s55, %s58
    %p67 = scmp.eq.s32.totalorder %s36, 1
    %p68 = por %p66, %p67
    %p69 = scmp.ne.s32.totalorder %s58, %s59
    %p70 = scmp.eq.s32.totalorder %s36, 0
    %p71 = por %p69, %p70
    %p72 = scmp.ne.s32.totalorder %s58, %s59
    %p73 = scmp.eq.s32.totalorder %s37, 1
    %p74 = por %p72, %p73
    %p76 = scmp.ne.s32.totalorder %s59, %s75
    %p77 = scmp.eq.s32.totalorder %s37, 0
    %p78 = por %p76, %p77
    %s79 = ssub.s32 %s38, %s50
    %s80 = ssub.s32 %s39, %s46
    %s81 = sor.u32 %s79, %s80
    %p82 = scmp.eq.s32.totalorder %s81, 0
    %s84 = sadd.s32 %s83, 1
    %s85 = scalar_select %p82, %s83, %s84
    %p88 = pneg %p82
    %p89 = scmp.eq.s32.totalorder %s31, 1
    %p90 = por %p88, %p89
    %p91 = scmp.ne.s32.totalorder %s83, %s86
    %p92 = scmp.eq.s32.totalorder %s31, 0
    %p93 = por %p91, %p92
    %p94 = scmp.ne.s32.totalorder %s83, %s86
    %p95 = scmp.eq.s32.totalorder %s36, 1
    %p96 = por %p94, %p95
    %p97 = scmp.ne.s32.totalorder %s86, %s87
    %p98 = scmp.eq.s32.totalorder %s36, 0
    %p99 = por %p97, %p98
    %p100 = scmp.ne.s32.totalorder %s86, %s87
    %p101 = scmp.eq.s32.totalorder %s37, 1
    %p102 = por %p100, %p101
    %p104 = scmp.ne.s32.totalorder %s87, %s103
    %p105 = scmp.eq.s32.totalorder %s37, 0
    %p106 = por %p104, %p105
    %s107 = ssub.s32 %s38, %s50
    %s108 = ssub.s32 %s39, %s46
    %s109 = sor.u32 %s107, %s108
    %p110 = scmp.eq.s32.totalorder %s109, 0
    %s112 = sadd.s32 %s111, 1
    %s113 = scalar_select %p110, %s111, %s112
    %p116 = pneg %p110
    %p117 = scmp.eq.s32.totalorder %s31, 1
    %p118 = por %p116, %p117
    %p119 = scmp.ne.s32.totalorder %s111, %s114
    %p120 = scmp.eq.s32.totalorder %s31, 0
    %p121 = por %p119, %p120
    %p122 = scmp.ne.s32.totalorder %s111, %s114
    %p123 = scmp.eq.s32.totalorder %s36, 1
    %p124 = por %p122, %p123
    %p125 = scmp.ne.s32.totalorder %s114, %s115
    %p126 = scmp.eq.s32.totalorder %s36, 0
    %p127 = por %p125, %p126
    %p128 = scmp.ne.s32.totalorder %s114, %s115
    %p129 = scmp.eq.s32.totalorder %s37, 1
    %p130 = por %p128, %p129
    %p132 = scmp.ne.s32.totalorder %s115, %s131
    %p133 = scmp.eq.s32.totalorder %s37, 0
    %p134 = por %p132, %p133
    %s135 = ssub.s32 %s38, %s50
    %s136 = ssub.s32 %s39, %s46
    %s137 = sor.u32 %s135, %s136
    %p138 = scmp.eq.s32.totalorder %s137, 0
    %s140 = sadd.s32 %s139, 1
    %s141 = scalar_select %p138, %s139, %s140
    %p144 = pneg %p138
    %p145 = scmp.eq.s32.totalorder %s31, 1
    %p146 = por %p144, %p145
    %p147 = scmp.ne.s32.totalorder %s139, %s142
    %p148 = scmp.eq.s32.totalorder %s31, 0
    %p149 = por %p147, %p148
    %p150 = scmp.ne.s32.totalorder %s139, %s142
    %p151 = scmp.eq.s32.totalorder %s36, 1
    %p152 = por %p150, %p151
    %p153 = scmp.ne.s32.totalorder %s142, %s143
    %p154 = scmp.eq.s32.totalorder %s36, 0
    %p155 = por %p153, %p154
    %p156 = scmp.ne.s32.totalorder %s142, %s143
    %p157 = scmp.eq.s32.totalorder %s37, 1
    %p158 = por %p156, %p157
    %p160 = scmp.ne.s32.totalorder %s143, %s159
    %p161 = scmp.eq.s32.totalorder %s37, 0
    %p162 = por %p160, %p161
    %s164 = sadd.s32 %s163, 1
    %p167 = scmp.eq.s32.totalorder %s31, 1
    %p168 = scmp.ne.s32.totalorder %s163, %s165
    %p169 = scmp.eq.s32.totalorder %s31, 0
    %p170 = por %p168, %p169
    %p171 = scmp.ne.s32.totalorder %s163, %s165
    %p172 = scmp.eq.s32.totalorder %s36, 1
    %p173 = por %p171, %p172
    %p174 = scmp.ne.s32.totalorder %s165, %s166
    %p175 = scmp.eq.s32.totalorder %s36, 0
    %p176 = por %p174, %p175
    %p177 = scmp.ne.s32.totalorder %s165, %s166
    %p178 = scmp.eq.s32.totalorder %s37, 1
    %p179 = por %p177, %p178
    %p181 = scmp.ne.s32.totalorder %s166, %s180
    %p182 = scmp.eq.s32.totalorder %s37, 0
    %p183 = por %p181, %p182
    %s185 = sadd.s32 %s184, 1
    %p188 = scmp.eq.s32.totalorder %s31, 1
    %p189 = scmp.ne.s32.totalorder %s184, %s186
    %p190 = scmp.eq.s32.totalorder %s31, 0
    %p191 = por %p189, %p190
    %p192 = scmp.ne.s32.totalorder %s184, %s186
    %p193 = scmp.eq.s32.totalorder %s36, 1
    %p194 = por %p192, %p193
    %p195 = scmp.ne.s32.totalorder %s186, %s187
    %p196 = scmp.eq.s32.totalorder %s36, 0
    %p197 = por %p195, %p196
    %p198 = scmp.ne.s32.totalorder %s186, %s187
    %p199 = scmp.eq.s32.totalorder %s37, 1
    %p200 = por %p198, %p199
    %p202 = scmp.ne.s32.totalorder %s187, %s201
    %p203 = scmp.eq.s32.totalorder %s37, 0
    %p204 = por %p202, %p203
    %s206 = sadd.s32 %s205, 1
    %p209 = scmp.eq.s32.totalorder %s31, 1
    %p210 = scmp.ne.s32.totalorder %s205, %s207
    %p211 = scmp.eq.s32.totalorder %s31, 0
    %p212 = por %p210, %p211
    %p213 = scmp.ne.s32.totalorder %s205, %s207
    %p214 = scmp.eq.s32.totalorder %s36, 1
    %p215 = por %p213, %p214
    %p216 = scmp.ne.s32.totalorder %s207, %s208
    %p217 = scmp.eq.s32.totalorder %s36, 0
    %p218 = por %p216, %p217
    %p219 = scmp.ne.s32.totalorder %s207, %s208
    %p220 = scmp.eq.s32.totalorder %s37, 1
    %p221 = por %p219, %p220
    %p223 = scmp.ne.s32.totalorder %s208, %s222
    %p224 = scmp.eq.s32.totalorder %s37, 0
    %p225 = por %p223, %p224
    %s227 = sadd.s32 %s226, 1
    %p230 = scmp.eq.s32.totalorder %s31, 1
    %p231 = scmp.ne.s32.totalorder %s226, %s228
    %p232 = scmp.eq.s32.totalorder %s31, 0
    %p233 = por %p231, %p232
    %p234 = scmp.ne.s32.totalorder %s226, %s228
    %p235 = scmp.eq.s32.totalorder %s36, 1
    %p236 = por %p234, %p235
    %p237 = scmp.ne.s32.totalorder %s228, %s229
    %p238 = scmp.eq.s32.totalorder %s36, 0
    %p239 = por %p237, %p238
    %p240 = scmp.ne.s32.totalorder %s228, %s229
    %p241 = scmp.eq.s32.totalorder %s37, 1
    %p242 = por %p240, %p241
    %p244 = scmp.ne.s32.totalorder %s229, %s243
    %p245 = scmp.eq.s32.totalorder %s37, 0
    %p246 = por %p244, %p245
    %s248 = sadd.s32 %s247, 1
    %p251 = scmp.eq.s32.totalorder %s31, 1
    %p252 = scmp.ne.s32.totalorder %s247, %s249
    %p253 = scmp.eq.s32.totalorder %s31, 0
    %p254 = por %p252, %p253
    %p255 = scmp.ne.s32.totalorder %s247, %s249
    %p256 = scmp.eq.s32.totalorder %s36, 1
    %p257 = por %p255, %p256
    %p258 = scmp.ne.s32.totalorder %s249, %s250
    %p259 = scmp.eq.s32.totalorder %s36, 0
    %p260 = por %p258, %p259
    %p261 = scmp.ne.s32.totalorder %s249, %s250
    %p262 = scmp.eq.s32.totalorder %s37, 1
    %p263 = por %p261, %p262
    %p265 = scmp.ne.s32.totalorder %s250, %s264
    %p266 = scmp.eq.s32.totalorder %s37, 0
    %p267 = por %p265, %p266
    %s269 = sadd.s32 %s268, 1
    %p272 = scmp.eq.s32.totalorder %s31, 1
    %p273 = scmp.ne.s32.totalorder %s268, %s270
    %p274 = scmp.eq.s32.totalorder %s31, 0
    %p275 = por %p273, %p274
    %p276 = scmp.ne.s32.totalorder %s268, %s270
    %p277 = scmp.eq.s32.totalorder %s36, 1
    %p278 = por %p276, %p277
    %p279 = scmp.ne.s32.totalorder %s270, %s271
    %p280 = scmp.eq.s32.totalorder %s36, 0
    %p281 = por %p279, %p280
    %p282 = scmp.ne.s32.totalorder %s270, %s271
    %p283 = scmp.eq.s32.totalorder %s37, 1
    %p284 = por %p282, %p283
    %p286 = scmp.ne.s32.totalorder %s271, %s285
    %p287 = scmp.eq.s32.totalorder %s37, 0
    %p288 = por %p286, %p287
    %s290 = sadd.s32 %s289, 1
    %p293 = scmp.eq.s32.totalorder %s31, 1
    %p294 = scmp.ne.s32.totalorder %s289, %s291
    %p295 = scmp.eq.s32.totalorder %s31, 0
    %p296 = por %p294, %p295
    %p297 = scmp.ne.s32.totalorder %s289, %s291
    %p298 = scmp.eq.s32.totalorder %s36, 1
    %p299 = por %p297, %p298
    %p300 = scmp.ne.s32.totalorder %s291, %s292
    %p301 = scmp.eq.s32.totalorder %s36, 0
    %p302 = por %p300, %p301
    %p303 = scmp.ne.s32.totalorder %s291, %s292
    %p304 = scmp.eq.s32.totalorder %s37, 1
    %p305 = por %p303, %p304
    %p307 = scmp.ne.s32.totalorder %s292, %s306
    %p308 = scmp.eq.s32.totalorder %s37, 0
    %p309 = por %p307, %p308
    %s311 = sadd.s32 %s310, 1
    %p314 = scmp.eq.s32.totalorder %s31, 1
    %p315 = scmp.ne.s32.totalorder %s310, %s312
    %p316 = scmp.eq.s32.totalorder %s31, 0
    %p317 = por %p315, %p316
    %p318 = scmp.ne.s32.totalorder %s310, %s312
    %p319 = scmp.eq.s32.totalorder %s36, 1
    %p320 = por %p318, %p319
    %p321 = scmp.ne.s32.totalorder %s312, %s313
    %p322 = scmp.eq.s32.totalorder %s36, 0
    %p323 = por %p321, %p322
    %p324 = scmp.ne.s32.totalorder %s312, %s313
    %p325 = scmp.eq.s32.totalorder %s37, 1
    %p326 = por %p324, %p325
    %p328 = scmp.ne.s32.totalorder %s313, %s327
    %p329 = scmp.eq.s32.totalorder %s37, 0
    %p330 = por %p328, %p329
    %s332 = sadd.s32 %s331, 1
    %p335 = scmp.eq.s32.totalorder %s31, 1
    %p336 = scmp.ne.s32.totalorder %s331, %s333
    %p337 = scmp.eq.s32.totalorder %s31, 0
    %p338 = por %p336, %p337
    %p339 = scmp.ne.s32.totalorder %s331, %s333
    %p340 = scmp.eq.s32.totalorder %s36, 1
    %p341 = por %p339, %p340
    %p342 = scmp.ne.s32.totalorder %s333, %s334
    %p343 = scmp.eq.s32.totalorder %s36, 0
    %p344 = por %p342, %p343
    %p345 = scmp.ne.s32.totalorder %s333, %s334
    %p346 = scmp.eq.s32.totalorder %s37, 1
    %p347 = por %p345, %p346
    %p349 = scmp.ne.s32.totalorder %s334, %s348
    %p350 = scmp.eq.s32.totalorder %s37, 0
    %p351 = por %p349, %p350
    %s353 = sadd.s32 %s352, 1
    %p356 = scmp.eq.s32.totalorder %s31, 1
    %p357 = scmp.ne.s32.totalorder %s352, %s354
    %p358 = scmp.eq.s32.totalorder %s31, 0
    %p359 = por %p357, %p358
    %p360 = scmp.ne.s32.totalorder %s352, %s354
    %p361 = scmp.eq.s32.totalorder %s36, 1
    %p362 = por %p360, %p361
    %p363 = scmp.ne.s32.totalorder %s354, %s355
    %p364 = scmp.eq.s32.totalorder %s36, 0
    %p365 = por %p363, %p364
    %p366 = scmp.ne.s32.totalorder %s354, %s355
    %p367 = scmp.eq.s32.totalorder %s37, 1
    %p368 = por %p366, %p367
    %p370 = scmp.ne.s32.totalorder %s355, %s369
    %p371 = scmp.eq.s32.totalorder %s37, 0
    %p372 = por %p370, %p371
    %s374 = sadd.s32 %s373, 1
    %p377 = scmp.eq.s32.totalorder %s31, 1
    %p378 = scmp.ne.s32.totalorder %s373, %s375
    %p379 = scmp.eq.s32.totalorder %s31, 0
    %p380 = por %p378, %p379
    %p381 = scmp.ne.s32.totalorder %s373, %s375
    %p382 = scmp.eq.s32.totalorder %s36, 1
    %p383 = por %p381, %p382
    %p384 = scmp.ne.s32.totalorder %s375, %s376
    %p385 = scmp.eq.s32.totalorder %s36, 0
    %p386 = por %p384, %p385
    %p387 = scmp.ne.s32.totalorder %s375, %s376
    %p388 = scmp.eq.s32.totalorder %s37, 1
    %p389 = por %p387, %p388
    %p391 = scmp.ne.s32.totalorder %s376, %s390
    %p392 = scmp.eq.s32.totalorder %s37, 0
    %p393 = por %p391, %p392
    %s395 = sadd.s32 %s394, 1
    %p398 = scmp.eq.s32.totalorder %s31, 1
    %p399 = scmp.ne.s32.totalorder %s394, %s396
    %p400 = scmp.eq.s32.totalorder %s31, 0
    %p401 = por %p399, %p400
    %p402 = scmp.ne.s32.totalorder %s394, %s396
    %p403 = scmp.eq.s32.totalorder %s36, 1
    %p404 = por %p402, %p403
    %p405 = scmp.ne.s32.totalorder %s396, %s397
    %p406 = scmp.eq.s32.totalorder %s36, 0
    %p407 = por %p405, %p406
    %p408 = scmp.ne.s32.totalorder %s396, %s397
    %p409 = scmp.eq.s32.totalorder %s37, 1
    %p410 = por %p408, %p409
    %p412 = scmp.ne.s32.totalorder %s397, %s411
    %p413 = scmp.eq.s32.totalorder %s37, 0
    %p414 = por %p412, %p413
    %s416 = sadd.s32 %s415, 1
    %p419 = scmp.eq.s32.totalorder %s31, 1
    %p420 = scmp.ne.s32.totalorder %s415, %s417
    %p421 = scmp.eq.s32.totalorder %s31, 0
    %p422 = por %p420, %p421
    %p423 = scmp.ne.s32.totalorder %s415, %s417
    %p424 = scmp.eq.s32.totalorder %s36, 1
    %p425 = por %p423, %p424
    %p426 = scmp.ne.s32.totalorder %s417, %s418
    %p427 = scmp.eq.s32.totalorder %s36, 0
    %p428 = por %p426, %p427
    %p429 = scmp.ne.s32.totalorder %s417, %s418
    %p430 = scmp.eq.s32.totalorder %s37, 1
    %p431 = por %p429, %p430
    %p433 = scmp.ne.s32.totalorder %s418, %s432
    %p434 = scmp.eq.s32.totalorder %s37, 0
    %p435 = por %p433, %p434
    %s437 = sadd.s32 %s436, 1
    %p440 = scmp.eq.s32.totalorder %s31, 1
    %p441 = scmp.ne.s32.totalorder %s436, %s438
    %p442 = scmp.eq.s32.totalorder %s31, 0
    %p443 = por %p441, %p442
    %p444 = scmp.ne.s32.totalorder %s436, %s438
    %p445 = scmp.eq.s32.totalorder %s36, 1
    %p446 = por %p444, %p445
    %p447 = scmp.ne.s32.totalorder %s438, %s439
    %p448 = scmp.eq.s32.totalorder %s36, 0
    %p449 = por %p447, %p448
    %p450 = scmp.ne.s32.totalorder %s438, %s439
    %p451 = scmp.eq.s32.totalorder %s37, 1
    %p452 = por %p450, %p451
    %p454 = scmp.ne.s32.totalorder %s439, %s453
    %p455 = scmp.eq.s32.totalorder %s37, 0
    %p456 = por %p454, %p455
    %s458 = sadd.s32 %s457, 1
    %p461 = scmp.eq.s32.totalorder %s31, 1
    %p462 = scmp.ne.s32.totalorder %s457, %s459
    %p463 = scmp.eq.s32.totalorder %s31, 0
    %p464 = por %p462, %p463
    %p465 = scmp.ne.s32.totalorder %s457, %s459
    %p466 = scmp.eq.s32.totalorder %s36, 1
    %p467 = por %p465, %p466
    %p468 = scmp.ne.s32.totalorder %s459, %s460
    %p469 = scmp.eq.s32.totalorder %s36, 0
    %p470 = por %p468, %p469
    %p471 = scmp.ne.s32.totalorder %s459, %s460
    %p472 = scmp.eq.s32.totalorder %s37, 1
    %p473 = por %p471, %p472
    %p475 = scmp.ne.s32.totalorder %s460, %s474
    %p476 = scmp.eq.s32.totalorder %s37, 0
    %p477 = por %p475, %p476
    %s478 = ssub.s32 %s38, %s50
    %s479 = ssub.s32 %s39, %s46
    %s480 = sor.u32 %s478, %s479
    %p481 = scmp.eq.s32.totalorder %s480, 0
    %s483 = sadd.s32 %s482, 1
    %s484 = scalar_select %p481, %s482, %s483
    %p487 = pneg %p481
    %p488 = scmp.eq.s32.totalorder %s31, 1
    %p489 = por %p487, %p488
    %p490 = scmp.ne.s32.totalorder %s482, %s485
    %p491 = scmp.eq.s32.totalorder %s31, 0
    %p492 = por %p490, %p491
    %p493 = scmp.ne.s32.totalorder %s482, %s485
    %p494 = scmp.eq.s32.totalorder %s36, 1
    %p495 = por %p493, %p494
    %p496 = scmp.ne.s32.totalorder %s485, %s486
    %p497 = scmp.eq.s32.totalorder %s36, 0
    %p498 = por %p496, %p497
    %p499 = scmp.ne.s32.totalorder %s485, %s486
    %p500 = scmp.eq.s32.totalorder %s37, 1
    %p501 = por %p499, %p500
    %p503 = scmp.ne.s32.totalorder %s486, %s502
    %p504 = scmp.eq.s32.totalorder %s37, 0
    %p505 = por %p503, %p504
    %s506 = ssub.s32 %s38, %s50
    %s507 = ssub.s32 %s39, %s46
    %s508 = sor.u32 %s506, %s507
    %p509 = scmp.eq.s32.totalorder %s508, 0
    %s511 = sadd.s32 %s510, 1
    %s512 = scalar_select %p509, %s510, %s511
    %p515 = pneg %p509
    %p516 = scmp.eq.s32.totalorder %s31, 1
    %p517 = por %p515, %p516
    %p518 = scmp.ne.s32.totalorder %s510, %s513
    %p519 = scmp.eq.s32.totalorder %s31, 0
    %p520 = por %p518, %p519
    %p521 = scmp.ne.s32.totalorder %s510, %s513
    %p522 = scmp.eq.s32.totalorder %s36, 1
    %p523 = por %p521, %p522
    %p524 = scmp.ne.s32.totalorder %s513, %s514
    %p525 = scmp.eq.s32.totalorder %s36, 0
    %p526 = por %p524, %p525
    %p527 = scmp.ne.s32.totalorder %s513, %s514
    %p528 = scmp.eq.s32.totalorder %s37, 1
    %p529 = por %p527, %p528
    %p531 = scmp.ne.s32.totalorder %s514, %s530
    %p532 = scmp.eq.s32.totalorder %s37, 0
    %p533 = por %p531, %p532
    %s534 = ssub.s32 %s38, %s50
    %s535 = ssub.s32 %s39, %s46
    %s536 = sor.u32 %s534, %s535
    %p537 = scmp.eq.s32.totalorder %s536, 0
    %s539 = sadd.s32 %s538, 1
    %s540 = scalar_select %p537, %s538, %s539
    %p543 = pneg %p537
    %p544 = scmp.eq.s32.totalorder %s31, 1
    %p545 = por %p543, %p544
    %p546 = scmp.ne.s32.totalorder %s538, %s541
    %p547 = scmp.eq.s32.totalorder %s31, 0
    %p548 = por %p546, %p547
    %p549 = scmp.ne.s32.totalorder %s538, %s541
    %p550 = scmp.eq.s32.totalorder %s36, 1
    %p551 = por %p549, %p550
    %p552 = scmp.ne.s32.totalorder %s541, %s542
    %p553 = scmp.eq.s32.totalorder %s36, 0
    %p554 = por %p552, %p553
    %p555 = scmp.ne.s32.totalorder %s541, %s542
    %p556 = scmp.eq.s32.totalorder %s37, 1
    %p557 = por %p555, %p556
    %p559 = scmp.ne.s32.totalorder %s542, %s558
    %p560 = scmp.eq.s32.totalorder %s37, 0
    %p561 = por %p559, %p560
    %s562 = ssub.s32 %s38, %s50
    %s563 = ssub.s32 %s39, %s46
    %s564 = sor.u32 %s562, %s563
    %p565 = scmp.eq.s32.totalorder %s564, 0
    %s567 = sadd.s32 %s566, 1
    %s568 = scalar_select %p565, %s566, %s567
    %p571 = pneg %p565
    %p572 = scmp.eq.s32.totalorder %s31, 1
    %p573 = por %p571, %p572
    %p574 = scmp.ne.s32.totalorder %s566, %s569
    %p575 = scmp.eq.s32.totalorder %s31, 0
    %p576 = por %p574, %p575
    %p577 = scmp.ne.s32.totalorder %s566, %s569
    %p578 = scmp.eq.s32.totalorder %s36, 1
    %p579 = por %p577, %p578
    %p580 = scmp.ne.s32.totalorder %s569, %s570
    %p581 = scmp.eq.s32.totalorder %s36, 0
    %p582 = por %p580, %p581
    %p583 = scmp.ne.s32.totalorder %s569, %s570
    %p584 = scmp.eq.s32.totalorder %s37, 1
    %p585 = por %p583, %p584
    %p587 = scmp.ne.s32.totalorder %s570, %s586
    %p588 = scmp.eq.s32.totalorder %s37, 0
    %p589 = por %p587, %p588
    %p590 = scmp.le.s32.totalorder 1, %s31
    %p591 = scmp.lt.s32.totalorder %s31, 3
    %p592 = pnand %p590, %p591
    %p593 = pneg %p592
    // Predicated region
    $region9: #{geometric_feature_extractor.3} parent=5 // pred_check
      _
    $region10: #{geometric_feature_extractor.3} parent=5 // pred_check_branch
      %595 = sbr.rel (%p592) target = $region12
    $region11: #{geometric_feature_extractor.3} parent=5 // pred_region
      %s596 = ssub.s32 %s31, 1
      // Predicated region
      $region13: #{geometric_feature_extractor.3} parent=11 // pred_check
        %p597 = pneg %p176
      $region14: #{geometric_feature_extractor.3} parent=11 // pred_check_branch
        %599 = sbr.rel (%p597) target = $region16
      $region15: #{geometric_feature_extractor.3} parent=11 // pred_region
        _
      $region16: #{geometric_feature_extractor.3} parent=11 // pred_fallthru
        _
      // Predicated region
      $region17: #{geometric_feature_extractor.3} parent=11 // pred_check
        %p600 = pneg %p197
      $region18: #{geometric_feature_extractor.3} parent=11 // pred_check_branch
        %602 = sbr.rel (%p600) target = $region20
      $region19: #{geometric_feature_extractor.3} parent=11 // pred_region
        _
      $region20: #{geometric_feature_extractor.3} parent=11 // pred_fallthru
        _
      // Predicated region
      $region21: #{geometric_feature_extractor.3} parent=11 // pred_check
        %p603 = pneg %p218
      $region22: #{geometric_feature_extractor.3} parent=11 // pred_check_branch
        %605 = sbr.rel (%p603) target = $region24
      $region23: #{geometric_feature_extractor.3} parent=11 // pred_region
        _
      $region24: #{geometric_feature_extractor.3} parent=11 // pred_fallthru
        _
      // Predicated region
      $region25: #{geometric_feature_extractor.3} parent=11 // pred_check
        %p606 = pneg %p239
      $region26: #{geometric_feature_extractor.3} parent=11 // pred_check_branch
        %608 = sbr.rel (%p606) target = $region28
      $region27: #{geometric_feature_extractor.3} parent=11 // pred_region
        _
      $region28: #{geometric_feature_extractor.3} parent=11 // pred_fallthru
        _
      // Predicated region
      $region29: #{geometric_feature_extractor.3} parent=11 // pred_check
        %p609 = pneg %p260
      $region30: #{geometric_feature_extractor.3} parent=11 // pred_check_branch
        %611 = sbr.rel (%p609) target = $region32
      $region31: #{geometric_feature_extractor.3} parent=11 // pred_region
        _
      $region32: #{geometric_feature_extractor.3} parent=11 // pred_fallthru
        _
      // Predicated region
      $region33: #{geometric_feature_extractor.3} parent=11 // pred_check
        %p612 = pneg %p281
      $region34: #{geometric_feature_extractor.3} parent=11 // pred_check_branch
        %614 = sbr.rel (%p612) target = $region36
      $region35: #{geometric_feature_extractor.3} parent=11 // pred_region
        _
      $region36: #{geometric_feature_extractor.3} parent=11 // pred_fallthru
        _
      // Predicated region
      $region37: #{geometric_feature_extractor.3} parent=11 // pred_check
        %p615 = pneg %p302
      $region38: #{geometric_feature_extractor.3} parent=11 // pred_check_branch
        %617 = sbr.rel (%p615) target = $region40
      $region39: #{geometric_feature_extractor.3} parent=11 // pred_region
        _
      $region40: #{geometric_feature_extractor.3} parent=11 // pred_fallthru
        _
      // Predicated region
      $region41: #{geometric_feature_extractor.3} parent=11 // pred_check
        %p618 = pneg %p323
      $region42: #{geometric_feature_extractor.3} parent=11 // pred_check_branch
        %620 = sbr.rel (%p618) target = $region44
      $region43: #{geometric_feature_extractor.3} parent=11 // pred_region
        _
      $region44: #{geometric_feature_extractor.3} parent=11 // pred_fallthru
        _
      // Predicated region
      $region45: #{geometric_feature_extractor.3} parent=11 // pred_check
        %p621 = pneg %p344
      $region46: #{geometric_feature_extractor.3} parent=11 // pred_check_branch
        %623 = sbr.rel (%p621) target = $region48
      $region47: #{geometric_feature_extractor.3} parent=11 // pred_region
        _
      $region48: #{geometric_feature_extractor.3} parent=11 // pred_fallthru
        _
      // Predicated region
      $region49: #{geometric_feature_extractor.3} parent=11 // pred_check
        %p624 = pneg %p365
      $region50: #{geometric_feature_extractor.3} parent=11 // pred_check_branch
        %626 = sbr.rel (%p624) target = $region52
      $region51: #{geometric_feature_extractor.3} parent=11 // pred_region
        _
      $region52: #{geometric_feature_extractor.3} parent=11 // pred_fallthru
        _
      // Predicated region
      $region53: #{geometric_feature_extractor.3} parent=11 // pred_check
        %p627 = pneg %p386
      $region54: #{geometric_feature_extractor.3} parent=11 // pred_check_branch
        %629 = sbr.rel (%p627) target = $region56
      $region55: #{geometric_feature_extractor.3} parent=11 // pred_region
        _
      $region56: #{geometric_feature_extractor.3} parent=11 // pred_fallthru
        _
      // Predicated region
      $region57: #{geometric_feature_extractor.3} parent=11 // pred_check
        %p630 = pneg %p407
      $region58: #{geometric_feature_extractor.3} parent=11 // pred_check_branch
        %632 = sbr.rel (%p630) target = $region60
      $region59: #{geometric_feature_extractor.3} parent=11 // pred_region
        _
      $region60: #{geometric_feature_extractor.3} parent=11 // pred_fallthru
        _
      // Predicated region
      $region61: #{geometric_feature_extractor.3} parent=11 // pred_check
        %p633 = pneg %p428
      $region62: #{geometric_feature_extractor.3} parent=11 // pred_check_branch
        %635 = sbr.rel (%p633) target = $region64
      $region63: #{geometric_feature_extractor.3} parent=11 // pred_region
        _
      $region64: #{geometric_feature_extractor.3} parent=11 // pred_fallthru
        _
      // Predicated region
      $region65: #{geometric_feature_extractor.3} parent=11 // pred_check
        %p636 = pneg %p449
      $region66: #{geometric_feature_extractor.3} parent=11 // pred_check_branch
        %638 = sbr.rel (%p636) target = $region68
      $region67: #{geometric_feature_extractor.3} parent=11 // pred_region
        _
      $region68: #{geometric_feature_extractor.3} parent=11 // pred_fallthru
        _
      // Predicated region
      $region69: #{geometric_feature_extractor.3} parent=11 // pred_check
        %p639 = pneg %p470
      $region70: #{geometric_feature_extractor.3} parent=11 // pred_check_branch
        %641 = sbr.rel (%p639) target = $region72
      $region71: #{geometric_feature_extractor.3} parent=11 // pred_region
        _
      $region72: #{geometric_feature_extractor.3} parent=11 // pred_fallthru
        _
    $region12: #{geometric_feature_extractor.3} parent=5 // pred_fallthru
      _
    %p642 = scmp.lt.s32.totalorder %s31, 2
    // Predicated region
    $region73: #{geometric_feature_extractor.3} parent=5 // pred_check
      %p643 = pneg %p642
    $region74: #{geometric_feature_extractor.3} parent=5 // pred_check_branch
      %645 = sbr.rel (%p643) target = $region76
    $region75: #{geometric_feature_extractor.3} parent=5 // pred_region
      // Predicated region
      $region77: #{geometric_feature_extractor.3} parent=75 // pred_check
        %p646 = pneg %p65
      $region78: #{geometric_feature_extractor.3} parent=75 // pred_check_branch
        %648 = sbr.rel (%p646) target = $region80
      $region79: #{geometric_feature_extractor.3} parent=75 // pred_region
        %s649 = smul.u32 2, %s39
        %p650 = scmp.lt.s32.totalorder %s38, 1
        %s651 = scalar_select %p650, %s38, 1
        %p652 = scmp.lt.s32.totalorder %s649, 1
        %s653 = scalar_select %p652, %s649, 1
        %s654 = smul.addr %s651, 2
        %s655 = sadd.s32 %s653, %s654
        %s656 = smul.addr %s655, 8
        %s657 = scalar_lea.vmem %s0, %s656
        %s658 = smul.u32 2, %s39
      $region80: #{geometric_feature_extractor.3} parent=75 // pred_fallthru
        _
      // Predicated region
      $region81: #{geometric_feature_extractor.3} parent=75 // pred_check
        %p659 = pneg %p93
      $region82: #{geometric_feature_extractor.3} parent=75 // pred_check_branch
        %661 = sbr.rel (%p659) target = $region84
      $region83: #{geometric_feature_extractor.3} parent=75 // pred_region
        %s662 = smul.u32 2, %s39
        %p663 = scmp.lt.s32.totalorder %s38, 1
        %s664 = scalar_select %p663, %s38, 1
        %p665 = scmp.lt.s32.totalorder %s662, 1
        %s666 = scalar_select %p665, %s662, 1
        %s667 = smul.addr %s664, 8
        %s668 = sadd.s32 %s666, %s667
        %s669 = smul.addr %s668, 8
        %s670 = scalar_lea.vmem %s1, %s669
        %s671 = smul.u32 2, %s39
      $region84: #{geometric_feature_extractor.3} parent=75 // pred_fallthru
        _
      // Predicated region
      $region85: #{geometric_feature_extractor.3} parent=75 // pred_check
        %p672 = pneg %p121
      $region86: #{geometric_feature_extractor.3} parent=75 // pred_check_branch
        %674 = sbr.rel (%p672) target = $region88
      $region87: #{geometric_feature_extractor.3} parent=75 // pred_region
        %s675 = smul.u32 2, %s39
        %p676 = scmp.lt.s32.totalorder %s38, 1
        %s677 = scalar_select %p676, %s38, 1
        %p678 = scmp.lt.s32.totalorder %s675, 1
        %s679 = scalar_select %p678, %s675, 1
        %s680 = smul.addr %s677, 8
        %s681 = sadd.s32 %s679, %s680
        %s682 = smul.addr %s681, 8
        %s683 = scalar_lea.vmem %s2, %s682
        %s684 = smul.u32 2, %s39
      $region88: #{geometric_feature_extractor.3} parent=75 // pred_fallthru
        _
      // Predicated region
      $region89: #{geometric_feature_extractor.3} parent=75 // pred_check
        %p685 = pneg %p149
      $region90: #{geometric_feature_extractor.3} parent=75 // pred_check_branch
        %687 = sbr.rel (%p685) target = $region92
      $region91: #{geometric_feature_extractor.3} parent=75 // pred_region
        %s688 = smul.u32 2, %s39
        %p689 = scmp.lt.s32.totalorder %s38, 1
        %s690 = scalar_select %p689, %s38, 1
        %p691 = scmp.lt.s32.totalorder %s688, 1
        %s692 = scalar_select %p691, %s688, 1
        %s693 = smul.addr %s690, 8
        %s694 = sadd.s32 %s692, %s693
        %s695 = smul.addr %s694, 8
        %s696 = scalar_lea.vmem %s3, %s695
        %s697 = smul.u32 2, %s39
      $region92: #{geometric_feature_extractor.3} parent=75 // pred_fallthru
        _
    $region76: #{geometric_feature_extractor.3} parent=5 // pred_fallthru
      _
    %p698 = scmp.le.s32.totalorder 1, %s31
    %p699 = scmp.lt.s32.totalorder %s31, 3
    %p700 = pnand %p698, %p699
    %p701 = pneg %p700
    // Predicated region
    $region93: #{geometric_feature_extractor.3} parent=5 // pred_check
      _
    $region94: #{geometric_feature_extractor.3} parent=5 // pred_check_branch
      %703 = sbr.rel (%p700) target = $region96
    $region95: #{geometric_feature_extractor.3} parent=5 // pred_region
      %s704 = ssub.s32 %s31, 1
      %s705 = smul.u32 2, %s41
      %p706 = scmp.lt.s32.totalorder %s40, 1
      %s707 = scalar_select %p706, %s40, 1
      %p708 = scmp.lt.s32.totalorder %s705, 1
      %s709 = scalar_select %p708, %s705, 1
      %s710 = smul.addr %s707, 2
      %s711 = sadd.s32 %s709, %s710
      %s712 = smul.addr %s711, 8
      %s713 = scalar_lea.vmem %s0, %s712
      %p714 = pneg %p71
      %p715 = pneg %p68
      %s716 = smul.u32 2, %s41
      %p717 = scmp.lt.s32.totalorder %s40, 1
      %s718 = scalar_select %p717, %s40, 1
      %p719 = scmp.lt.s32.totalorder %s716, 1
      %s720 = scalar_select %p719, %s716, 1
      %s721 = smul.addr %s718, 8
      %s722 = sadd.s32 %s720, %s721
      %s723 = smul.addr %s722, 8
      %s724 = scalar_lea.vmem %s1, %s723
      %p725 = pneg %p99
      %p726 = pneg %p96
      %s727 = smul.u32 2, %s41
      %p728 = scmp.lt.s32.totalorder %s40, 1
      %s729 = scalar_select %p728, %s40, 1
      %p730 = scmp.lt.s32.totalorder %s727, 1
      %s731 = scalar_select %p730, %s727, 1
      %s732 = smul.addr %s729, 8
      %s733 = sadd.s32 %s731, %s732
      %s734 = smul.addr %s733, 8
      %s735 = scalar_lea.vmem %s2, %s734
      %p736 = pneg %p127
      %p737 = pneg %p124
      %s738 = smul.u32 2, %s41
      %p739 = scmp.lt.s32.totalorder %s40, 1
      %s740 = scalar_select %p739, %s40, 1
      %p741 = scmp.lt.s32.totalorder %s738, 1
      %s742 = scalar_select %p741, %s738, 1
      %s743 = smul.addr %s740, 8
      %s744 = sadd.s32 %s742, %s743
      %s745 = smul.addr %s744, 8
      %s746 = scalar_lea.vmem %s3, %s745
      %p747 = pneg %p155
      %p748 = pneg %p152
      %p749 = pneg %p176
      %p750 = pneg %p173
      %p751 = pneg %p197
      %p752 = pneg %p194
      %p753 = pneg %p218
      %p754 = pneg %p215
      %p755 = pneg %p239
      %p756 = pneg %p236
      %p757 = pneg %p260
      %p758 = pneg %p257
      %p759 = pneg %p281
      %p760 = pneg %p278
      %p761 = pneg %p302
      %p762 = pneg %p299
      %p763 = pneg %p323
      %p764 = pneg %p320
      %p765 = pneg %p344
      %p766 = pneg %p341
      %p767 = pneg %p365
      %p768 = pneg %p362
      %p769 = pneg %p386
      %p770 = pneg %p383
      %p771 = pneg %p407
      %p772 = pneg %p404
      %p773 = pneg %p428
      %p774 = pneg %p425
      %p775 = pneg %p449
      %p776 = pneg %p446
      %p777 = pneg %p470
      %p778 = pneg %p467
      %p779 = pneg %p498
      %p780 = pneg %p495
      %s781 = smul.u32 2, %s41
      %p782 = scmp.lt.s32.totalorder %s40, 1
      %s783 = scalar_select %p782, %s40, 1
      %p784 = scmp.lt.s32.totalorder %s781, 1
      %s785 = scalar_select %p784, %s781, 1
      %s786 = smul.addr %s783, 2
      %s787 = sadd.s32 %s785, %s786
      %s788 = scalar_lea.vmem %s19, %s787
      %p789 = pneg %p526
      %p790 = pneg %p523
      %s791 = smul.u32 2, %s41
      %p792 = scmp.lt.s32.totalorder %s40, 1
      %s793 = scalar_select %p792, %s40, 1
      %p794 = scmp.lt.s32.totalorder %s791, 1
      %s795 = scalar_select %p794, %s791, 1
      %s796 = smul.addr %s793, 16
      %s797 = sadd.s32 %s795, %s796
      %s798 = smul.addr %s797, 8
      %s799 = scalar_lea.vmem %s20, %s798
      %p800 = pneg %p554
      %p801 = pneg %p551
      %s802 = smul.u32 2, %s41
      %p803 = scmp.lt.s32.totalorder %s40, 1
      %s804 = scalar_select %p803, %s40, 1
      %p805 = scmp.lt.s32.totalorder %s802, 1
      %s806 = scalar_select %p805, %s802, 1
      %s807 = smul.addr %s804, 16
      %s808 = sadd.s32 %s806, %s807
      %s809 = smul.addr %s808, 8
      %s810 = scalar_lea.vmem %s21, %s809
      %p811 = pneg %p582
      %p812 = pneg %p579
      %s813 = smul.u32 2, %s41
      %p814 = scmp.lt.s32.totalorder %s40, 1
      %s815 = scalar_select %p814, %s40, 1
      %p816 = scmp.lt.s32.totalorder %s813, 1
      %s817 = scalar_select %p816, %s813, 1
      %s818 = smul.addr %s815, 16
      %s819 = sadd.s32 %s817, %s818
      %s820 = smul.addr %s819, 8
      %s821 = scalar_lea.vmem %s22, %s820
      %s822 = smul.u32 2, %s41
      %p823 = scmp.lt.s32.totalorder %s40, 1
      %s824 = scalar_select %p823, %s40, 1
      %p825 = scmp.lt.s32.totalorder %s822, 1
      %s826 = scalar_select %p825, %s822, 1
      %s827 = smul.addr %s824, 2
      %s828 = sadd.s32 %s826, %s827
      %s829 = smul.addr %s828, 8
      %s830 = scalar_lea.vmem %s0, %s829
      %s831 = smul.u32 2, %s41
      %s832 = smul.u32 2, %s41
      %p833 = scmp.lt.s32.totalorder %s40, 1
      %s834 = scalar_select %p833, %s40, 1
      %p835 = scmp.lt.s32.totalorder %s832, 1
      %s836 = scalar_select %p835, %s832, 1
      %s837 = smul.addr %s834, 8
      %s838 = sadd.s32 %s836, %s837
      %s839 = smul.addr %s838, 8
      %s840 = scalar_lea.vmem %s1, %s839
      %s841 = smul.u32 2, %s41
      %s842 = smul.u32 2, %s41
      %p843 = scmp.lt.s32.totalorder %s40, 1
      %s844 = scalar_select %p843, %s40, 1
      %p845 = scmp.lt.s32.totalorder %s842, 1
      %s846 = scalar_select %p845, %s842, 1
      %s847 = smul.addr %s844, 8
      %s848 = sadd.s32 %s846, %s847
      %s849 = smul.addr %s848, 8
      %s850 = scalar_lea.vmem %s2, %s849
      %s851 = smul.u32 2, %s41
      %s852 = smul.u32 2, %s41
      %p853 = scmp.lt.s32.totalorder %s40, 1
      %s854 = scalar_select %p853, %s40, 1
      %p855 = scmp.lt.s32.totalorder %s852, 1
      %s856 = scalar_select %p855, %s852, 1
      %s857 = smul.addr %s854, 8
      %s858 = sadd.s32 %s856, %s857
      %s859 = smul.addr %s858, 8
      %s860 = scalar_lea.vmem %s3, %s859
      %s861 = smul.u32 2, %s41
      %s862 = smul.u32 2, %s41
      %p863 = scmp.lt.s32.totalorder %s40, 1
      %s864 = scalar_select %p863, %s40, 1
      %p865 = scmp.lt.s32.totalorder %s862, 1
      %s866 = scalar_select %p865, %s862, 1
      %s867 = smul.addr %s864, 2
      %s868 = sadd.s32 %s866, %s867
      %s869 = scalar_lea.vmem %s19, %s868
      %s870 = smul.u32 2, %s41
      %s871 = smul.u32 2, %s41
      %p872 = scmp.lt.s32.totalorder %s40, 1
      %s873 = scalar_select %p872, %s40, 1
      %p874 = scmp.lt.s32.totalorder %s871, 1
      %s875 = scalar_select %p874, %s871, 1
      %s876 = smul.addr %s873, 16
      %s877 = sadd.s32 %s875, %s876
      %s878 = smul.addr %s877, 8
      %s879 = scalar_lea.vmem %s20, %s878
      %s880 = smul.u32 2, %s41
      %s881 = smul.u32 2, %s41
      %p882 = scmp.lt.s32.totalorder %s40, 1
      %s883 = scalar_select %p882, %s40, 1
      %p884 = scmp.lt.s32.totalorder %s881, 1
      %s885 = scalar_select %p884, %s881, 1
      %s886 = smul.addr %s883, 16
      %s887 = sadd.s32 %s885, %s886
      %s888 = smul.addr %s887, 8
      %s889 = scalar_lea.vmem %s21, %s888
      %s890 = smul.u32 2, %s41
      %s891 = smul.u32 2, %s41
      %p892 = scmp.lt.s32.totalorder %s40, 1
      %s893 = scalar_select %p892, %s40, 1
      %p894 = scmp.lt.s32.totalorder %s891, 1
      %s895 = scalar_select %p894, %s891, 1
      %s896 = smul.addr %s893, 16
      %s897 = sadd.s32 %s895, %s896
      %s898 = smul.addr %s897, 8
      %s899 = scalar_lea.vmem %s22, %s898
      %s900 = smul.u32 2, %s41
      %v901 = vld [vmem:[%s840] sm:$0xff]
      %v902 = vld [vmem:[%s840 + $0x8] sm:$0xff]
      %v903 = vld [vmem:[%s840 + $0x10] sm:$0xff]
      %v904 = vld [vmem:[%s840 + $0x18] sm:$0xff]
      %v905 = vld [vmem:[%s840 + $0x20] sm:$0xff]
      %v906 = vld [vmem:[%s840 + $0x28] sm:$0xff]
      %v907 = vld [vmem:[%s840 + $0x30] sm:$0xff]
      %v908 = vld [vmem:[%s840 + $0x38] sm:$0xff]
      %909 = vst [vmem:[#allocation2] sm:$0xff] %v901
      %910 = vst [vmem:[#allocation2 + $0x8] sm:$0xff] %v902
      %911 = vst [vmem:[#allocation2 + $0x10] sm:$0xff] %v903
      %912 = vst [vmem:[#allocation2 + $0x18] sm:$0xff] %v904
      %913 = vst [vmem:[#allocation2 + $0x20] sm:$0xff] %v905
      %914 = vst [vmem:[#allocation2 + $0x28] sm:$0xff] %v906
      %915 = vst [vmem:[#allocation2 + $0x30] sm:$0xff] %v907
      %916 = vst [vmem:[#allocation2 + $0x38] sm:$0xff] %v908
      %v917 = vld [vmem:[%s850] sm:$0xff]
      %v918 = vld [vmem:[%s850 + $0x8] sm:$0xff]
      %v919 = vld [vmem:[%s850 + $0x10] sm:$0xff]
      %v920 = vld [vmem:[%s850 + $0x18] sm:$0xff]
      %v921 = vld [vmem:[%s850 + $0x20] sm:$0xff]
      %v922 = vld [vmem:[%s850 + $0x28] sm:$0xff]
      %v923 = vld [vmem:[%s850 + $0x30] sm:$0xff]
      %v924 = vld [vmem:[%s850 + $0x38] sm:$0xff]
      %925 = vst [vmem:[#allocation2 + $0x40] sm:$0xff] %v917
      %926 = vst [vmem:[#allocation2 + $0x48] sm:$0xff] %v918
      %927 = vst [vmem:[#allocation2 + $0x50] sm:$0xff] %v919
      %928 = vst [vmem:[#allocation2 + $0x58] sm:$0xff] %v920
      %929 = vst [vmem:[#allocation2 + $0x60] sm:$0xff] %v921
      %930 = vst [vmem:[#allocation2 + $0x68] sm:$0xff] %v922
      %931 = vst [vmem:[#allocation2 + $0x70] sm:$0xff] %v923
      %932 = vst [vmem:[#allocation2 + $0x78] sm:$0xff] %v924
      %v933 = vld [vmem:[%s860] sm:$0xff]
      %v934 = vld [vmem:[%s860 + $0x8] sm:$0xff]
      %v935 = vld [vmem:[%s860 + $0x10] sm:$0xff]
      %v936 = vld [vmem:[%s860 + $0x18] sm:$0xff]
      %v937 = vld [vmem:[%s860 + $0x20] sm:$0xff]
      %v938 = vld [vmem:[%s860 + $0x28] sm:$0xff]
      %v939 = vld [vmem:[%s860 + $0x30] sm:$0xff]
      %v940 = vld [vmem:[%s860 + $0x38] sm:$0xff]
      %941 = vst [vmem:[#allocation2 + $0x80] sm:$0xff] %v933
      %942 = vst [vmem:[#allocation2 + $0x88] sm:$0xff] %v934
      %943 = vst [vmem:[#allocation2 + $0x90] sm:$0xff] %v935
      %944 = vst [vmem:[#allocation2 + $0x98] sm:$0xff] %v936
      %945 = vst [vmem:[#allocation2 + $0xa0] sm:$0xff] %v937
      %946 = vst [vmem:[#allocation2 + $0xa8] sm:$0xff] %v938
      %947 = vst [vmem:[#allocation2 + $0xb0] sm:$0xff] %v939
      %948 = vst [vmem:[#allocation2 + $0xb8] sm:$0xff] %v940
      %v949 = vld [vmem:[#allocation2] sm:$0xff]
      %v950 = vld [vmem:[#allocation2 + $0x8] sm:$0xff]
      %v951 = vld [vmem:[#allocation2 + $0x10] sm:$0xff]
      %v952 = vld [vmem:[#allocation2 + $0x18] sm:$0xff]
      %v953 = vld [vmem:[#allocation2 + $0x20] sm:$0xff]
      %v954 = vld [vmem:[#allocation2 + $0x28] sm:$0xff]
      %v955 = vld [vmem:[#allocation2 + $0x30] sm:$0xff]
      %v956 = vld [vmem:[#allocation2 + $0x38] sm:$0xff]
      %v957 = vld [vmem:[#allocation2 + $0x40] sm:$0xff]
      %v958 = vld [vmem:[#allocation2 + $0x48] sm:$0xff]
      %v959 = vld [vmem:[#allocation2 + $0x50] sm:$0xff]
      %v960 = vld [vmem:[#allocation2 + $0x58] sm:$0xff]
      %v961 = vld [vmem:[#allocation2 + $0x60] sm:$0xff]
      %v962 = vld [vmem:[#allocation2 + $0x68] sm:$0xff]
      %v963 = vld [vmem:[#allocation2 + $0x70] sm:$0xff]
      %v964 = vld [vmem:[#allocation2 + $0x78] sm:$0xff]
      %v965 = vld [vmem:[#allocation2 + $0x80] sm:$0xff]
      %v966 = vld [vmem:[#allocation2 + $0x88] sm:$0xff]
      %v967 = vld [vmem:[#allocation2 + $0x90] sm:$0xff]
      %v968 = vld [vmem:[#allocation2 + $0x98] sm:$0xff]
      %v969 = vld [vmem:[#allocation2 + $0xa0] sm:$0xff]
      %v970 = vld [vmem:[#allocation2 + $0xa8] sm:$0xff]
      %v971 = vld [vmem:[#allocation2 + $0xb0] sm:$0xff]
      %v972 = vld [vmem:[#allocation2 + $0xb8] sm:$0xff]
      %v973 = vld [vmem:[%s17] sm:$0xff]
      %v974 = vld [vmem:[%s17 + $0x8] sm:$0xff]
      %v975 = vld [vmem:[%s17 + $0x10] sm:$0xff]
      %v976 = vld [vmem:[%s17 + $0x18] sm:$0xff]
      %v977 = vld [vmem:[%s17 + $0x20] sm:$0xff]
      %v978 = vld [vmem:[%s17 + $0x28] sm:$0xff]
      %v979 = vld [vmem:[%s17 + $0x30] sm:$0xff]
      %v980 = vld [vmem:[%s17 + $0x38] sm:$0xff]
      %v981 = vld [vmem:[%s17 + $0x40] sm:$0xff]
      %v982 = vld [vmem:[%s17 + $0x48] sm:$0xff]
      %v983 = vld [vmem:[%s17 + $0x50] sm:$0xff]
      %v984 = vld [vmem:[%s17 + $0x58] sm:$0xff]
      %v985 = vld [vmem:[%s17 + $0x60] sm:$0xff]
      %v986 = vld [vmem:[%s17 + $0x68] sm:$0xff]
      %v987 = vld [vmem:[%s17 + $0x70] sm:$0xff]
      %v988 = vld [vmem:[%s17 + $0x78] sm:$0xff]
      %v989 = vld [vmem:[%s17 + $0x80] sm:$0xff]
      %v990 = vld [vmem:[%s17 + $0x88] sm:$0xff]
      %v991 = vld [vmem:[%s17 + $0x90] sm:$0xff]
      %v992 = vld [vmem:[%s17 + $0x98] sm:$0xff]
      %v993 = vld [vmem:[%s17 + $0xa0] sm:$0xff]
      %v994 = vld [vmem:[%s17 + $0xa8] sm:$0xff]
      %v995 = vld [vmem:[%s17 + $0xb0] sm:$0xff]
      %v996 = vld [vmem:[%s17 + $0xb8] sm:$0xff]
      %v997 = vld [vmem:[%s18] sm:$0xff]
      %v998 = vld [vmem:[%s18 + $0x8] sm:$0xff]
      %v999 = vld [vmem:[%s18 + $0x10] sm:$0xff]
      %v1000 = vld [vmem:[%s18 + $0x18] sm:$0xff]
      %v1001 = vld [vmem:[%s18 + $0x20] sm:$0xff]
      %v1002 = vld [vmem:[%s18 + $0x28] sm:$0xff]
      %v1003 = vld [vmem:[%s18 + $0x30] sm:$0xff]
      %v1004 = vld [vmem:[%s18 + $0x38] sm:$0xff]
      %v1005 = vld [vmem:[%s18 + $0x40] sm:$0xff]
      %v1006 = vld [vmem:[%s18 + $0x48] sm:$0xff]
      %v1007 = vld [vmem:[%s18 + $0x50] sm:$0xff]
      %v1008 = vld [vmem:[%s18 + $0x58] sm:$0xff]
      %v1009 = vld [vmem:[%s18 + $0x60] sm:$0xff]
      %v1010 = vld [vmem:[%s18 + $0x68] sm:$0xff]
      %v1011 = vld [vmem:[%s18 + $0x70] sm:$0xff]
      %v1012 = vld [vmem:[%s18 + $0x78] sm:$0xff]
      %v1013 = vld [vmem:[%s18 + $0x80] sm:$0xff]
      %v1014 = vld [vmem:[%s18 + $0x88] sm:$0xff]
      %v1015 = vld [vmem:[%s18 + $0x90] sm:$0xff]
      %v1016 = vld [vmem:[%s18 + $0x98] sm:$0xff]
      %v1017 = vld [vmem:[%s18 + $0xa0] sm:$0xff]
      %v1018 = vld [vmem:[%s18 + $0xa8] sm:$0xff]
      %v1019 = vld [vmem:[%s18 + $0xb0] sm:$0xff]
      %v1020 = vld [vmem:[%s18 + $0xb8] sm:$0xff]
      %1022 = vset.pattern.permute.xlu0 0
      %1023 = vperm.xlu0 %1022, %v997
      %v1024 = vpop.permute.xlu0 %1023
      %1027 = vset.pattern.permute.xlu0 0
      %1028 = vperm.xlu0 %1027, %v998
      %v1029 = vpop.permute.xlu0 %1028
      %1032 = vset.pattern.permute.xlu0 0
      %1033 = vperm.xlu0 %1032, %v999
      %v1034 = vpop.permute.xlu0 %1033
      %1037 = vset.pattern.permute.xlu0 0
      %1038 = vperm.xlu0 %1037, %v1000
      %v1039 = vpop.permute.xlu0 %1038
      %1042 = vset.pattern.permute.xlu0 0
      %1043 = vperm.xlu0 %1042, %v1001
      %v1044 = vpop.permute.xlu0 %1043
      %1047 = vset.pattern.permute.xlu0 0
      %1048 = vperm.xlu0 %1047, %v1002
      %v1049 = vpop.permute.xlu0 %1048
      %1052 = vset.pattern.permute.xlu0 0
      %1053 = vperm.xlu0 %1052, %v1003
      %v1054 = vpop.permute.xlu0 %1053
      %1057 = vset.pattern.permute.xlu0 0
      %1058 = vperm.xlu0 %1057, %v1004
      %v1059 = vpop.permute.xlu0 %1058
      %1062 = vset.pattern.permute.xlu0 0
      %1063 = vperm.xlu0 %1062, %v1005
      %v1064 = vpop.permute.xlu0 %1063
      %1067 = vset.pattern.permute.xlu0 0
      %1068 = vperm.xlu0 %1067, %v1006
      %v1069 = vpop.permute.xlu0 %1068
      %1072 = vset.pattern.permute.xlu0 0
      %1073 = vperm.xlu0 %1072, %v1007
      %v1074 = vpop.permute.xlu0 %1073
      %1077 = vset.pattern.permute.xlu0 0
      %1078 = vperm.xlu0 %1077, %v1008
      %v1079 = vpop.permute.xlu0 %1078
      %1082 = vset.pattern.permute.xlu0 0
      %1083 = vperm.xlu0 %1082, %v1009
      %v1084 = vpop.permute.xlu0 %1083
      %1087 = vset.pattern.permute.xlu0 0
      %1088 = vperm.xlu0 %1087, %v1010
      %v1089 = vpop.permute.xlu0 %1088
      %1092 = vset.pattern.permute.xlu0 0
      %1093 = vperm.xlu0 %1092, %v1011
      %v1094 = vpop.permute.xlu0 %1093
      %1097 = vset.pattern.permute.xlu0 0
      %1098 = vperm.xlu0 %1097, %v1012
      %v1099 = vpop.permute.xlu0 %1098
      %1102 = vset.pattern.permute.xlu0 0
      %1103 = vperm.xlu0 %1102, %v1013
      %v1104 = vpop.permute.xlu0 %1103
      %1107 = vset.pattern.permute.xlu0 0
      %1108 = vperm.xlu0 %1107, %v1014
      %v1109 = vpop.permute.xlu0 %1108
      %1112 = vset.pattern.permute.xlu0 0
      %1113 = vperm.xlu0 %1112, %v1015
      %v1114 = vpop.permute.xlu0 %1113
      %1117 = vset.pattern.permute.xlu0 0
      %1118 = vperm.xlu0 %1117, %v1016
      %v1119 = vpop.permute.xlu0 %1118
      %1122 = vset.pattern.permute.xlu0 0
      %1123 = vperm.xlu0 %1122, %v1017
      %v1124 = vpop.permute.xlu0 %1123
      %1127 = vset.pattern.permute.xlu0 0
      %1128 = vperm.xlu0 %1127, %v1018
      %v1129 = vpop.permute.xlu0 %1128
      %1132 = vset.pattern.permute.xlu0 0
      %1133 = vperm.xlu0 %1132, %v1019
      %v1134 = vpop.permute.xlu0 %1133
      %1137 = vset.pattern.permute.xlu0 0
      %1138 = vperm.xlu0 %1137, %v1020
      %v1139 = vpop.permute.xlu0 %1138
      %vm1141 = vcmask 785408
      %v1143 = vsel %vm1141, %v973, 0
      %v1146 = vsel %vm1141, %v974, 0
      %v1149 = vsel %vm1141, %v975, 0
      %v1152 = vsel %vm1141, %v976, 0
      %v1155 = vsel %vm1141, %v977, 0
      %v1158 = vsel %vm1141, %v978, 0
      %v1161 = vsel %vm1141, %v979, 0
      %v1164 = vsel %vm1141, %v980, 0
      %v1167 = vsel %vm1141, %v981, 0
      %v1170 = vsel %vm1141, %v982, 0
      %v1173 = vsel %vm1141, %v983, 0
      %v1176 = vsel %vm1141, %v984, 0
      %v1179 = vsel %vm1141, %v985, 0
      %v1182 = vsel %vm1141, %v986, 0
      %v1185 = vsel %vm1141, %v987, 0
      %v1188 = vsel %vm1141, %v988, 0
      %v1191 = vsel %vm1141, %v989, 0
      %v1194 = vsel %vm1141, %v990, 0
      %v1197 = vsel %vm1141, %v991, 0
      %v1200 = vsel %vm1141, %v992, 0
      %v1203 = vsel %vm1141, %v993, 0
      %v1206 = vsel %vm1141, %v994, 0
      %v1209 = vsel %vm1141, %v995, 0
      %v1212 = vsel %vm1141, %v996, 0
      %1214 = vmatprep.subr.mxu0 %v950
      %1215 = vmatpush1.msra.mxu0 %v949
      %1216 = vmatprep.subr.mxu0 %v952
      %1217 = vmatpush1.msra.mxu0 %v951
      %1218 = vmatprep.subr.mxu0 %v954
      %1219 = vmatpush1.msra.mxu0 %v953
      %1220 = vmatprep.subr.mxu0 %v956
      %1221 = vmatpush1.msra.mxu0 %v955
      %1222 = vmatprep.subr.mxu0 %v958
      %1223 = vmatpush1.msra.mxu0 %v957
      %1224 = vmatprep.subr.mxu0 %v960
      %1225 = vmatpush1.msra.mxu0 %v959
      %1226 = vmatprep.subr.mxu0 %v962
      %1227 = vmatpush1.msra.mxu0 %v961
      %1228 = vmatprep.subr.mxu0 %v964
      %1229 = vmatpush1.msra.mxu0 %v963
      %1230 = vmatprep.subr.mxu0 %v966
      %1231 = vmatpush1.msra.mxu0 %v965
      %1232 = vmatprep.subr.mxu0 %v968
      %1233 = vmatpush1.msra.mxu0 %v967
      %1234 = vmatprep.subr.mxu0 %v970
      %1235 = vmatpush1.msra.mxu0 %v969
      %1236 = vmatprep.subr.mxu0 %v972
      %1237 = vmatpush1.msra.mxu0 %v971
      %1238 = vmatprep.subr.mxu0 0.0
      %1239 = vmatpush1.msra.mxu0 0.0
      %1240 = vmatprep.subr.mxu0 0.0
      %1241 = vmatpush1.msra.mxu0 0.0
      %1242 = vmatprep.subr.mxu0 0.0
      %1243 = vmatpush1.msra.mxu0 0.0
      %1244 = vmatprep.subr.mxu0 0.0
      %1245 = vmatpush1.msra.mxu0 0.0
      %1246 = vmatprep.subr.mxu0 0.0
      %1247 = vmatpush1.msra.mxu0 0.0
      %1248 = vmatprep.subr.mxu0 0.0
      %1249 = vmatpush1.msra.mxu0 0.0
      %1250 = vmatprep.subr.mxu0 0.0
      %1251 = vmatpush1.msra.mxu0 0.0
      %1252 = vmatprep.subr.mxu0 0.0
      %1253 = vmatpush1.msra.mxu0 0.0
      %1254 = vmatprep.subr.mxu0 0.0
      %1255 = vmatpush1.msra.mxu0 0.0
      %1256 = vmatprep.subr.mxu0 0.0
      %1257 = vmatpush1.msra.mxu0 0.0
      %1258 = vmatprep.subr.mxu0 0.0
      %1259 = vmatpush1.msra.mxu0 0.0
      %1260 = vmatprep.subr.mxu0 0.0
      %1261 = vmatpush1.msra.mxu0 0.0
      %1262 = vmatprep.subr.mxu0 0.0
      %1263 = vmatpush1.msra.mxu0 0.0
      %1264 = vmatprep.subr.mxu0 0.0
      %1265 = vmatpush1.msra.mxu0 0.0
      %1266 = vmatprep.subr.mxu0 0.0
      %1267 = vmatpush1.msra.mxu0 0.0
      %1268 = vmatprep.subr.mxu0 0.0
      %1269 = vmatpush1.msra.mxu0 0.0
      %1270 = vmatprep.subr.mxu0 0.0
      %1271 = vmatpush1.msra.mxu0 0.0
      %1272 = vmatprep.subr.mxu0 0.0
      %1273 = vmatpush1.msra.mxu0 0.0
      %1274 = vmatprep.subr.mxu0 0.0
      %1275 = vmatpush1.msra.mxu0 0.0
      %1276 = vmatprep.subr.mxu0 0.0
      %1277 = vmatpush1.msra.mxu0 0.0
      %1278 = vmatprep.mubr.f32.mxu0 0.0
      %1279 = vmatmul.mubr.f32.gmra.mrb[0].mxu0 %v1143
      %v1280 = vpop.f32.mrb[0].mxu0
      %v1281 = vadd.f32 %v1024, %v1280
      %v1282 = vpop.f32.mrb[0].mxu0
      %v1283 = vadd.f32 %v1024, %v1282
      %1284 = vmatprep.mubr.f32.mxu0 0.0
      %1285 = vmatmul.mubr.f32.gmra.mrb[0].mxu0 %v1146
      %v1286 = vpop.f32.mrb[0].mxu0
      %v1287 = vadd.f32 %v1029, %v1286
      %v1288 = vpop.f32.mrb[0].mxu0
      %v1289 = vadd.f32 %v1029, %v1288
      %1290 = vmatprep.mubr.f32.mxu0 0.0
      %1291 = vmatmul.mubr.f32.gmra.mrb[0].mxu0 %v1149
      %v1292 = vpop.f32.mrb[0].mxu0
      %v1293 = vadd.f32 %v1034, %v1292
      %v1294 = vpop.f32.mrb[0].mxu0
      %v1295 = vadd.f32 %v1034, %v1294
      %1296 = vmatprep.mubr.f32.mxu0 0.0
      %1297 = vmatmul.mubr.f32.gmra.mrb[0].mxu0 %v1152
      %v1298 = vpop.f32.mrb[0].mxu0
      %v1299 = vadd.f32 %v1039, %v1298
      %v1300 = vpop.f32.mrb[0].mxu0
      %v1301 = vadd.f32 %v1039, %v1300
      %1302 = vmatprep.mubr.f32.mxu0 0.0
      %1303 = vmatmul.mubr.f32.gmra.mrb[0].mxu0 %v1155
      %v1304 = vpop.f32.mrb[0].mxu0
      %v1305 = vadd.f32 %v1044, %v1304
      %v1306 = vpop.f32.mrb[0].mxu0
      %v1307 = vadd.f32 %v1044, %v1306
      %1308 = vmatprep.mubr.f32.mxu0 0.0
      %1309 = vmatmul.mubr.f32.gmra.mrb[0].mxu0 %v1158
      %v1310 = vpop.f32.mrb[0].mxu0
      %v1311 = vadd.f32 %v1049, %v1310
      %v1312 = vpop.f32.mrb[0].mxu0
      %v1313 = vadd.f32 %v1049, %v1312
      %1314 = vmatprep.mubr.f32.mxu0 0.0
      %1315 = vmatmul.mubr.f32.gmra.mrb[0].mxu0 %v1161
      %v1316 = vpop.f32.mrb[0].mxu0
      %v1317 = vadd.f32 %v1054, %v1316
      %v1318 = vpop.f32.mrb[0].mxu0
      %v1319 = vadd.f32 %v1054, %v1318
      %1320 = vmatprep.mubr.f32.mxu0 0.0
      %1321 = vmatmul.mubr.f32.gmra.mrb[0].mxu0 %v1164
      %v1322 = vpop.f32.mrb[0].mxu0
      %v1323 = vadd.f32 %v1059, %v1322
      %v1324 = vpop.f32.mrb[0].mxu0
      %v1325 = vadd.f32 %v1059, %v1324
      %1326 = vmatprep.mubr.f32.mxu0 0.0
      %1327 = vmatmul.mubr.f32.gmra.mrb[0].mxu0 %v1167
      %v1328 = vpop.f32.mrb[0].mxu0
      %v1329 = vadd.f32 %v1064, %v1328
      %v1330 = vpop.f32.mrb[0].mxu0
      %v1331 = vadd.f32 %v1064, %v1330
      %1332 = vmatprep.mubr.f32.mxu0 0.0
      %1333 = vmatmul.mubr.f32.gmra.mrb[0].mxu0 %v1170
      %v1334 = vpop.f32.mrb[0].mxu0
      %v1335 = vadd.f32 %v1069, %v1334
      %v1336 = vpop.f32.mrb[0].mxu0
      %v1337 = vadd.f32 %v1069, %v1336
      %1338 = vmatprep.mubr.f32.mxu0 0.0
      %1339 = vmatmul.mubr.f32.gmra.mrb[0].mxu0 %v1173
      %v1340 = vpop.f32.mrb[0].mxu0
      %v1341 = vadd.f32 %v1074, %v1340
      %v1342 = vpop.f32.mrb[0].mxu0
      %v1343 = vadd.f32 %v1074, %v1342
      %1344 = vmatprep.mubr.f32.mxu0 0.0
      %1345 = vmatmul.mubr.f32.gmra.mrb[0].mxu0 %v1176
      %v1346 = vpop.f32.mrb[0].mxu0
      %v1347 = vadd.f32 %v1079, %v1346
      %v1348 = vpop.f32.mrb[0].mxu0
      %v1349 = vadd.f32 %v1079, %v1348
      %1350 = vmatprep.mubr.f32.mxu0 0.0
      %1351 = vmatmul.mubr.f32.gmra.mrb[0].mxu0 %v1179
      %v1352 = vpop.f32.mrb[0].mxu0
      %v1353 = vadd.f32 %v1084, %v1352
      %v1354 = vpop.f32.mrb[0].mxu0
      %v1355 = vadd.f32 %v1084, %v1354
      %1356 = vmatprep.mubr.f32.mxu0 0.0
      %1357 = vmatmul.mubr.f32.gmra.mrb[0].mxu0 %v1182
      %v1358 = vpop.f32.mrb[0].mxu0
      %v1359 = vadd.f32 %v1089, %v1358
      %v1360 = vpop.f32.mrb[0].mxu0
      %v1361 = vadd.f32 %v1089, %v1360
      %1362 = vmatprep.mubr.f32.mxu0 0.0
      %1363 = vmatmul.mubr.f32.gmra.mrb[0].mxu0 %v1185
      %v1364 = vpop.f32.mrb[0].mxu0
      %v1365 = vadd.f32 %v1094, %v1364
      %v1366 = vpop.f32.mrb[0].mxu0
      %v1367 = vadd.f32 %v1094, %v1366
      %1368 = vmatprep.mubr.f32.mxu0 0.0
      %1369 = vmatmul.mubr.f32.gmra.mrb[0].mxu0 %v1188
      %v1370 = vpop.f32.mrb[0].mxu0
      %v1371 = vadd.f32 %v1099, %v1370
      %v1372 = vpop.f32.mrb[0].mxu0
      %v1373 = vadd.f32 %v1099, %v1372
      %1374 = vmatprep.mubr.f32.mxu0 0.0
      %1375 = vmatmul.mubr.f32.gmra.mrb[0].mxu0 %v1191
      %v1376 = vpop.f32.mrb[0].mxu0
      %v1377 = vadd.f32 %v1104, %v1376
      %v1378 = vpop.f32.mrb[0].mxu0
      %v1379 = vadd.f32 %v1104, %v1378
      %1380 = vmatprep.mubr.f32.mxu0 0.0
      %1381 = vmatmul.mubr.f32.gmra.mrb[0].mxu0 %v1194
      %v1382 = vpop.f32.mrb[0].mxu0
      %v1383 = vadd.f32 %v1109, %v1382
      %v1384 = vpop.f32.mrb[0].mxu0
      %v1385 = vadd.f32 %v1109, %v1384
      %1386 = vmatprep.mubr.f32.mxu0 0.0
      %1387 = vmatmul.mubr.f32.gmra.mrb[0].mxu0 %v1197
      %v1388 = vpop.f32.mrb[0].mxu0
      %v1389 = vadd.f32 %v1114, %v1388
      %v1390 = vpop.f32.mrb[0].mxu0
      %v1391 = vadd.f32 %v1114, %v1390
      %1392 = vmatprep.mubr.f32.mxu0 0.0
      %1393 = vmatmul.mubr.f32.gmra.mrb[0].mxu0 %v1200
      %v1394 = vpop.f32.mrb[0].mxu0
      %v1395 = vadd.f32 %v1119, %v1394
      %v1396 = vpop.f32.mrb[0].mxu0
      %v1397 = vadd.f32 %v1119, %v1396
      %1398 = vmatprep.mubr.f32.mxu0 0.0
      %1399 = vmatmul.mubr.f32.gmra.mrb[0].mxu0 %v1203
      %v1400 = vpop.f32.mrb[0].mxu0
      %v1401 = vadd.f32 %v1124, %v1400
      %v1402 = vpop.f32.mrb[0].mxu0
      %v1403 = vadd.f32 %v1124, %v1402
      %1404 = vmatprep.mubr.f32.mxu0 0.0
      %1405 = vmatmul.mubr.f32.gmra.mrb[0].mxu0 %v1206
      %v1406 = vpop.f32.mrb[0].mxu0
      %v1407 = vadd.f32 %v1129, %v1406
      %v1408 = vpop.f32.mrb[0].mxu0
      %v1409 = vadd.f32 %v1129, %v1408
      %1410 = vmatprep.mubr.f32.mxu0 0.0
      %1411 = vmatmul.mubr.f32.gmra.mrb[0].mxu0 %v1209
      %v1412 = vpop.f32.mrb[0].mxu0
      %v1413 = vadd.f32 %v1134, %v1412
      %v1414 = vpop.f32.mrb[0].mxu0
      %v1415 = vadd.f32 %v1134, %v1414
      %1416 = vmatprep.mubr.f32.mxu0 0.0
      %1417 = vmatmul.mubr.f32.gmra.mrb[0].mxu0 %v1212
      %v1418 = vpop.f32.mrb[0].mxu0
      %v1419 = vadd.f32 %v1139, %v1418
      %v1420 = vpop.f32.mrb[0].mxu0
      %v1421 = vadd.f32 %v1139, %v1420
      %1422 = vdwg.mxu0
      %v1423 = vmax.f32 %v1281, 0.0
      %v1424 = vmax.f32 %v1283, 0.0
      %v1425 = vmax.f32 %v1287, 0.0
      %v1426 = vmax.f32 %v1289, 0.0
      %v1427 = vmax.f32 %v1293, 0.0
      %v1428 = vmax.f32 %v1295, 0.0
      %v1429 = vmax.f32 %v1299, 0.0
      %v1430 = vmax.f32 %v1301, 0.0
      %v1431 = vmax.f32 %v1305, 0.0
      %v1432 = vmax.f32 %v1307, 0.0
      %v1433 = vmax.f32 %v1311, 0.0
      %v1434 = vmax.f32 %v1313, 0.0
      %v1435 = vmax.f32 %v1317, 0.0
      %v1436 = vmax.f32 %v1319, 0.0
      %v1437 = vmax.f32 %v1323, 0.0
      %v1438 = vmax.f32 %v1325, 0.0
      %v1439 = vmax.f32 %v1329, 0.0
      %v1440 = vmax.f32 %v1331, 0.0
      %v1441 = vmax.f32 %v1335, 0.0
      %v1442 = vmax.f32 %v1337, 0.0
      %v1443 = vmax.f32 %v1341, 0.0
      %v1444 = vmax.f32 %v1343, 0.0
      %v1445 = vmax.f32 %v1347, 0.0
      %v1446 = vmax.f32 %v1349, 0.0
      %v1447 = vmax.f32 %v1353, 0.0
      %v1448 = vmax.f32 %v1355, 0.0
      %v1449 = vmax.f32 %v1359, 0.0
      %v1450 = vmax.f32 %v1361, 0.0
      %v1451 = vmax.f32 %v1365, 0.0
      %v1452 = vmax.f32 %v1367, 0.0
      %v1453 = vmax.f32 %v1371, 0.0
      %v1454 = vmax.f32 %v1373, 0.0
      %v1455 = vmax.f32 %v1377, 0.0
      %v1456 = vmax.f32 %v1379, 0.0
      %v1457 = vmax.f32 %v1383, 0.0
      %v1458 = vmax.f32 %v1385, 0.0
      %v1459 = vmax.f32 %v1389, 0.0
      %v1460 = vmax.f32 %v1391, 0.0
      %v1461 = vmax.f32 %v1395, 0.0
      %v1462 = vmax.f32 %v1397, 0.0
      %v1463 = vmax.f32 %v1401, 0.0
      %v1464 = vmax.f32 %v1403, 0.0
      %v1465 = vmax.f32 %v1407, 0.0
      %v1466 = vmax.f32 %v1409, 0.0
      %v1467 = vmax.f32 %v1413, 0.0
      %v1468 = vmax.f32 %v1415, 0.0
      %v1469 = vmax.f32 %v1419, 0.0
      %v1470 = vmax.f32 %v1421, 0.0
      %1471 = vst [vmem:[%s879] sm:$0xff] %v1423
      %1472 = vst [vmem:[%s879 + $0x8] sm:$0xff] %v1424
      %1473 = vst [vmem:[%s879 + $0x10] sm:$0xff] %v1425
      %1474 = vst [vmem:[%s879 + $0x18] sm:$0xff] %v1426
      %1475 = vst [vmem:[%s879 + $0x20] sm:$0xff] %v1427
      %1476 = vst [vmem:[%s879 + $0x28] sm:$0xff] %v1428
      %1477 = vst [vmem:[%s879 + $0x30] sm:$0xff] %v1429
      %1478 = vst [vmem:[%s879 + $0x38] sm:$0xff] %v1430
      %1479 = vst [vmem:[%s879 + $0x40] sm:$0xff] %v1431
      %1480 = vst [vmem:[%s879 + $0x48] sm:$0xff] %v1432
      %1481 = vst [vmem:[%s879 + $0x50] sm:$0xff] %v1433
      %1482 = vst [vmem:[%s879 + $0x58] sm:$0xff] %v1434
      %1483 = vst [vmem:[%s879 + $0x60] sm:$0xff] %v1435
      %1484 = vst [vmem:[%s879 + $0x68] sm:$0xff] %v1436
      %1485 = vst [vmem:[%s879 + $0x70] sm:$0xff] %v1437
      %1486 = vst [vmem:[%s879 + $0x78] sm:$0xff] %v1438
      %1487 = vst [vmem:[%s889] sm:$0xff] %v1439
      %1488 = vst [vmem:[%s889 + $0x8] sm:$0xff] %v1440
      %1489 = vst [vmem:[%s889 + $0x10] sm:$0xff] %v1441
      %1490 = vst [vmem:[%s889 + $0x18] sm:$0xff] %v1442
      %1491 = vst [vmem:[%s889 + $0x20] sm:$0xff] %v1443
      %1492 = vst [vmem:[%s889 + $0x28] sm:$0xff] %v1444
      %1493 = vst [vmem:[%s889 + $0x30] sm:$0xff] %v1445
      %1494 = vst [vmem:[%s889 + $0x38] sm:$0xff] %v1446
      %1495 = vst [vmem:[%s889 + $0x40] sm:$0xff] %v1447
      %1496 = vst [vmem:[%s889 + $0x48] sm:$0xff] %v1448
      %1497 = vst [vmem:[%s889 + $0x50] sm:$0xff] %v1449
      %1498 = vst [vmem:[%s889 + $0x58] sm:$0xff] %v1450
      %1499 = vst [vmem:[%s889 + $0x60] sm:$0xff] %v1451
      %1500 = vst [vmem:[%s889 + $0x68] sm:$0xff] %v1452
      %1501 = vst [vmem:[%s889 + $0x70] sm:$0xff] %v1453
      %1502 = vst [vmem:[%s889 + $0x78] sm:$0xff] %v1454
      %1503 = vst [vmem:[%s899] sm:$0xff] %v1455
      %1504 = vst [vmem:[%s899 + $0x8] sm:$0xff] %v1456
      %1505 = vst [vmem:[%s899 + $0x10] sm:$0xff] %v1457
      %1506 = vst [vmem:[%s899 + $0x18] sm:$0xff] %v1458
      %1507 = vst [vmem:[%s899 + $0x20] sm:$0xff] %v1459
      %1508 = vst [vmem:[%s899 + $0x28] sm:$0xff] %v1460
      %1509 = vst [vmem:[%s899 + $0x30] sm:$0xff] %v1461
      %1510 = vst [vmem:[%s899 + $0x38] sm:$0xff] %v1462
      %1511 = vst [vmem:[%s899 + $0x40] sm:$0xff] %v1463
      %1512 = vst [vmem:[%s899 + $0x48] sm:$0xff] %v1464
      %1513 = vst [vmem:[%s899 + $0x50] sm:$0xff] %v1465
      %1514 = vst [vmem:[%s899 + $0x58] sm:$0xff] %v1466
      %1515 = vst [vmem:[%s899 + $0x60] sm:$0xff] %v1467
      %1516 = vst [vmem:[%s899 + $0x68] sm:$0xff] %v1468
      %1517 = vst [vmem:[%s899 + $0x70] sm:$0xff] %v1469
      %1518 = vst [vmem:[%s899 + $0x78] sm:$0xff] %v1470
      %v1519 = vld [vmem:[%s4] sm:$0xff]
      %v1520 = vld [vmem:[%s4 + $0x8] sm:$0xff]
      %v1521 = vld [vmem:[%s4 + $0x10] sm:$0xff]
      %v1522 = vld [vmem:[%s4 + $0x18] sm:$0xff]
      %v1523 = vld [vmem:[%s4 + $0x20] sm:$0xff]
      %v1524 = vld [vmem:[%s4 + $0x28] sm:$0xff]
      %v1525 = vld [vmem:[%s4 + $0x30] sm:$0xff]
      %v1526 = vld [vmem:[%s4 + $0x38] sm:$0xff]
      %v1527 = vld [vmem:[%s4 + $0x40] sm:$0xff]
      %v1528 = vld [vmem:[%s5] sm:$0xff]
      %v1529 = vld [vmem:[%s5 + $0x8] sm:$0xff]
      %v1530 = vld [vmem:[%s5 + $0x10] sm:$0xff]
      %v1531 = vld [vmem:[%s5 + $0x18] sm:$0xff]
      %v1532 = vld [vmem:[%s5 + $0x20] sm:$0xff]
      %v1533 = vld [vmem:[%s5 + $0x28] sm:$0xff]
      %v1534 = vld [vmem:[%s5 + $0x30] sm:$0xff]
      %v1535 = vld [vmem:[%s5 + $0x38] sm:$0xff]
      %v1536 = vld [vmem:[%s5 + $0x40] sm:$0xff]
      %1538 = vset.pattern.permute.xlu0 0
      %1539 = vperm.xlu0 %1538, %v1528
      %v1540 = vpop.permute.xlu0 %1539
      %1543 = vset.pattern.permute.xlu0 0
      %1544 = vperm.xlu0 %1543, %v1529
      %v1545 = vpop.permute.xlu0 %1544
      %1548 = vset.pattern.permute.xlu0 0
      %1549 = vperm.xlu0 %1548, %v1530
      %v1550 = vpop.permute.xlu0 %1549
      %1553 = vset.pattern.permute.xlu0 0
      %1554 = vperm.xlu0 %1553, %v1531
      %v1555 = vpop.permute.xlu0 %1554
      %1558 = vset.pattern.permute.xlu0 0
      %1559 = vperm.xlu0 %1558, %v1532
      %v1560 = vpop.permute.xlu0 %1559
      %1563 = vset.pattern.permute.xlu0 0
      %1564 = vperm.xlu0 %1563, %v1533
      %v1565 = vpop.permute.xlu0 %1564
      %1568 = vset.pattern.permute.xlu0 0
      %1569 = vperm.xlu0 %1568, %v1534
      %v1570 = vpop.permute.xlu0 %1569
      %1573 = vset.pattern.permute.xlu0 0
      %1574 = vperm.xlu0 %1573, %v1535
      %v1575 = vpop.permute.xlu0 %1574
      %1578 = vset.pattern.permute.xlu0 0
      %1579 = vperm.xlu0 %1578, %v1536
      %v1580 = vpop.permute.xlu0 %1579
      %v1583 = vsel %vm1141, %v1519, 0
      %v1586 = vsel %vm1141, %v1520, 0
      %v1589 = vsel %vm1141, %v1521, 0
      %v1592 = vsel %vm1141, %v1522, 0
      %v1595 = vsel %vm1141, %v1523, 0
      %v1598 = vsel %vm1141, %v1524, 0
      %v1601 = vsel %vm1141, %v1525, 0
      %v1604 = vsel %vm1141, %v1526, 0
      %v1607 = vsel %vm1141, %v1527, 0
      %1609 = vmatprep.subr.mxu0 %v950
      %1610 = vmatpush1.msra.mxu0 %v949
      %1611 = vmatprep.subr.mxu0 %v952
      %1612 = vmatpush1.msra.mxu0 %v951
      %1613 = vmatprep.subr.mxu0 %v954
      %1614 = vmatpush1.msra.mxu0 %v953
      %1615 = vmatprep.subr.mxu0 %v956
      %1616 = vmatpush1.msra.mxu0 %v955
      %1617 = vmatprep.subr.mxu0 %v958
      %1618 = vmatpush1.msra.mxu0 %v957
      %1619 = vmatprep.subr.mxu0 %v960
      %1620 = vmatpush1.msra.mxu0 %v959
      %1621 = vmatprep.subr.mxu0 %v962
      %1622 = vmatpush1.msra.mxu0 %v961
      %1623 = vmatprep.subr.mxu0 %v964
      %1624 = vmatpush1.msra.mxu0 %v963
      %1625 = vmatprep.subr.mxu0 %v966
      %1626 = vmatpush1.msra.mxu0 %v965
      %1627 = vmatprep.subr.mxu0 %v968
      %1628 = vmatpush1.msra.mxu0 %v967
      %1629 = vmatprep.subr.mxu0 %v970
      %1630 = vmatpush1.msra.mxu0 %v969
      %1631 = vmatprep.subr.mxu0 %v972
      %1632 = vmatpush1.msra.mxu0 %v971
      %1633 = vmatprep.subr.mxu0 0.0
      %1634 = vmatpush1.msra.mxu0 0.0
      %1635 = vmatprep.subr.mxu0 0.0
      %1636 = vmatpush1.msra.mxu0 0.0
      %1637 = vmatprep.subr.mxu0 0.0
      %1638 = vmatpush1.msra.mxu0 0.0
      %1639 = vmatprep.subr.mxu0 0.0
      %1640 = vmatpush1.msra.mxu0 0.0
      %1641 = vmatprep.subr.mxu0 0.0
      %1642 = vmatpush1.msra.mxu0 0.0
      %1643 = vmatprep.subr.mxu0 0.0
      %1644 = vmatpush1.msra.mxu0 0.0
      %1645 = vmatprep.subr.mxu0 0.0
      %1646 = vmatpush1.msra.mxu0 0.0
      %1647 = vmatprep.subr.mxu0 0.0
      %1648 = vmatpush1.msra.mxu0 0.0
      %1649 = vmatprep.subr.mxu0 0.0
      %1650 = vmatpush1.msra.mxu0 0.0
      %1651 = vmatprep.subr.mxu0 0.0
      %1652 = vmatpush1.msra.mxu0 0.0
      %1653 = vmatprep.subr.mxu0 0.0
      %1654 = vmatpush1.msra.mxu0 0.0
      %1655 = vmatprep.subr.mxu0 0.0
      %1656 = vmatpush1.msra.mxu0 0.0
      %1657 = vmatprep.subr.mxu0 0.0
      %1658 = vmatpush1.msra.mxu0 0.0
      %1659 = vmatprep.subr.mxu0 0.0
      %1660 = vmatpush1.msra.mxu0 0.0
      %1661 = vmatprep.subr.mxu0 0.0
      %1662 = vmatpush1.msra.mxu0 0.0
      %1663 = vmatprep.subr.mxu0 0.0
      %1664 = vmatpush1.msra.mxu0 0.0
      %1665 = vmatprep.subr.mxu0 0.0
      %1666 = vmatpush1.msra.mxu0 0.0
      %1667 = vmatprep.subr.mxu0 0.0
      %1668 = vmatpush1.msra.mxu0 0.0
      %1669 = vmatprep.subr.mxu0 0.0
      %1670 = vmatpush1.msra.mxu0 0.0
      %1671 = vmatprep.subr.mxu0 0.0
      %1672 = vmatpush1.msra.mxu0 0.0
      %1673 = vmatprep.mubr.f32.mxu0 0.0
      %1674 = vmatmul.mubr.f32.gmra.mrb[0].mxu0 %v1583
      %v1675 = vpop.f32.mrb[0].mxu0
      %v1676 = vadd.f32 %v1540, %v1675
      %v1677 = vpop.f32.mrb[0].mxu0
      %v1678 = vadd.f32 %v1540, %v1677
      %1679 = vmatprep.mubr.f32.mxu0 0.0
      %1680 = vmatmul.mubr.f32.gmra.mrb[0].mxu0 %v1586
      %v1681 = vpop.f32.mrb[0].mxu0
      %v1682 = vadd.f32 %v1545, %v1681
      %v1683 = vpop.f32.mrb[0].mxu0
      %v1684 = vadd.f32 %v1545, %v1683
      %1685 = vmatprep.mubr.f32.mxu0 0.0
      %1686 = vmatmul.mubr.f32.gmra.mrb[0].mxu0 %v1589
      %v1687 = vpop.f32.mrb[0].mxu0
      %v1688 = vadd.f32 %v1550, %v1687
      %v1689 = vpop.f32.mrb[0].mxu0
      %v1690 = vadd.f32 %v1550, %v1689
      %1691 = vmatprep.mubr.f32.mxu0 0.0
      %1692 = vmatmul.mubr.f32.gmra.mrb[0].mxu0 %v1592
      %v1693 = vpop.f32.mrb[0].mxu0
      %v1694 = vadd.f32 %v1555, %v1693
      %v1695 = vpop.f32.mrb[0].mxu0
      %v1696 = vadd.f32 %v1555, %v1695
      %1697 = vmatprep.mubr.f32.mxu0 0.0
      %1698 = vmatmul.mubr.f32.gmra.mrb[0].mxu0 %v1595
      %v1699 = vpop.f32.mrb[0].mxu0
      %v1700 = vadd.f32 %v1560, %v1699
      %v1701 = vpop.f32.mrb[0].mxu0
      %v1702 = vadd.f32 %v1560, %v1701
      %1703 = vmatprep.mubr.f32.mxu0 0.0
      %1704 = vmatmul.mubr.f32.gmra.mrb[0].mxu0 %v1598
      %v1705 = vpop.f32.mrb[0].mxu0
      %v1706 = vadd.f32 %v1565, %v1705
      %v1707 = vpop.f32.mrb[0].mxu0
      %v1708 = vadd.f32 %v1565, %v1707
      %1709 = vmatprep.mubr.f32.mxu0 0.0
      %1710 = vmatmul.mubr.f32.gmra.mrb[0].mxu0 %v1601
      %v1711 = vpop.f32.mrb[0].mxu0
      %v1712 = vadd.f32 %v1570, %v1711
      %v1713 = vpop.f32.mrb[0].mxu0
      %v1714 = vadd.f32 %v1570, %v1713
      %1715 = vmatprep.mubr.f32.mxu0 0.0
      %1716 = vmatmul.mubr.f32.gmra.mrb[0].mxu0 %v1604
      %v1717 = vpop.f32.mrb[0].mxu0
      %v1718 = vadd.f32 %v1575, %v1717
      %v1719 = vpop.f32.mrb[0].mxu0
      %v1720 = vadd.f32 %v1575, %v1719
      %1721 = vmatprep.mubr.f32.mxu0 0.0
      %1722 = vmatmul.mubr.f32.gmra.mrb[0].mxu0 %v1607
      %v1723 = vpop.f32.mrb[0].mxu0
      %v1724 = vadd.f32 %v1580, %v1723
      %v1725 = vpop.f32.mrb[0].mxu0
      %v1726 = vadd.f32 %v1580, %v1725
      %1727 = vdwg.mxu0
      %v1728 = vmax.f32 %v1676, 0.0
      %v1729 = vmax.f32 %v1678, 0.0
      %v1730 = vmax.f32 %v1682, 0.0
      %v1731 = vmax.f32 %v1684, 0.0
      %v1732 = vmax.f32 %v1688, 0.0
      %v1733 = vmax.f32 %v1690, 0.0
      %v1734 = vmax.f32 %v1694, 0.0
      %v1735 = vmax.f32 %v1696, 0.0
      %v1736 = vmax.f32 %v1700, 0.0
      %v1737 = vmax.f32 %v1702, 0.0
      %v1738 = vmax.f32 %v1706, 0.0
      %v1739 = vmax.f32 %v1708, 0.0
      %v1740 = vmax.f32 %v1712, 0.0
      %v1741 = vmax.f32 %v1714, 0.0
      %v1742 = vmax.f32 %v1718, 0.0
      %v1743 = vmax.f32 %v1720, 0.0
      %v1744 = vmax.f32 %v1724, 0.0
      %v1745 = vmax.f32 %v1726, 0.0
      %v1746 = vld [vmem:[%s6] sm:$0xff]
      %v1747 = vld [vmem:[%s6 + $0x8] sm:$0xff]
      %v1748 = vld [vmem:[%s6 + $0x10] sm:$0xff]
      %v1749 = vld [vmem:[%s6 + $0x18] sm:$0xff]
      %v1750 = vld [vmem:[%s6 + $0x20] sm:$0xff]
      %v1751 = vld [vmem:[%s6 + $0x28] sm:$0xff]
      %v1752 = vld [vmem:[%s7] sm:$0xff]
      %v1753 = vld [vmem:[%s7 + $0x8] sm:$0xff]
      %v1754 = vld [vmem:[%s7 + $0x10] sm:$0xff]
      %v1755 = vld [vmem:[%s7 + $0x18] sm:$0xff]
      %v1756 = vld [vmem:[%s7 + $0x20] sm:$0xff]
      %v1757 = vld [vmem:[%s7 + $0x28] sm:$0xff]
      %1759 = vset.pattern.permute.xlu0 0
      %1760 = vperm.xlu0 %1759, %v1752
      %v1761 = vpop.permute.xlu0 %1760
      %1764 = vset.pattern.permute.xlu0 0
      %1765 = vperm.xlu0 %1764, %v1753
      %v1766 = vpop.permute.xlu0 %1765
      %1769 = vset.pattern.permute.xlu0 0
      %1770 = vperm.xlu0 %1769, %v1754
      %v1771 = vpop.permute.xlu0 %1770
      %1774 = vset.pattern.permute.xlu0 0
      %1775 = vperm.xlu0 %1774, %v1755
      %v1776 = vpop.permute.xlu0 %1775
      %1779 = vset.pattern.permute.xlu0 0
      %1780 = vperm.xlu0 %1779, %v1756
      %v1781 = vpop.permute.xlu0 %1780
      %1784 = vset.pattern.permute.xlu0 0
      %1785 = vperm.xlu0 %1784, %v1757
      %v1786 = vpop.permute.xlu0 %1785
      %vm1788 = vcmask 588800
      %v1790 = vsel %vm1788, %v1746, 0
      %v1793 = vsel %vm1788, %v1747, 0
      %v1796 = vsel %vm1788, %v1748, 0
      %v1799 = vsel %vm1788, %v1749, 0
      %v1802 = vsel %vm1788, %v1750, 0
      %v1805 = vsel %vm1788, %v1751, 0
      %1807 = vmatprep.subr.mxu0 %v1729
      %1808 = vmatpush1.msra.mxu0 %v1728
      %1809 = vmatprep.subr.mxu0 %v1731
      %1810 = vmatpush1.msra.mxu0 %v1730
      %1811 = vmatprep.subr.mxu0 %v1733
      %1812 = vmatpush1.msra.mxu0 %v1732
      %1813 = vmatprep.subr.mxu0 %v1735
      %1814 = vmatpush1.msra.mxu0 %v1734
      %1815 = vmatprep.subr.mxu0 %v1737
      %1816 = vmatpush1.msra.mxu0 %v1736
      %1817 = vmatprep.subr.mxu0 %v1739
      %1818 = vmatpush1.msra.mxu0 %v1738
      %1819 = vmatprep.subr.mxu0 %v1741
      %1820 = vmatpush1.msra.mxu0 %v1740
      %1821 = vmatprep.subr.mxu0 %v1743
      %1822 = vmatpush1.msra.mxu0 %v1742
      %1823 = vmatprep.subr.mxu0 %v1745
      %1824 = vmatpush1.msra.mxu0 %v1744
      %1825 = vmatprep.subr.mxu0 0.0
      %1826 = vmatpush1.msra.mxu0 0.0
      %1827 = vmatprep.subr.mxu0 0.0
      %1828 = vmatpush1.msra.mxu0 0.0
      %1829 = vmatprep.subr.mxu0 0.0
      %1830 = vmatpush1.msra.mxu0 0.0
      %1831 = vmatprep.subr.mxu0 0.0
      %1832 = vmatpush1.msra.mxu0 0.0
      %1833 = vmatprep.subr.mxu0 0.0
      %1834 = vmatpush1.msra.mxu0 0.0
      %1835 = vmatprep.subr.mxu0 0.0
      %1836 = vmatpush1.msra.mxu0 0.0
      %1837 = vmatprep.subr.mxu0 0.0
      %1838 = vmatpush1.msra.mxu0 0.0
      %1839 = vmatprep.subr.mxu0 0.0
      %1840 = vmatpush1.msra.mxu0 0.0
      %1841 = vmatprep.subr.mxu0 0.0
      %1842 = vmatpush1.msra.mxu0 0.0
      %1843 = vmatprep.subr.mxu0 0.0
      %1844 = vmatpush1.msra.mxu0 0.0
      %1845 = vmatprep.subr.mxu0 0.0
      %1846 = vmatpush1.msra.mxu0 0.0
      %1847 = vmatprep.subr.mxu0 0.0
      %1848 = vmatpush1.msra.mxu0 0.0
      %1849 = vmatprep.subr.mxu0 0.0
      %1850 = vmatpush1.msra.mxu0 0.0
      %1851 = vmatprep.subr.mxu0 0.0
      %1852 = vmatpush1.msra.mxu0 0.0
      %1853 = vmatprep.subr.mxu0 0.0
      %1854 = vmatpush1.msra.mxu0 0.0
      %1855 = vmatprep.subr.mxu0 0.0
      %1856 = vmatpush1.msra.mxu0 0.0
      %1857 = vmatprep.subr.mxu0 0.0
      %1858 = vmatpush1.msra.mxu0 0.0
      %1859 = vmatprep.subr.mxu0 0.0
      %1860 = vmatpush1.msra.mxu0 0.0
      %1861 = vmatprep.subr.mxu0 0.0
      %1862 = vmatpush1.msra.mxu0 0.0
      %1863 = vmatprep.subr.mxu0 0.0
      %1864 = vmatpush1.msra.mxu0 0.0
      %1865 = vmatprep.subr.mxu0 0.0
      %1866 = vmatpush1.msra.mxu0 0.0
      %1867 = vmatprep.subr.mxu0 0.0
      %1868 = vmatpush1.msra.mxu0 0.0
      %1869 = vmatprep.subr.mxu0 0.0
      %1870 = vmatpush1.msra.mxu0 0.0
      %1871 = vmatprep.mubr.f32.mxu0 0.0
      %1872 = vmatmul.mubr.f32.gmra.mrb[0].mxu0 %v1790
      %v1873 = vpop.f32.mrb[0].mxu0
      %v1874 = vadd.f32 %v1761, %v1873
      %v1875 = vpop.f32.mrb[0].mxu0
      %v1876 = vadd.f32 %v1761, %v1875
      %1877 = vmatprep.mubr.f32.mxu0 0.0
      %1878 = vmatmul.mubr.f32.gmra.mrb[0].mxu0 %v1793
      %v1879 = vpop.f32.mrb[0].mxu0
      %v1880 = vadd.f32 %v1766, %v1879
      %v1881 = vpop.f32.mrb[0].mxu0
      %v1882 = vadd.f32 %v1766, %v1881
      %1883 = vmatprep.mubr.f32.mxu0 0.0
      %1884 = vmatmul.mubr.f32.gmra.mrb[0].mxu0 %v1796
      %v1885 = vpop.f32.mrb[0].mxu0
      %v1886 = vadd.f32 %v1771, %v1885
      %v1887 = vpop.f32.mrb[0].mxu0
      %v1888 = vadd.f32 %v1771, %v1887
      %1889 = vmatprep.mubr.f32.mxu0 0.0
      %1890 = vmatmul.mubr.f32.gmra.mrb[0].mxu0 %v1799
      %v1891 = vpop.f32.mrb[0].mxu0
      %v1892 = vadd.f32 %v1776, %v1891
      %v1893 = vpop.f32.mrb[0].mxu0
      %v1894 = vadd.f32 %v1776, %v1893
      %1895 = vmatprep.mubr.f32.mxu0 0.0
      %1896 = vmatmul.mubr.f32.gmra.mrb[0].mxu0 %v1802
      %v1897 = vpop.f32.mrb[0].mxu0
      %v1898 = vadd.f32 %v1781, %v1897
      %v1899 = vpop.f32.mrb[0].mxu0
      %v1900 = vadd.f32 %v1781, %v1899
      %1901 = vmatprep.mubr.f32.mxu0 0.0
      %1902 = vmatmul.mubr.f32.gmra.mrb[0].mxu0 %v1805
      %v1903 = vpop.f32.mrb[0].mxu0
      %v1904 = vadd.f32 %v1786, %v1903
      %v1905 = vpop.f32.mrb[0].mxu0
      %v1906 = vadd.f32 %v1786, %v1905
      %1907 = vdwg.mxu0
      %v1908 = vmax.f32 %v1874, 0.0
      %v1909 = vmax.f32 %v1876, 0.0
      %v1910 = vmax.f32 %v1880, 0.0
      %v1911 = vmax.f32 %v1882, 0.0
      %v1912 = vmax.f32 %v1886, 0.0
      %v1913 = vmax.f32 %v1888, 0.0
      %v1914 = vmax.f32 %v1892, 0.0
      %v1915 = vmax.f32 %v1894, 0.0
      %v1916 = vmax.f32 %v1898, 0.0
      %v1917 = vmax.f32 %v1900, 0.0
      %v1918 = vmax.f32 %v1904, 0.0
      %v1919 = vmax.f32 %v1906, 0.0
      %v1920 = vld [vmem:[%s8] sm:$0xff]
      %v1921 = vld [vmem:[%s8 + $0x8] sm:$0xff]
      %v1922 = vld [vmem:[%s8 + $0x10] sm:$0xff]
      %v1923 = vld [vmem:[%s8 + $0x18] sm:$0xff]
      %v1924 = vld [vmem:[%s8 + $0x20] sm:$0xff]
      %v1925 = vld [vmem:[%s8 + $0x28] sm:$0xff]
      %1927 = vset.pattern.permute.xlu0 0
      %1928 = vperm.xlu0 %1927, %v1920
      %v1929 = vpop.permute.xlu0 %1928
      %1932 = vset.pattern.permute.xlu0 0
      %1933 = vperm.xlu0 %1932, %v1921
      %v1934 = vpop.permute.xlu0 %1933
      %1937 = vset.pattern.permute.xlu0 0
      %1938 = vperm.xlu0 %1937, %v1922
      %v1939 = vpop.permute.xlu0 %1938
      %1942 = vset.pattern.permute.xlu0 0
      %1943 = vperm.xlu0 %1942, %v1923
      %v1944 = vpop.permute.xlu0 %1943
      %1947 = vset.pattern.permute.xlu0 0
      %1948 = vperm.xlu0 %1947, %v1924
      %v1949 = vpop.permute.xlu0 %1948
      %1952 = vset.pattern.permute.xlu0 0
      %1953 = vperm.xlu0 %1952, %v1925
      %v1954 = vpop.permute.xlu0 %1953
      %v1956 = vmul.f32 %v1908, %v1929
      %v1957 = vmul.f32 %v1909, %v1929
      %v1958 = vmul.f32 %v1910, %v1934
      %v1959 = vmul.f32 %v1911, %v1934
      %v1960 = vmul.f32 %v1912, %v1939
      %v1961 = vmul.f32 %v1913, %v1939
      %v1962 = vmul.f32 %v1914, %v1944
      %v1963 = vmul.f32 %v1915, %v1944
      %v1964 = vmul.f32 %v1916, %v1949
      %v1965 = vmul.f32 %v1917, %v1949
      %v1966 = vmul.f32 %v1918, %v1954
      %v1967 = vmul.f32 %v1919, %v1954
      %v1968 = vld [vmem:[%s9] sm:$0xff]
      %v1969 = vld [vmem:[%s9 + $0x8] sm:$0xff]
      %v1970 = vld [vmem:[%s9 + $0x10] sm:$0xff]
      %v1971 = vld [vmem:[%s9 + $0x18] sm:$0xff]
      %v1972 = vld [vmem:[%s9 + $0x20] sm:$0xff]
      %v1973 = vld [vmem:[%s9 + $0x28] sm:$0xff]
      %1975 = vset.pattern.permute.xlu0 0
      %1976 = vperm.xlu0 %1975, %v1968
      %v1977 = vpop.permute.xlu0 %1976
      %1980 = vset.pattern.permute.xlu0 0
      %1981 = vperm.xlu0 %1980, %v1969
      %v1982 = vpop.permute.xlu0 %1981
      %1985 = vset.pattern.permute.xlu0 0
      %1986 = vperm.xlu0 %1985, %v1970
      %v1987 = vpop.permute.xlu0 %1986
      %1990 = vset.pattern.permute.xlu0 0
      %1991 = vperm.xlu0 %1990, %v1971
      %v1992 = vpop.permute.xlu0 %1991
      %1995 = vset.pattern.permute.xlu0 0
      %1996 = vperm.xlu0 %1995, %v1972
      %v1997 = vpop.permute.xlu0 %1996
      %2000 = vset.pattern.permute.xlu0 0
      %2001 = vperm.xlu0 %2000, %v1973
      %v2002 = vpop.permute.xlu0 %2001
      %v2004 = vadd.f32 %v1956, %v1977
      %v2005 = vadd.f32 %v1957, %v1977
      %v2006 = vadd.f32 %v1958, %v1982
      %v2007 = vadd.f32 %v1959, %v1982
      %v2008 = vadd.f32 %v1960, %v1987
      %v2009 = vadd.f32 %v1961, %v1987
      %v2010 = vadd.f32 %v1962, %v1992
      %v2011 = vadd.f32 %v1963, %v1992
      %v2012 = vadd.f32 %v1964, %v1997
      %v2013 = vadd.f32 %v1965, %v1997
      %v2014 = vadd.f32 %v1966, %v2002
      %v2015 = vadd.f32 %v1967, %v2002
      %v2016 = vmax.f32 %v2004, 0.0
      %v2017 = vmax.f32 %v2005, 0.0
      %v2018 = vmax.f32 %v2006, 0.0
      %v2019 = vmax.f32 %v2007, 0.0
      %v2020 = vmax.f32 %v2008, 0.0
      %v2021 = vmax.f32 %v2009, 0.0
      %v2022 = vmax.f32 %v2010, 0.0
      %v2023 = vmax.f32 %v2011, 0.0
      %v2024 = vmax.f32 %v2012, 0.0
      %v2025 = vmax.f32 %v2013, 0.0
      %v2026 = vmax.f32 %v2014, 0.0
      %v2027 = vmax.f32 %v2015, 0.0
      %v2028 = vld [vmem:[%s830] sm:$0x1f]
      %v2029 = vld [vmem:[%s830 + $0x8] sm:$0x1f]
      %v2030 = vld [vmem:[%s10] sm:$0xff]
      %v2031 = vld [vmem:[%s10 + $0x8] sm:$0xff]
      %v2032 = vld [vmem:[%s10 + $0x10] sm:$0xff]
      %v2033 = vld [vmem:[%s10 + $0x18] sm:$0xff]
      %v2034 = vld [vmem:[%s11] sm:$0xff]
      %v2035 = vld [vmem:[%s11 + $0x8] sm:$0xff]
      %v2036 = vld [vmem:[%s11 + $0x10] sm:$0xff]
      %v2037 = vld [vmem:[%s11 + $0x18] sm:$0xff]
      %vm2038 = vcmask 392192
      %v2040 = vsel %vm2038, %v2034, 0
      %v2043 = vsel %vm2038, %v2035, 0
      %v2046 = vsel %vm2038, %v2036, 0
      %v2049 = vsel %vm2038, %v2037, 0
      %2051 = vmatprep.subr.mxu0 %v2017
      %2052 = vmatpush1.msra.mxu0 %v2016
      %2053 = vmatprep.subr.mxu0 %v2019
      %2054 = vmatpush1.msra.mxu0 %v2018
      %2055 = vmatprep.subr.mxu0 %v2021
      %2056 = vmatpush1.msra.mxu0 %v2020
      %2057 = vmatprep.subr.mxu0 %v2023
      %2058 = vmatpush1.msra.mxu0 %v2022
      %2059 = vmatprep.subr.mxu0 %v2025
      %2060 = vmatpush1.msra.mxu0 %v2024
      %2061 = vmatprep.subr.mxu0 %v2027
      %2062 = vmatpush1.msra.mxu0 %v2026
      %2063 = vmatprep.subr.mxu0 0.0
      %2064 = vmatpush1.msra.mxu0 0.0
      %2065 = vmatprep.subr.mxu0 0.0
      %2066 = vmatpush1.msra.mxu0 0.0
      %2067 = vmatprep.subr.mxu0 0.0
      %2068 = vmatpush1.msra.mxu0 0.0
      %2069 = vmatprep.subr.mxu0 0.0
      %2070 = vmatpush1.msra.mxu0 0.0
      %2071 = vmatprep.subr.mxu0 0.0
      %2072 = vmatpush1.msra.mxu0 0.0
      %2073 = vmatprep.subr.mxu0 0.0
      %2074 = vmatpush1.msra.mxu0 0.0
      %2075 = vmatprep.subr.mxu0 0.0
      %2076 = vmatpush1.msra.mxu0 0.0
      %2077 = vmatprep.subr.mxu0 0.0
      %2078 = vmatpush1.msra.mxu0 0.0
      %2079 = vmatprep.subr.mxu0 0.0
      %2080 = vmatpush1.msra.mxu0 0.0
      %2081 = vmatprep.subr.mxu0 0.0
      %2082 = vmatpush1.msra.mxu0 0.0
      %2083 = vmatprep.subr.mxu0 0.0
      %2084 = vmatpush1.msra.mxu0 0.0
      %2085 = vmatprep.subr.mxu0 0.0
      %2086 = vmatpush1.msra.mxu0 0.0
      %2087 = vmatprep.subr.mxu0 0.0
      %2088 = vmatpush1.msra.mxu0 0.0
      %2089 = vmatprep.subr.mxu0 0.0
      %2090 = vmatpush1.msra.mxu0 0.0
      %2091 = vmatprep.subr.mxu0 0.0
      %2092 = vmatpush1.msra.mxu0 0.0
      %2093 = vmatprep.subr.mxu0 0.0
      %2094 = vmatpush1.msra.mxu0 0.0
      %2095 = vmatprep.subr.mxu0 0.0
      %2096 = vmatpush1.msra.mxu0 0.0
      %2097 = vmatprep.subr.mxu0 0.0
      %2098 = vmatpush1.msra.mxu0 0.0
      %2099 = vmatprep.subr.mxu0 0.0
      %2100 = vmatpush1.msra.mxu0 0.0
      %2101 = vmatprep.subr.mxu0 0.0
      %2102 = vmatpush1.msra.mxu0 0.0
      %2103 = vmatprep.subr.mxu0 0.0
      %2104 = vmatpush1.msra.mxu0 0.0
      %2105 = vmatprep.subr.mxu0 0.0
      %2106 = vmatpush1.msra.mxu0 0.0
      %2107 = vmatprep.subr.mxu0 0.0
      %2108 = vmatpush1.msra.mxu0 0.0
      %2109 = vmatprep.subr.mxu0 0.0
      %2110 = vmatpush1.msra.mxu0 0.0
      %2111 = vmatprep.subr.mxu0 0.0
      %2112 = vmatpush1.msra.mxu0 0.0
      %2113 = vmatprep.subr.mxu0 0.0
      %2114 = vmatpush1.msra.mxu0 0.0
      %2115 = vmatprep.mubr.f32.mxu0 0.0
      %2116 = vmatmul.mubr.f32.gmra.mrb[0].mxu0 %v2040
      %v2117 = vpop.f32.mrb[0].mxu0
      %v2118 = vadd.f32 0.0, %v2117
      %v2119 = vpop.f32.mrb[0].mxu0
      %v2120 = vadd.f32 0.0, %v2119
      %2121 = vmatprep.mubr.f32.mxu0 0.0
      %2122 = vmatmul.mubr.f32.gmra.mrb[0].mxu0 %v2043
      %v2123 = vpop.f32.mrb[0].mxu0
      %v2124 = vadd.f32 0.0, %v2123
      %v2125 = vpop.f32.mrb[0].mxu0
      %v2126 = vadd.f32 0.0, %v2125
      %2127 = vmatprep.mubr.f32.mxu0 0.0
      %2128 = vmatmul.mubr.f32.gmra.mrb[0].mxu0 %v2046
      %v2129 = vpop.f32.mrb[0].mxu0
      %v2130 = vadd.f32 0.0, %v2129
      %v2131 = vpop.f32.mrb[0].mxu0
      %v2132 = vadd.f32 0.0, %v2131
      %2133 = vmatprep.mubr.f32.mxu0 0.0
      %2134 = vmatmul.mubr.f32.gmra.mrb[0].mxu0 %v2049
      %v2135 = vpop.f32.mrb[0].mxu0
      %v2136 = vadd.f32 0.0, %v2135
      %v2137 = vpop.f32.mrb[0].mxu0
      %v2138 = vadd.f32 0.0, %v2137
      %2139 = vdwg.mxu0
      %vm2140 = vcmask 39936
      %v2142 = vsel %vm2140, %v2030, 0
      %v2145 = vsel %vm2140, %v2031, 0
      %v2148 = vsel %vm2140, %v2032, 0
      %v2151 = vsel %vm2140, %v2033, 0
      %vm2153 = vcmask 1044480
      %v2155 = vsel %vm2153, %v2028, 0
      %v2158 = vsel %vm2153, %v2029, 0
      %2160 = vmatprep.subr.mxu0 %v2158
      %2161 = vmatpush1.msra.mxu0 %v2155
      %2162 = vmatprep.subr.mxu0 0.0
      %2163 = vmatpush1.msra.mxu0 0.0
      %2164 = vmatprep.subr.mxu0 0.0
      %2165 = vmatpush1.msra.mxu0 0.0
      %2166 = vmatprep.subr.mxu0 0.0
      %2167 = vmatpush1.msra.mxu0 0.0
      %2168 = vmatprep.subr.mxu0 0.0
      %2169 = vmatpush1.msra.mxu0 0.0
      %2170 = vmatprep.subr.mxu0 0.0
      %2171 = vmatpush1.msra.mxu0 0.0
      %2172 = vmatprep.subr.mxu0 0.0
      %2173 = vmatpush1.msra.mxu0 0.0
      %2174 = vmatprep.subr.mxu0 0.0
      %2175 = vmatpush1.msra.mxu0 0.0
      %2176 = vmatprep.subr.mxu0 0.0
      %2177 = vmatpush1.msra.mxu0 0.0
      %2178 = vmatprep.subr.mxu0 0.0
      %2179 = vmatpush1.msra.mxu0 0.0
      %2180 = vmatprep.subr.mxu0 0.0
      %2181 = vmatpush1.msra.mxu0 0.0
      %2182 = vmatprep.subr.mxu0 0.0
      %2183 = vmatpush1.msra.mxu0 0.0
      %2184 = vmatprep.subr.mxu0 0.0
      %2185 = vmatpush1.msra.mxu0 0.0
      %2186 = vmatprep.subr.mxu0 0.0
      %2187 = vmatpush1.msra.mxu0 0.0
      %2188 = vmatprep.subr.mxu0 0.0
      %2189 = vmatpush1.msra.mxu0 0.0
      %2190 = vmatprep.subr.mxu0 0.0
      %2191 = vmatpush1.msra.mxu0 0.0
      %2192 = vmatprep.subr.mxu0 0.0
      %2193 = vmatpush1.msra.mxu0 0.0
      %2194 = vmatprep.subr.mxu0 0.0
      %2195 = vmatpush1.msra.mxu0 0.0
      %2196 = vmatprep.subr.mxu0 0.0
      %2197 = vmatpush1.msra.mxu0 0.0
      %2198 = vmatprep.subr.mxu0 0.0
      %2199 = vmatpush1.msra.mxu0 0.0
      %2200 = vmatprep.subr.mxu0 0.0
      %2201 = vmatpush1.msra.mxu0 0.0
      %2202 = vmatprep.subr.mxu0 0.0
      %2203 = vmatpush1.msra.mxu0 0.0
      %2204 = vmatprep.subr.mxu0 0.0
      %2205 = vmatpush1.msra.mxu0 0.0
      %2206 = vmatprep.subr.mxu0 0.0
      %2207 = vmatpush1.msra.mxu0 0.0
      %2208 = vmatprep.subr.mxu0 0.0
      %2209 = vmatpush1.msra.mxu0 0.0
      %2210 = vmatprep.subr.mxu0 0.0
      %2211 = vmatpush1.msra.mxu0 0.0
      %2212 = vmatprep.subr.mxu0 0.0
      %2213 = vmatpush1.msra.mxu0 0.0
      %2214 = vmatprep.subr.mxu0 0.0
      %2215 = vmatpush1.msra.mxu0 0.0
      %2216 = vmatprep.subr.mxu0 0.0
      %2217 = vmatpush1.msra.mxu0 0.0
      %2218 = vmatprep.subr.mxu0 0.0
      %2219 = vmatpush1.msra.mxu0 0.0
      %2220 = vmatprep.subr.mxu0 0.0
      %2221 = vmatpush1.msra.mxu0 0.0
      %2222 = vmatprep.subr.mxu0 0.0
      %2223 = vmatpush1.msra.mxu0 0.0
      %2224 = vmatprep.mubr.f32.mxu0 0.0
      %2225 = vmatmul.mubr.f32.gmra.mrb[0].mxu0 %v2142
      %v2226 = vpop.f32.mrb[0].mxu0
      %v2227 = vadd.f32 %v2118, %v2226
      %v2228 = vpop.f32.mrb[0].mxu0
      %v2229 = vadd.f32 %v2120, %v2228
      %2230 = vmatprep.mubr.f32.mxu0 0.0
      %2231 = vmatmul.mubr.f32.gmra.mrb[0].mxu0 %v2145
      %v2232 = vpop.f32.mrb[0].mxu0
      %v2233 = vadd.f32 %v2124, %v2232
      %v2234 = vpop.f32.mrb[0].mxu0
      %v2235 = vadd.f32 %v2126, %v2234
      %2236 = vmatprep.mubr.f32.mxu0 0.0
      %2237 = vmatmul.mubr.f32.gmra.mrb[0].mxu0 %v2148
      %v2238 = vpop.f32.mrb[0].mxu0
      %v2239 = vadd.f32 %v2130, %v2238
      %v2240 = vpop.f32.mrb[0].mxu0
      %v2241 = vadd.f32 %v2132, %v2240
      %2242 = vmatprep.mubr.f32.mxu0 0.0
      %2243 = vmatmul.mubr.f32.gmra.mrb[0].mxu0 %v2151
      %v2244 = vpop.f32.mrb[0].mxu0
      %v2245 = vadd.f32 %v2136, %v2244
      %v2246 = vpop.f32.mrb[0].mxu0
      %v2247 = vadd.f32 %v2138, %v2246
      %2248 = vdwg.mxu0
      %v2249 = vld [vmem:[%s12] sm:$0xff]
      %v2250 = vld [vmem:[%s12 + $0x8] sm:$0xff]
      %v2251 = vld [vmem:[%s12 + $0x10] sm:$0xff]
      %v2252 = vld [vmem:[%s12 + $0x18] sm:$0xff]
      %2254 = vset.pattern.permute.xlu0 0
      %2255 = vperm.xlu0 %2254, %v2249
      %v2256 = vpop.permute.xlu0 %2255
      %2259 = vset.pattern.permute.xlu0 0
      %2260 = vperm.xlu0 %2259, %v2250
      %v2261 = vpop.permute.xlu0 %2260
      %2264 = vset.pattern.permute.xlu0 0
      %2265 = vperm.xlu0 %2264, %v2251
      %v2266 = vpop.permute.xlu0 %2265
      %2269 = vset.pattern.permute.xlu0 0
      %2270 = vperm.xlu0 %2269, %v2252
      %v2271 = vpop.permute.xlu0 %2270
      %v2273 = vadd.f32 %v2227, %v2256
      %v2274 = vadd.f32 %v2229, %v2256
      %v2275 = vadd.f32 %v2233, %v2261
      %v2276 = vadd.f32 %v2235, %v2261
      %v2277 = vadd.f32 %v2239, %v2266
      %v2278 = vadd.f32 %v2241, %v2266
      %v2279 = vadd.f32 %v2245, %v2271
      %v2280 = vadd.f32 %v2247, %v2271
      %v2281 = vmax.f32 %v2273, 0.0
      %v2282 = vmax.f32 %v2274, 0.0
      %v2283 = vmax.f32 %v2275, 0.0
      %v2284 = vmax.f32 %v2276, 0.0
      %v2285 = vmax.f32 %v2277, 0.0
      %v2286 = vmax.f32 %v2278, 0.0
      %v2287 = vmax.f32 %v2279, 0.0
      %v2288 = vmax.f32 %v2280, 0.0
      %v2289 = vld [vmem:[%s13] sm:$0xff]
      %v2290 = vld [vmem:[%s13 + $0x8] sm:$0xff]
      %v2291 = vld [vmem:[%s14] sm:$0xff]
      %v2292 = vld [vmem:[%s14 + $0x8] sm:$0xff]
      %2294 = vset.pattern.permute.xlu0 0
      %2295 = vperm.xlu0 %2294, %v2291
      %v2296 = vpop.permute.xlu0 %2295
      %2299 = vset.pattern.permute.xlu0 0
      %2300 = vperm.xlu0 %2299, %v2292
      %v2301 = vpop.permute.xlu0 %2300
      %vm2303 = vcmask 261120
      %v2305 = vsel %vm2303, %v2289, 0
      %v2308 = vsel %vm2303, %v2290, 0
      %2310 = vmatprep.subr.mxu0 %v2282
      %2311 = vmatpush1.msra.mxu0 %v2281
      %2312 = vmatprep.subr.mxu0 %v2284
      %2313 = vmatpush1.msra.mxu0 %v2283
      %2314 = vmatprep.subr.mxu0 %v2286
      %2315 = vmatpush1.msra.mxu0 %v2285
      %2316 = vmatprep.subr.mxu0 %v2288
      %2317 = vmatpush1.msra.mxu0 %v2287
      %2318 = vmatprep.subr.mxu0 0.0
      %2319 = vmatpush1.msra.mxu0 0.0
      %2320 = vmatprep.subr.mxu0 0.0
      %2321 = vmatpush1.msra.mxu0 0.0
      %2322 = vmatprep.subr.mxu0 0.0
      %2323 = vmatpush1.msra.mxu0 0.0
      %2324 = vmatprep.subr.mxu0 0.0
      %2325 = vmatpush1.msra.mxu0 0.0
      %2326 = vmatprep.subr.mxu0 0.0
      %2327 = vmatpush1.msra.mxu0 0.0
      %2328 = vmatprep.subr.mxu0 0.0
      %2329 = vmatpush1.msra.mxu0 0.0
      %2330 = vmatprep.subr.mxu0 0.0
      %2331 = vmatpush1.msra.mxu0 0.0
      %2332 = vmatprep.subr.mxu0 0.0
      %2333 = vmatpush1.msra.mxu0 0.0
      %2334 = vmatprep.subr.mxu0 0.0
      %2335 = vmatpush1.msra.mxu0 0.0
      %2336 = vmatprep.subr.mxu0 0.0
      %2337 = vmatpush1.msra.mxu0 0.0
      %2338 = vmatprep.subr.mxu0 0.0
      %2339 = vmatpush1.msra.mxu0 0.0
      %2340 = vmatprep.subr.mxu0 0.0
      %2341 = vmatpush1.msra.mxu0 0.0
      %2342 = vmatprep.subr.mxu0 0.0
      %2343 = vmatpush1.msra.mxu0 0.0
      %2344 = vmatprep.subr.mxu0 0.0
      %2345 = vmatpush1.msra.mxu0 0.0
      %2346 = vmatprep.subr.mxu0 0.0
      %2347 = vmatpush1.msra.mxu0 0.0
      %2348 = vmatprep.subr.mxu0 0.0
      %2349 = vmatpush1.msra.mxu0 0.0
      %2350 = vmatprep.subr.mxu0 0.0
      %2351 = vmatpush1.msra.mxu0 0.0
      %2352 = vmatprep.subr.mxu0 0.0
      %2353 = vmatpush1.msra.mxu0 0.0
      %2354 = vmatprep.subr.mxu0 0.0
      %2355 = vmatpush1.msra.mxu0 0.0
      %2356 = vmatprep.subr.mxu0 0.0
      %2357 = vmatpush1.msra.mxu0 0.0
      %2358 = vmatprep.subr.mxu0 0.0
      %2359 = vmatpush1.msra.mxu0 0.0
      %2360 = vmatprep.subr.mxu0 0.0
      %2361 = vmatpush1.msra.mxu0 0.0
      %2362 = vmatprep.subr.mxu0 0.0
      %2363 = vmatpush1.msra.mxu0 0.0
      %2364 = vmatprep.subr.mxu0 0.0
      %2365 = vmatpush1.msra.mxu0 0.0
      %2366 = vmatprep.subr.mxu0 0.0
      %2367 = vmatpush1.msra.mxu0 0.0
      %2368 = vmatprep.subr.mxu0 0.0
      %2369 = vmatpush1.msra.mxu0 0.0
      %2370 = vmatprep.subr.mxu0 0.0
      %2371 = vmatpush1.msra.mxu0 0.0
      %2372 = vmatprep.subr.mxu0 0.0
      %2373 = vmatpush1.msra.mxu0 0.0
      %2374 = vmatprep.mubr.f32.mxu0 0.0
      %2375 = vmatmul.mubr.f32.gmra.mrb[0].mxu0 %v2305
      %v2376 = vpop.f32.mrb[0].mxu0
      %v2377 = vadd.f32 %v2296, %v2376
      %v2378 = vpop.f32.mrb[0].mxu0
      %v2379 = vadd.f32 %v2296, %v2378
      %2380 = vmatprep.mubr.f32.mxu0 0.0
      %2381 = vmatmul.mubr.f32.gmra.mrb[0].mxu0 %v2308
      %v2382 = vpop.f32.mrb[0].mxu0
      %v2383 = vadd.f32 %v2301, %v2382
      %v2384 = vpop.f32.mrb[0].mxu0
      %v2385 = vadd.f32 %v2301, %v2384
      %2386 = vdwg.mxu0
      %v2387 = vmax.f32 %v2377, 0.0
      %v2388 = vmax.f32 %v2379, 0.0
      %v2389 = vmax.f32 %v2383, 0.0
      %v2390 = vmax.f32 %v2385, 0.0
      %v2391 = vld [vmem:[%s15] sm:$0x1]
      %v2392 = vld [vmem:[#allocation3] sm:$0x1]
      %2394 = vset.pattern.permute.xlu0 0
      %2395 = vperm.xlu0 %2394, %v2392
      %v2396 = vpop.permute.xlu0 %2395
      %v2398 = vlaneseq
      %v2399 = vshrl.u32 %v2398, 7
      %v2400 = vsub.s32 0, %v2399
      %v2401 = vrot.slane %v2396, %v2400
      %vm2402 = vcmask 130048
      %v2404 = vsel %vm2402, %v2391, 0
      %2406 = vmatprep.subr.mxu0 %v2388
      %2407 = vmatpush1.msra.mxu0 %v2387
      %2408 = vmatprep.subr.mxu0 %v2390
      %2409 = vmatpush1.msra.mxu0 %v2389
      %2410 = vmatprep.subr.mxu0 0.0
      %2411 = vmatpush1.msra.mxu0 0.0
      %2412 = vmatprep.subr.mxu0 0.0
      %2413 = vmatpush1.msra.mxu0 0.0
      %2414 = vmatprep.subr.mxu0 0.0
      %2415 = vmatpush1.msra.mxu0 0.0
      %2416 = vmatprep.subr.mxu0 0.0
      %2417 = vmatpush1.msra.mxu0 0.0
      %2418 = vmatprep.subr.mxu0 0.0
      %2419 = vmatpush1.msra.mxu0 0.0
      %2420 = vmatprep.subr.mxu0 0.0
      %2421 = vmatpush1.msra.mxu0 0.0
      %2422 = vmatprep.subr.mxu0 0.0
      %2423 = vmatpush1.msra.mxu0 0.0
      %2424 = vmatprep.subr.mxu0 0.0
      %2425 = vmatpush1.msra.mxu0 0.0
      %2426 = vmatprep.subr.mxu0 0.0
      %2427 = vmatpush1.msra.mxu0 0.0
      %2428 = vmatprep.subr.mxu0 0.0
      %2429 = vmatpush1.msra.mxu0 0.0
      %2430 = vmatprep.subr.mxu0 0.0
      %2431 = vmatpush1.msra.mxu0 0.0
      %2432 = vmatprep.subr.mxu0 0.0
      %2433 = vmatpush1.msra.mxu0 0.0
      %2434 = vmatprep.subr.mxu0 0.0
      %2435 = vmatpush1.msra.mxu0 0.0
      %2436 = vmatprep.subr.mxu0 0.0
      %2437 = vmatpush1.msra.mxu0 0.0
      %2438 = vmatprep.subr.mxu0 0.0
      %2439 = vmatpush1.msra.mxu0 0.0
      %2440 = vmatprep.subr.mxu0 0.0
      %2441 = vmatpush1.msra.mxu0 0.0
      %2442 = vmatprep.subr.mxu0 0.0
      %2443 = vmatpush1.msra.mxu0 0.0
      %2444 = vmatprep.subr.mxu0 0.0
      %2445 = vmatpush1.msra.mxu0 0.0
      %2446 = vmatprep.subr.mxu0 0.0
      %2447 = vmatpush1.msra.mxu0 0.0
      %2448 = vmatprep.subr.mxu0 0.0
      %2449 = vmatpush1.msra.mxu0 0.0
      %2450 = vmatprep.subr.mxu0 0.0
      %2451 = vmatpush1.msra.mxu0 0.0
      %2452 = vmatprep.subr.mxu0 0.0
      %2453 = vmatpush1.msra.mxu0 0.0
      %2454 = vmatprep.subr.mxu0 0.0
      %2455 = vmatpush1.msra.mxu0 0.0
      %2456 = vmatprep.subr.mxu0 0.0
      %2457 = vmatpush1.msra.mxu0 0.0
      %2458 = vmatprep.subr.mxu0 0.0
      %2459 = vmatpush1.msra.mxu0 0.0
      %2460 = vmatprep.subr.mxu0 0.0
      %2461 = vmatpush1.msra.mxu0 0.0
      %2462 = vmatprep.subr.mxu0 0.0
      %2463 = vmatpush1.msra.mxu0 0.0
      %2464 = vmatprep.subr.mxu0 0.0
      %2465 = vmatpush1.msra.mxu0 0.0
      %2466 = vmatprep.subr.mxu0 0.0
      %2467 = vmatpush1.msra.mxu0 0.0
      %2468 = vmatprep.subr.mxu0 0.0
      %2469 = vmatpush1.msra.mxu0 0.0
      %2470 = vmatprep.mubr.f32.mxu0 0.0
      %2471 = vmatmul.mubr.f32.gmra.mrb[0].mxu0 %v2404
      %v2472 = vpop.f32.mrb[0].mxu0
      %v2473 = vadd.f32 %v2401, %v2472
      %v2474 = vpop.f32.mrb[0].mxu0
      %v2475 = vadd.f32 %v2401, %v2474
      %2476 = vdwg.mxu0
      %v2477 = vxor.u32 %v2473, 2147483648
      %v2478 = vxor.u32 %v2475, 2147483648
      %v2479 = vmul.f32 %v2477, 1.442695
      %v2480 = vpow.pop %v2479
      %v2481 = vmul.f32 %v2478, 1.442695
      %v2482 = vpow.pop %v2481
      %v2483 = vadd.f32 %v2480, 1.0
      %v2484 = vadd.f32 %v2482, 1.0
      %v2485 = vrcp.pop %v2483
      %v2486 = vmul.f32 1.0, %v2485
      %v2487 = vrcp.pop %v2484
      %v2488 = vmul.f32 1.0, %v2487
      %v2491 = vcombine.low %v2486, %v2488
      %v2493 = vunpack.c.l.s4 1966171168
      %v2494 = vunpack.c.0.s8 %v2493
      %v2495 = vlaneseq
      %v2496 = vshrl.u32 %v2495, 7
      %v2497 = vsub.s32 %v2494, %v2496
      %v2498 = vrot.slane %v2491, %v2497
      %v2500 = vunpack.c.l.s4 1966171168
      %v2501 = vunpack.c.0.s8 %v2500
      %v2502 = vlaneseq
      %v2503 = vshrl.u32 %v2502, 7
      %v2504 = vsub.s32 %v2501, %v2503
      %v2505 = vrot.slane %v2498, %v2504
      %v2507 = vlaneseq
      %vm2508 = vcmp.ge.s32.totalorder %v2507, 0
      %vm2509 = vcmp.lt.s32.totalorder %v2507, 256
      %vm2510 = vmand %vm2508, %vm2509
      %2511 = vst.msk [vmem:[%s869] sm:$0x3] %vm2510, %v2505
      %s2512 = smul.u32 2, %s41
      %p2513 = scmp.lt.s32.totalorder %s40, 1
      %s2514 = scalar_select %p2513, %s40, 1
      %p2515 = scmp.lt.s32.totalorder %s2512, 1
      %s2516 = scalar_select %p2515, %s2512, 1
      %s2517 = smul.addr %s2514, 2
      %s2518 = sadd.s32 %s2516, %s2517
      %s2519 = scalar_lea.vmem %s19, %s2518
      %s2520 = smul.u32 2, %s41
      %p2521 = scmp.lt.s32.totalorder %s40, 1
      %s2522 = scalar_select %p2521, %s40, 1
      %p2523 = scmp.lt.s32.totalorder %s2520, 1
      %s2524 = scalar_select %p2523, %s2520, 1
      %s2525 = smul.addr %s2522, 16
      %s2526 = sadd.s32 %s2524, %s2525
      %s2527 = smul.addr %s2526, 8
      %s2528 = scalar_lea.vmem %s20, %s2527
      %s2529 = smul.u32 2, %s41
      %p2530 = scmp.lt.s32.totalorder %s40, 1
      %s2531 = scalar_select %p2530, %s40, 1
      %p2532 = scmp.lt.s32.totalorder %s2529, 1
      %s2533 = scalar_select %p2532, %s2529, 1
      %s2534 = smul.addr %s2531, 16
      %s2535 = sadd.s32 %s2533, %s2534
      %s2536 = smul.addr %s2535, 8
      %s2537 = scalar_lea.vmem %s21, %s2536
      %s2538 = smul.u32 2, %s41
      %p2539 = scmp.lt.s32.totalorder %s40, 1
      %s2540 = scalar_select %p2539, %s40, 1
      %p2541 = scmp.lt.s32.totalorder %s2538, 1
      %s2542 = scalar_select %p2541, %s2538, 1
      %s2543 = smul.addr %s2540, 16
      %s2544 = sadd.s32 %s2542, %s2543
      %s2545 = smul.addr %s2544, 8
      %s2546 = scalar_lea.vmem %s22, %s2545
      // Predicated region
      $region97: #{geometric_feature_extractor.3} parent=95 // pred_check
        %p2547 = pneg %p495
      $region98: #{geometric_feature_extractor.3} parent=95 // pred_check_branch
        %2549 = sbr.rel (%p2547) target = $region100
      $region99: #{geometric_feature_extractor.3} parent=95 // pred_region
        %s2550 = smul.u32 2, %s41
      $region100: #{geometric_feature_extractor.3} parent=95 // pred_fallthru
        _
      // Predicated region
      $region101: #{geometric_feature_extractor.3} parent=95 // pred_check
        %p2551 = pneg %p523
      $region102: #{geometric_feature_extractor.3} parent=95 // pred_check_branch
        %2553 = sbr.rel (%p2551) target = $region104
      $region103: #{geometric_feature_extractor.3} parent=95 // pred_region
        %s2554 = smul.u32 2, %s41
      $region104: #{geometric_feature_extractor.3} parent=95 // pred_fallthru
        _
      // Predicated region
      $region105: #{geometric_feature_extractor.3} parent=95 // pred_check
        %p2555 = pneg %p551
      $region106: #{geometric_feature_extractor.3} parent=95 // pred_check_branch
        %2557 = sbr.rel (%p2555) target = $region108
      $region107: #{geometric_feature_extractor.3} parent=95 // pred_region
        %s2558 = smul.u32 2, %s41
      $region108: #{geometric_feature_extractor.3} parent=95 // pred_fallthru
        _
      // Predicated region
      $region109: #{geometric_feature_extractor.3} parent=95 // pred_check
        %p2559 = pneg %p579
      $region110: #{geometric_feature_extractor.3} parent=95 // pred_check_branch
        %2561 = sbr.rel (%p2559) target = $region112
      $region111: #{geometric_feature_extractor.3} parent=95 // pred_region
        %s2562 = smul.u32 2, %s41
      $region112: #{geometric_feature_extractor.3} parent=95 // pred_fallthru
        _
    $region96: #{geometric_feature_extractor.3} parent=5 // pred_fallthru
      _
    %p2563 = scmp.le.s32.totalorder 2, %s31
    // Predicated region
    $region113: #{geometric_feature_extractor.3} parent=5 // pred_check
      %p2564 = pneg %p2563
    $region114: #{geometric_feature_extractor.3} parent=5 // pred_check_branch
      %2566 = sbr.rel (%p2564) target = $region116
    $region115: #{geometric_feature_extractor.3} parent=5 // pred_region
      %s2567 = ssub.s32 %s31, 2
      // Predicated region
      $region117: #{geometric_feature_extractor.3} parent=115 // pred_check
        %p2568 = pneg %p501
      $region118: #{geometric_feature_extractor.3} parent=115 // pred_check_branch
        %2570 = sbr.rel (%p2568) target = $region120
      $region119: #{geometric_feature_extractor.3} parent=115 // pred_region
        %s2571 = smul.u32 2, %s43
        %p2572 = scmp.lt.s32.totalorder %s42, 1
        %s2573 = scalar_select %p2572, %s42, 1
        %p2574 = scmp.lt.s32.totalorder %s2571, 1
        %s2575 = scalar_select %p2574, %s2571, 1
        %s2576 = smul.addr %s2573, 2
        %s2577 = sadd.s32 %s2575, %s2576
        %s2578 = scalar_lea.vmem %s19, %s2577
      $region120: #{geometric_feature_extractor.3} parent=115 // pred_fallthru
        _
      // Predicated region
      $region121: #{geometric_feature_extractor.3} parent=115 // pred_check
        %p2579 = pneg %p529
      $region122: #{geometric_feature_extractor.3} parent=115 // pred_check_branch
        %2581 = sbr.rel (%p2579) target = $region124
      $region123: #{geometric_feature_extractor.3} parent=115 // pred_region
        %s2582 = smul.u32 2, %s43
        %p2583 = scmp.lt.s32.totalorder %s42, 1
        %s2584 = scalar_select %p2583, %s42, 1
        %p2585 = scmp.lt.s32.totalorder %s2582, 1
        %s2586 = scalar_select %p2585, %s2582, 1
        %s2587 = smul.addr %s2584, 16
        %s2588 = sadd.s32 %s2586, %s2587
        %s2589 = smul.addr %s2588, 8
        %s2590 = scalar_lea.vmem %s20, %s2589
      $region124: #{geometric_feature_extractor.3} parent=115 // pred_fallthru
        _
      // Predicated region
      $region125: #{geometric_feature_extractor.3} parent=115 // pred_check
        %p2591 = pneg %p557
      $region126: #{geometric_feature_extractor.3} parent=115 // pred_check_branch
        %2593 = sbr.rel (%p2591) target = $region128
      $region127: #{geometric_feature_extractor.3} parent=115 // pred_region
        %s2594 = smul.u32 2, %s43
        %p2595 = scmp.lt.s32.totalorder %s42, 1
        %s2596 = scalar_select %p2595, %s42, 1
        %p2597 = scmp.lt.s32.totalorder %s2594, 1
        %s2598 = scalar_select %p2597, %s2594, 1
        %s2599 = smul.addr %s2596, 16
        %s2600 = sadd.s32 %s2598, %s2599
        %s2601 = smul.addr %s2600, 8
        %s2602 = scalar_lea.vmem %s21, %s2601
      $region128: #{geometric_feature_extractor.3} parent=115 // pred_fallthru
        _
      // Predicated region
      $region129: #{geometric_feature_extractor.3} parent=115 // pred_check
        %p2603 = pneg %p585
      $region130: #{geometric_feature_extractor.3} parent=115 // pred_check_branch
        %2605 = sbr.rel (%p2603) target = $region132
      $region131: #{geometric_feature_extractor.3} parent=115 // pred_region
        %s2606 = smul.u32 2, %s43
        %p2607 = scmp.lt.s32.totalorder %s42, 1
        %s2608 = scalar_select %p2607, %s42, 1
        %p2609 = scmp.lt.s32.totalorder %s2606, 1
        %s2610 = scalar_select %p2609, %s2606, 1
        %s2611 = smul.addr %s2608, 16
        %s2612 = sadd.s32 %s2610, %s2611
        %s2613 = smul.addr %s2612, 8
        %s2614 = scalar_lea.vmem %s22, %s2613
      $region132: #{geometric_feature_extractor.3} parent=115 // pred_fallthru
        _
    $region116: #{geometric_feature_extractor.3} parent=5 // pred_fallthru
      _
  $region6: #{geometric_feature_extractor.3} parent=0 // loop_footer
    %s35 = sadd.s32 1, %s31
  $region7: #{geometric_feature_extractor.3} parent=0 // loop_footer_branch
    %30 = sbr.rel target = $region3
  $region8: #{geometric_feature_extractor.3} parent=0 // loop_exit
    _

</llo_original>
